<compile_context>
chip_gen: v7x
topology: tpu7x:2x2x1
jax: 0.10.0
libtpu: 0.0.40
codegen_flags: <defaults>
</compile_context>

<pallas_src>
import functools

import numpy as np
import jax
import jax.numpy as jnp
from jax.experimental import pallas as pl
from jax.experimental.pallas import tpu as pltpu


# ---------------------------------------------------------------------------
# Host-side constants (trace-time numpy; depend only on static shapes)
# ---------------------------------------------------------------------------
def _bilinear_matrix(n_in, n_out):
    """(n_out, n_in) linear-interpolation matrix, align_corners=True semantics."""
    if n_in == 1:
        return np.ones((n_out, 1), np.float32)
    src = np.arange(n_out, dtype=np.float64) * (n_in - 1) / (n_out - 1)
    i0 = np.clip(np.floor(src).astype(np.int64), 0, n_in - 1)
    i1 = np.clip(i0 + 1, 0, n_in - 1)
    w1 = (src - i0).astype(np.float32)
    w0 = 1.0 - w1
    m = np.zeros((n_out, n_in), np.float32)
    m[np.arange(n_out), i0] += w0
    m[np.arange(n_out), i1] += w1
    return m


def _build_constants(H, W):
    """Upsample matrix (halo zero-columns baked in) and width-edge tap masks."""
    Hout, Wout = 2 * H, 2 * W
    hwo = Hout * Wout
    # Lane-aligned zero pad on each side of the flattened spatial axis; must be
    # >= Wout + 1 so every 3x3 tap offset stays inside the padded buffer.
    pad0 = ((Wout + 1 + 127) // 128) * 128
    ltot = hwo + 2 * pad0

    # u_flat[c, i*Wout + j] = sum_{h,w} UH[i,h] * UW[j,w] * x_flat[c, h*W + w]
    # TODO(synk): for large spatial sizes build the upsample separably (rows then
    # cols) and tile the spatial axis over a grid dimension (with halo) instead
    # of one dense Kronecker matrix, to stay inside v7x's 64 MiB VMEM.
    kr = np.kron(_bilinear_matrix(H, Hout), _bilinear_matrix(W, Wout))  # (hwo, H*W)
    m2 = np.zeros((H * W, ltot), np.float32)
    m2[:, pad0:pad0 + hwo] = kr.T

    # Width-edge validity of tap kw at flattened position q (j = q % Wout):
    #   kw=0 needs j-1 >= 0, kw=1 always valid, kw=2 needs j+1 <= Wout-1.
    j = np.arange(hwo) % Wout
    wmask = np.stack([(j >= 1).astype(np.float32),
                      np.ones(hwo, np.float32),
                      (j <= Wout - 2).astype(np.float32)], axis=0)       # (3, hwo)
    return m2, wmask, pad0


# ---------------------------------------------------------------------------
# Fused kernel: upsample + (conv3x3 -> InstanceNorm -> ReLU) x 2, per batch elem
# ---------------------------------------------------------------------------
def _fused_kernel(x_ref, m2_ref, wmask_ref, w1_ref, w2_ref, o_ref,
                  fp1_ref, fp2_ref, pat1_ref, pat2_ref, *, wout, pad0, hw):
    # x_ref    : (1, Cin, Hin*Win)  input batch element, spatial flattened on lanes
    # m2_ref   : (Hin*Win, L)       upsample matrix, L = hw + 2*pad0 (zero flanks)
    # wmask_ref: (3, hw)            width-edge masks per kw tap
    # w1_ref   : (Cmid, 9*Cin)      conv1 weights, rows ordered (kh, kw, cin)
    # w2_ref   : (Cout, 9*Cmid)     conv2 weights
    # o_ref    : (1, Cout, hw)      output, channel-first, spatial on lanes
    # fp*_ref  : (C, L)     VMEM    zero-row-padded flat activations
    # pat*_ref : (9*C, hw)  VMEM    im2col patch matrices
    x = x_ref[0].astype(jnp.float32)                                  # (Cin, Hin*Win)

    # Bilinear 2x upsample (+ conv1 halo zero rows) as one matmul.
    fp1_ref[...] = jnp.dot(x, m2_ref[...], preferred_element_type=jnp.float32)

    def conv3x3_in_relu(fp_ref, pat_ref, w_ref):
        """3x3 conv (pad=1, no bias) + InstanceNorm2d + ReLU on flat activations."""
        cin = fp_ref.shape[0]
        # Stage the 9 shifted taps into the im2col scratch -> one K=9*cin matmul.
        for kh in range(3):
            for kw in range(3):
                k = kh * 3 + kw
                start = pad0 + (kh - 1) * wout + (kw - 1)
                tap = fp_ref[:, start:start + hw]                     # (cin, hw)
                if kw != 1:                                           # mask width edges
                    tap = tap * wmask_ref[kw:kw + 1, :]
                pat_ref[k * cin:(k + 1) * cin, :] = tap
        y = jnp.dot(w_ref[...].astype(jnp.float32), pat_ref[...],
                    preferred_element_type=jnp.float32)               # (Co, hw)
        # InstanceNorm2d (affine=False, biased variance, eps=1e-5) + ReLU.
        mean = jnp.mean(y, axis=1, keepdims=True)
        var = jnp.mean(jnp.square(y - mean), axis=1, keepdims=True)
        return jnp.maximum((y - mean) * jax.lax.rsqrt(var + 1e-5), 0.0)

    y1 = conv3x3_in_relu(fp1_ref, pat1_ref, w1_ref)                   # (Cmid, hw)

    fp2_ref[...] = jnp.zeros_like(fp2_ref)
    fp2_ref[:, pad0:pad0 + hw] = y1                                   # aligned store
    y2 = conv3x3_in_relu(fp2_ref, pat2_ref, w2_ref)                   # (Cout, hw)

    o_ref[0] = y2.astype(o_ref.dtype)                                 # lane-dense store


# ---------------------------------------------------------------------------
# Up_noskip module: params + forward
# ---------------------------------------------------------------------------
def init_up_noskip_params(key, in_channels, out_channels):
    mid = in_channels // 2
    k1, k2, k3, k4 = jax.random.split(key, 4)
    return dict(
        w1=jax.random.normal(k1, (3, 3, in_channels, mid), jnp.float32) * 0.1,
        b1=jax.random.normal(k2, (mid,), jnp.float32) * 0.1,
        w2=jax.random.normal(k3, (3, 3, mid, out_channels), jnp.float32) * 0.1,
        b2=jax.random.normal(k4, (out_channels,), jnp.float32) * 0.1,
    )


@jax.jit
def up_noskip_forward(x_nchw, params):
    B, Cin, H, W = x_nchw.shape
    Hout, Wout = 2 * H, 2 * W
    hwo = Hout * Wout
    Cmid = params['w1'].shape[-1]
    Cout = params['w2'].shape[-1]

    m2_np, wmask_np, pad0 = _build_constants(H, W)
    ltot = m2_np.shape[1]
    m2 = jnp.asarray(m2_np)
    wmask = jnp.asarray(wmask_np)

    # HWIO -> (Cout, 9*Cin), rows ordered (kh, kw, cin) to match the patch rows.
    # Conv biases (b1, b2) are intentionally NOT passed: a per-channel constant
    # is exactly cancelled by the affine-free InstanceNorm following each conv.
    w1f = jnp.transpose(params['w1'], (3, 0, 1, 2)).reshape(Cmid, 9 * Cin)
    w2f = jnp.transpose(params['w2'], (3, 0, 1, 2)).reshape(Cout, 9 * Cmid)

    x_flat = x_nchw.reshape(B, Cin, H * W)            # free row-major view

    kernel = functools.partial(_fused_kernel, wout=Wout, pad0=pad0, hw=hwo)
    out_flat = pl.pallas_call(
        kernel,
        out_shape=jax.ShapeDtypeStruct((B, Cout, hwo), x_nchw.dtype),
        grid=(B,),
        in_specs=[
            pl.BlockSpec((1, Cin, H * W), lambda b: (b, 0, 0)),
            pl.BlockSpec((H * W, ltot), lambda b: (0, 0)),
            pl.BlockSpec((3, hwo), lambda b: (0, 0)),
            pl.BlockSpec((Cmid, 9 * Cin), lambda b: (0, 0)),
            pl.BlockSpec((Cout, 9 * Cmid), lambda b: (0, 0)),
        ],
        out_specs=pl.BlockSpec((1, Cout, hwo), lambda b: (b, 0, 0)),
        scratch_shapes=[
            pltpu.VMEM((Cin, ltot), jnp.float32),      # padded upsampled activation
            pltpu.VMEM((Cmid, ltot), jnp.float32),     # padded mid activation
            pltpu.VMEM((9 * Cin, hwo), jnp.float32),   # conv1 im2col patches
            pltpu.VMEM((9 * Cmid, hwo), jnp.float32),  # conv2 im2col patches
        ],
        compiler_params=pltpu.CompilerParams(
            # grid=(B,) with B>=2 so both v7x TensorCores get work.
            dimension_semantics=("parallel",)),
    )(x_flat, m2, wmask, w1f, w2f)

    return out_flat.reshape(B, Cout, Hout, Wout)      # free row-major view


# ---------------------------------------------------------------------------
# Pure-JAX reference (with conv biases, to check they are indeed cancelled)
# ---------------------------------------------------------------------------
def reference_forward(x, params):
    B, C, H, W = x.shape
    uh = jnp.asarray(_bilinear_matrix(H, 2 * H))
    uw = jnp.asarray(_bilinear_matrix(W, 2 * W))
    x = jnp.einsum('bchw,pw->bchp', x, uw)
    x = jnp.einsum('bchp,oh->bcop', x, uh)

    def conv_in_relu(x, w_hwio, b):
        w_oihw = jnp.transpose(w_hwio, (3, 2, 0, 1))
        y = jax.lax.conv_general_dilated(
            x, w_oihw, (1, 1), ((1, 1), (1, 1)),
            dimension_numbers=('NCHW', 'OIHW', 'NCHW'))
        y = y + b.reshape(1, -1, 1, 1)
        mean = jnp.mean(y, axis=(2, 3), keepdims=True)
        var = jnp.mean(jnp.square(y - mean), axis=(2, 3), keepdims=True)
        return jnp.maximum((y - mean) * jax.lax.rsqrt(var + 1e-5), 0.0)

    x = conv_in_relu(x, params['w1'], params['b1'])
    x = conv_in_relu(x, params['w2'], params['b2'])
    return x


if __name__ == "__main__":
    key = jax.random.PRNGKey(0)
    k_x, k_p = jax.random.split(key)

    in_channels, out_channels = 4, 8
    B, H, W = 2, 16, 16
    x = jax.random.normal(k_x, (B, in_channels, H, W), jnp.float32)
    params = init_up_noskip_params(k_p, in_channels, out_channels)

    out = jax.block_until_ready(up_noskip_forward(x, params))
    assert out.shape == (B, out_channels, 2 * H, 2 * W), out.shape

    ref = jax.block_until_ready(reference_forward(x, params))
    np.testing.assert_allclose(np.asarray(out), np.asarray(ref), rtol=1e-4, atol=1e-4)

    print("KERNEL_OK")
</pallas_src>

<mosaic_0001>
module attributes {stable_mosaic.version = 11 : i64} {
  func.func @_fused_kernel(%arg0: i32, %arg1: memref<1x4x256xf32, #tpu.memory_space<vmem>>, %arg2: memref<256x1280xf32, #tpu.memory_space<vmem>>, %arg3: memref<3x1024xf32, #tpu.memory_space<vmem>>, %arg4: memref<2x36xf32, #tpu.memory_space<vmem>>, %arg5: memref<8x18xf32, #tpu.memory_space<vmem>>, %arg6: memref<1x8x1024xf32, #tpu.memory_space<vmem>>, %arg7: memref<4x1280xf32, #tpu.memory_space<vmem>>, %arg8: memref<2x1280xf32, #tpu.memory_space<vmem>>, %arg9: memref<36x1024xf32, #tpu.memory_space<vmem>>, %arg10: memref<18x1024xf32, #tpu.memory_space<vmem>>) attributes {dimension_semantics = [#tpu.dimension_semantics<parallel>], iteration_bounds = array<i64: 2>, scalar_prefetch = 0 : i64, scratch_operands = 4 : i64, tpu.core_type = #tpu.core_type<tc>, window_params = [{transform_indices = @transform_0, window_bounds = array<i64: 1, 4, 256>}, {pipeline_mode = #tpu.pipeline_mode<synchronous>, transform_indices = @transform_1, window_bounds = array<i64: 256, 1280>}, {pipeline_mode = #tpu.pipeline_mode<synchronous>, transform_indices = @transform_2, window_bounds = array<i64: 3, 1024>}, {pipeline_mode = #tpu.pipeline_mode<synchronous>, transform_indices = @transform_3, window_bounds = array<i64: 2, 36>}, {pipeline_mode = #tpu.pipeline_mode<synchronous>, transform_indices = @transform_4, window_bounds = array<i64: 8, 18>}, {transform_indices = @transform_5, window_bounds = array<i64: 1, 8, 1024>}]} {
    %c0 = arith.constant 0 : index
    %c0_0 = arith.constant 0 : index
    %c0_1 = arith.constant 0 : index
    %0 = vector.load %arg1[%c0, %c0_0, %c0_1] : memref<1x4x256xf32, #tpu.memory_space<vmem>>, vector<1x4x256xf32>
    %1 = vector.shape_cast %0 : vector<1x4x256xf32> to vector<4x256xf32>
    %c0_2 = arith.constant 0 : index
    %c0_3 = arith.constant 0 : index
    %2 = vector.load %arg2[%c0_2, %c0_3] : memref<256x1280xf32, #tpu.memory_space<vmem>>, vector<256x1280xf32>
    %cst = arith.constant dense<0.000000e+00> : vector<4x1280xf32>
    %3 = tpu.matmul %1, %2, %cst {dimension_numbers = #tpu.dot_dimension_numbers<[1], [0], [0], [1], [0, 0, 1, 1], [], []>} : vector<4x256xf32>, vector<256x1280xf32>, vector<4x1280xf32> -> vector<4x1280xf32>
    %c0_4 = arith.constant 0 : index
    %c0_5 = arith.constant 0 : index
    %4 = vector.load %arg7[%c0_4, %c0_5] : memref<4x1280xf32, #tpu.memory_space<vmem>>, vector<4x1280xf32>
    tpu.vector_store %arg7[%c0_4, %c0_5], %3 {strides = array<i32>} : memref<4x1280xf32, #tpu.memory_space<vmem>>, vector<4x1280xf32>,
    %c0_6 = arith.constant 0 : index
    %c95 = arith.constant 95 : index
    %5 = vector.load %arg7[%c0_6, %c95] : memref<4x1280xf32, #tpu.memory_space<vmem>>, vector<4x1024xf32>
    %c0_7 = arith.constant 0 : index
    %c0_8 = arith.constant 0 : index
    %6 = vector.load %arg3[%c0_7, %c0_8] : memref<3x1024xf32, #tpu.memory_space<vmem>>, vector<1x1024xf32>
    %7 = vector.broadcast %6 : vector<1x1024xf32> to vector<4x1024xf32>
    %8 = arith.mulf %5, %7 : vector<4x1024xf32>
    %c0_9 = arith.constant 0 : index
    %c0_10 = arith.constant 0 : index
    %9 = vector.load %arg9[%c0_9, %c0_10] : memref<36x1024xf32, #tpu.memory_space<vmem>>, vector<4x1024xf32>
    tpu.vector_store %arg9[%c0_9, %c0_10], %8 {strides = array<i32>} : memref<36x1024xf32, #tpu.memory_space<vmem>>, vector<4x1024xf32>,
    %c0_11 = arith.constant 0 : index
    %c96 = arith.constant 96 : index
    %10 = vector.load %arg7[%c0_11, %c96] : memref<4x1280xf32, #tpu.memory_space<vmem>>, vector<4x1024xf32>
    %c4 = arith.constant 4 : index
    %c0_12 = arith.constant 0 : index
    %11 = vector.load %arg9[%c4, %c0_12] : memref<36x1024xf32, #tpu.memory_space<vmem>>, vector<4x1024xf32>
    tpu.vector_store %arg9[%c4, %c0_12], %10 {strides = array<i32>} : memref<36x1024xf32, #tpu.memory_space<vmem>>, vector<4x1024xf32>,
    %c0_13 = arith.constant 0 : index
    %c97 = arith.constant 97 : index
    %12 = vector.load %arg7[%c0_13, %c97] : memref<4x1280xf32, #tpu.memory_space<vmem>>, vector<4x1024xf32>
    %c2 = arith.constant 2 : index
    %c0_14 = arith.constant 0 : index
    %13 = vector.load %arg3[%c2, %c0_14] : memref<3x1024xf32, #tpu.memory_space<vmem>>, vector<1x1024xf32>
    %14 = vector.broadcast %13 : vector<1x1024xf32> to vector<4x1024xf32>
    %15 = arith.mulf %12, %14 : vector<4x1024xf32>
    %c8 = arith.constant 8 : index
    %c0_15 = arith.constant 0 : index
    %16 = vector.load %arg9[%c8, %c0_15] : memref<36x1024xf32, #tpu.memory_space<vmem>>, vector<4x1024xf32>
    tpu.vector_store %arg9[%c8, %c0_15], %15 {strides = array<i32>} : memref<36x1024xf32, #tpu.memory_space<vmem>>, vector<4x1024xf32>,
    %c0_16 = arith.constant 0 : index
    %c127 = arith.constant 127 : index
    %17 = vector.load %arg7[%c0_16, %c127] : memref<4x1280xf32, #tpu.memory_space<vmem>>, vector<4x1024xf32>
    %c0_17 = arith.constant 0 : index
    %c0_18 = arith.constant 0 : index
    %18 = vector.load %arg3[%c0_17, %c0_18] : memref<3x1024xf32, #tpu.memory_space<vmem>>, vector<1x1024xf32>
    %19 = vector.broadcast %18 : vector<1x1024xf32> to vector<4x1024xf32>
    %20 = arith.mulf %17, %19 : vector<4x1024xf32>
    %c12 = arith.constant 12 : index
    %c0_19 = arith.constant 0 : index
    %21 = vector.load %arg9[%c12, %c0_19] : memref<36x1024xf32, #tpu.memory_space<vmem>>, vector<4x1024xf32>
    tpu.vector_store %arg9[%c12, %c0_19], %20 {strides = array<i32>} : memref<36x1024xf32, #tpu.memory_space<vmem>>, vector<4x1024xf32>,
    %c0_20 = arith.constant 0 : index
    %c128 = arith.constant 128 : index
    %22 = vector.load %arg7[%c0_20, %c128] : memref<4x1280xf32, #tpu.memory_space<vmem>>, vector<4x1024xf32>
    %c16 = arith.constant 16 : index
    %c0_21 = arith.constant 0 : index
    %23 = vector.load %arg9[%c16, %c0_21] : memref<36x1024xf32, #tpu.memory_space<vmem>>, vector<4x1024xf32>
    tpu.vector_store %arg9[%c16, %c0_21], %22 {strides = array<i32>} : memref<36x1024xf32, #tpu.memory_space<vmem>>, vector<4x1024xf32>,
    %c0_22 = arith.constant 0 : index
    %c129 = arith.constant 129 : index
    %24 = vector.load %arg7[%c0_22, %c129] : memref<4x1280xf32, #tpu.memory_space<vmem>>, vector<4x1024xf32>
    %c2_23 = arith.constant 2 : index
    %c0_24 = arith.constant 0 : index
    %25 = vector.load %arg3[%c2_23, %c0_24] : memref<3x1024xf32, #tpu.memory_space<vmem>>, vector<1x1024xf32>
    %26 = vector.broadcast %25 : vector<1x1024xf32> to vector<4x1024xf32>
    %27 = arith.mulf %24, %26 : vector<4x1024xf32>
    %c20 = arith.constant 20 : index
    %c0_25 = arith.constant 0 : index
    %28 = vector.load %arg9[%c20, %c0_25] : memref<36x1024xf32, #tpu.memory_space<vmem>>, vector<4x1024xf32>
    tpu.vector_store %arg9[%c20, %c0_25], %27 {strides = array<i32>} : memref<36x1024xf32, #tpu.memory_space<vmem>>, vector<4x1024xf32>,
    %c0_26 = arith.constant 0 : index
    %c159 = arith.constant 159 : index
    %29 = vector.load %arg7[%c0_26, %c159] : memref<4x1280xf32, #tpu.memory_space<vmem>>, vector<4x1024xf32>
    %c0_27 = arith.constant 0 : index
    %c0_28 = arith.constant 0 : index
    %30 = vector.load %arg3[%c0_27, %c0_28] : memref<3x1024xf32, #tpu.memory_space<vmem>>, vector<1x1024xf32>
    %31 = vector.broadcast %30 : vector<1x1024xf32> to vector<4x1024xf32>
    %32 = arith.mulf %29, %31 : vector<4x1024xf32>
    %c24 = arith.constant 24 : index
    %c0_29 = arith.constant 0 : index
    %33 = vector.load %arg9[%c24, %c0_29] : memref<36x1024xf32, #tpu.memory_space<vmem>>, vector<4x1024xf32>
    tpu.vector_store %arg9[%c24, %c0_29], %32 {strides = array<i32>} : memref<36x1024xf32, #tpu.memory_space<vmem>>, vector<4x1024xf32>,
    %c0_30 = arith.constant 0 : index
    %c160 = arith.constant 160 : index
    %34 = vector.load %arg7[%c0_30, %c160] : memref<4x1280xf32, #tpu.memory_space<vmem>>, vector<4x1024xf32>
    %c28 = arith.constant 28 : index
    %c0_31 = arith.constant 0 : index
    %35 = vector.load %arg9[%c28, %c0_31] : memref<36x1024xf32, #tpu.memory_space<vmem>>, vector<4x1024xf32>
    tpu.vector_store %arg9[%c28, %c0_31], %34 {strides = array<i32>} : memref<36x1024xf32, #tpu.memory_space<vmem>>, vector<4x1024xf32>,
    %c0_32 = arith.constant 0 : index
    %c161 = arith.constant 161 : index
    %36 = vector.load %arg7[%c0_32, %c161] : memref<4x1280xf32, #tpu.memory_space<vmem>>, vector<4x1024xf32>
    %c2_33 = arith.constant 2 : index
    %c0_34 = arith.constant 0 : index
    %37 = vector.load %arg3[%c2_33, %c0_34] : memref<3x1024xf32, #tpu.memory_space<vmem>>, vector<1x1024xf32>
    %38 = vector.broadcast %37 : vector<1x1024xf32> to vector<4x1024xf32>
    %39 = arith.mulf %36, %38 : vector<4x1024xf32>
    %c32 = arith.constant 32 : index
    %c0_35 = arith.constant 0 : index
    %40 = vector.load %arg9[%c32, %c0_35] : memref<36x1024xf32, #tpu.memory_space<vmem>>, vector<4x1024xf32>
    tpu.vector_store %arg9[%c32, %c0_35], %39 {strides = array<i32>} : memref<36x1024xf32, #tpu.memory_space<vmem>>, vector<4x1024xf32>,
    %c0_36 = arith.constant 0 : index
    %c0_37 = arith.constant 0 : index
    %41 = vector.load %arg4[%c0_36, %c0_37] : memref<2x36xf32, #tpu.memory_space<vmem>>, vector<2x36xf32>
    %c0_38 = arith.constant 0 : index
    %c0_39 = arith.constant 0 : index
    %42 = vector.load %arg9[%c0_38, %c0_39] : memref<36x1024xf32, #tpu.memory_space<vmem>>, vector<36x1024xf32>
    %cst_40 = arith.constant dense<0.000000e+00> : vector<2x1024xf32>
    %43 = tpu.matmul %41, %42, %cst_40 {dimension_numbers = #tpu.dot_dimension_numbers<[1], [0], [0], [1], [0, 0, 1, 1], [], []>} : vector<2x36xf32>, vector<36x1024xf32>, vector<2x1024xf32> -> vector<2x1024xf32>
    %cst_41 = arith.constant dense<0.000000e+00> : vector<2xf32>
    %44 = vector.multi_reduction <add>, %43, %cst_41 [1] : vector<2x1024xf32> to vector<2xf32>
    %45 = vector.shape_cast %44 : vector<2xf32> to vector<2x1xf32>
    %cst_42 = arith.constant 1.024000e+03 : f32
    %46 = vector.broadcast %cst_42 : f32 to vector<2x1xf32>
    %47 = arith.divf %45, %46 : vector<2x1xf32>
    %48 = vector.broadcast %47 : vector<2x1xf32> to vector<2x1024xf32>
    %49 = arith.subf %43, %48 : vector<2x1024xf32>
    %50 = arith.mulf %49, %49 : vector<2x1024xf32>
    %cst_43 = arith.constant dense<0.000000e+00> : vector<2xf32>
    %51 = vector.multi_reduction <add>, %50, %cst_43 [1] : vector<2x1024xf32> to vector<2xf32>
    %52 = vector.shape_cast %51 : vector<2xf32> to vector<2x1xf32>
    %cst_44 = arith.constant 1.024000e+03 : f32
    %53 = vector.broadcast %cst_44 : f32 to vector<2x1xf32>
    %54 = arith.divf %52, %53 : vector<2x1xf32>
    %55 = vector.broadcast %47 : vector<2x1xf32> to vector<2x1024xf32>
    %56 = arith.subf %43, %55 : vector<2x1024xf32>
    %cst_45 = arith.constant 9.99999974E-6 : f32
    %57 = vector.broadcast %cst_45 : f32 to vector<2x1xf32>
    %58 = arith.addf %54, %57 : vector<2x1xf32>
    %59 = math.rsqrt %58 : vector<2x1xf32>
    %60 = vector.broadcast %59 : vector<2x1xf32> to vector<2x1024xf32>
    %61 = arith.mulf %56, %60 : vector<2x1024xf32>
    %cst_46 = arith.constant 0.000000e+00 : f32
    %62 = vector.broadcast %cst_46 : f32 to vector<2x1024xf32>
    %63 = arith.maximumf %61, %62 : vector<2x1024xf32>
    %cst_47 = arith.constant 0.000000e+00 : f32
    %64 = vector.broadcast %cst_47 : f32 to vector<2x1280xf32>
    %c0_48 = arith.constant 0 : index
    %c0_49 = arith.constant 0 : index
    %65 = vector.load %arg8[%c0_48, %c0_49] : memref<2x1280xf32, #tpu.memory_space<vmem>>, vector<2x1280xf32>
    tpu.vector_store %arg8[%c0_48, %c0_49], %64 {strides = array<i32>} : memref<2x1280xf32, #tpu.memory_space<vmem>>, vector<2x1280xf32>,
    %c0_50 = arith.constant 0 : index
    %c128_51 = arith.constant 128 : index
    %66 = vector.load %arg8[%c0_50, %c128_51] : memref<2x1280xf32, #tpu.memory_space<vmem>>, vector<2x1024xf32>
    tpu.vector_store %arg8[%c0_50, %c128_51], %63 {strides = array<i32>} : memref<2x1280xf32, #tpu.memory_space<vmem>>, vector<2x1024xf32>,
    %c0_52 = arith.constant 0 : index
    %c95_53 = arith.constant 95 : index
    %67 = vector.load %arg8[%c0_52, %c95_53] : memref<2x1280xf32, #tpu.memory_space<vmem>>, vector<2x1024xf32>
    %c0_54 = arith.constant 0 : index
    %c0_55 = arith.constant 0 : index
    %68 = vector.load %arg3[%c0_54, %c0_55] : memref<3x1024xf32, #tpu.memory_space<vmem>>, vector<1x1024xf32>
    %69 = vector.broadcast %68 : vector<1x1024xf32> to vector<2x1024xf32>
    %70 = arith.mulf %67, %69 : vector<2x1024xf32>
    %c0_56 = arith.constant 0 : index
    %c0_57 = arith.constant 0 : index
    %71 = vector.load %arg10[%c0_56, %c0_57] : memref<18x1024xf32, #tpu.memory_space<vmem>>, vector<2x1024xf32>
    tpu.vector_store %arg10[%c0_56, %c0_57], %70 {strides = array<i32>} : memref<18x1024xf32, #tpu.memory_space<vmem>>, vector<2x1024xf32>,
    %c0_58 = arith.constant 0 : index
    %c96_59 = arith.constant 96 : index
    %72 = vector.load %arg8[%c0_58, %c96_59] : memref<2x1280xf32, #tpu.memory_space<vmem>>, vector<2x1024xf32>
    %c2_60 = arith.constant 2 : index
    %c0_61 = arith.constant 0 : index
    %73 = vector.load %arg10[%c2_60, %c0_61] : memref<18x1024xf32, #tpu.memory_space<vmem>>, vector<2x1024xf32>
    tpu.vector_store %arg10[%c2_60, %c0_61], %72 {strides = array<i32>} : memref<18x1024xf32, #tpu.memory_space<vmem>>, vector<2x1024xf32>,
    %c0_62 = arith.constant 0 : index
    %c97_63 = arith.constant 97 : index
    %74 = vector.load %arg8[%c0_62, %c97_63] : memref<2x1280xf32, #tpu.memory_space<vmem>>, vector<2x1024xf32>
    %c2_64 = arith.constant 2 : index
    %c0_65 = arith.constant 0 : index
    %75 = vector.load %arg3[%c2_64, %c0_65] : memref<3x1024xf32, #tpu.memory_space<vmem>>, vector<1x1024xf32>
    %76 = vector.broadcast %75 : vector<1x1024xf32> to vector<2x1024xf32>
    %77 = arith.mulf %74, %76 : vector<2x1024xf32>
    %c4_66 = arith.constant 4 : index
    %c0_67 = arith.constant 0 : index
    %78 = vector.load %arg10[%c4_66, %c0_67] : memref<18x1024xf32, #tpu.memory_space<vmem>>, vector<2x1024xf32>
    tpu.vector_store %arg10[%c4_66, %c0_67], %77 {strides = array<i32>} : memref<18x1024xf32, #tpu.memory_space<vmem>>, vector<2x1024xf32>,
    %c0_68 = arith.constant 0 : index
    %c127_69 = arith.constant 127 : index
    %79 = vector.load %arg8[%c0_68, %c127_69] : memref<2x1280xf32, #tpu.memory_space<vmem>>, vector<2x1024xf32>
    %c0_70 = arith.constant 0 : index
    %c0_71 = arith.constant 0 : index
    %80 = vector.load %arg3[%c0_70, %c0_71] : memref<3x1024xf32, #tpu.memory_space<vmem>>, vector<1x1024xf32>
    %81 = vector.broadcast %80 : vector<1x1024xf32> to vector<2x1024xf32>
    %82 = arith.mulf %79, %81 : vector<2x1024xf32>
    %c6 = arith.constant 6 : index
    %c0_72 = arith.constant 0 : index
    %83 = vector.load %arg10[%c6, %c0_72] : memref<18x1024xf32, #tpu.memory_space<vmem>>, vector<2x1024xf32>
    tpu.vector_store %arg10[%c6, %c0_72], %82 {strides = array<i32>} : memref<18x1024xf32, #tpu.memory_space<vmem>>, vector<2x1024xf32>,
    %c0_73 = arith.constant 0 : index
    %c128_74 = arith.constant 128 : index
    %84 = vector.load %arg8[%c0_73, %c128_74] : memref<2x1280xf32, #tpu.memory_space<vmem>>, vector<2x1024xf32>
    %c8_75 = arith.constant 8 : index
    %c0_76 = arith.constant 0 : index
    %85 = vector.load %arg10[%c8_75, %c0_76] : memref<18x1024xf32, #tpu.memory_space<vmem>>, vector<2x1024xf32>
    tpu.vector_store %arg10[%c8_75, %c0_76], %84 {strides = array<i32>} : memref<18x1024xf32, #tpu.memory_space<vmem>>, vector<2x1024xf32>,
    %c0_77 = arith.constant 0 : index
    %c129_78 = arith.constant 129 : index
    %86 = vector.load %arg8[%c0_77, %c129_78] : memref<2x1280xf32, #tpu.memory_space<vmem>>, vector<2x1024xf32>
    %c2_79 = arith.constant 2 : index
    %c0_80 = arith.constant 0 : index
    %87 = vector.load %arg3[%c2_79, %c0_80] : memref<3x1024xf32, #tpu.memory_space<vmem>>, vector<1x1024xf32>
    %88 = vector.broadcast %87 : vector<1x1024xf32> to vector<2x1024xf32>
    %89 = arith.mulf %86, %88 : vector<2x1024xf32>
    %c10 = arith.constant 10 : index
    %c0_81 = arith.constant 0 : index
    %90 = vector.load %arg10[%c10, %c0_81] : memref<18x1024xf32, #tpu.memory_space<vmem>>, vector<2x1024xf32>
    tpu.vector_store %arg10[%c10, %c0_81], %89 {strides = array<i32>} : memref<18x1024xf32, #tpu.memory_space<vmem>>, vector<2x1024xf32>,
    %c0_82 = arith.constant 0 : index
    %c159_83 = arith.constant 159 : index
    %91 = vector.load %arg8[%c0_82, %c159_83] : memref<2x1280xf32, #tpu.memory_space<vmem>>, vector<2x1024xf32>
    %c0_84 = arith.constant 0 : index
    %c0_85 = arith.constant 0 : index
    %92 = vector.load %arg3[%c0_84, %c0_85] : memref<3x1024xf32, #tpu.memory_space<vmem>>, vector<1x1024xf32>
    %93 = vector.broadcast %92 : vector<1x1024xf32> to vector<2x1024xf32>
    %94 = arith.mulf %91, %93 : vector<2x1024xf32>
    %c12_86 = arith.constant 12 : index
    %c0_87 = arith.constant 0 : index
    %95 = vector.load %arg10[%c12_86, %c0_87] : memref<18x1024xf32, #tpu.memory_space<vmem>>, vector<2x1024xf32>
    tpu.vector_store %arg10[%c12_86, %c0_87], %94 {strides = array<i32>} : memref<18x1024xf32, #tpu.memory_space<vmem>>, vector<2x1024xf32>,
    %c0_88 = arith.constant 0 : index
    %c160_89 = arith.constant 160 : index
    %96 = vector.load %arg8[%c0_88, %c160_89] : memref<2x1280xf32, #tpu.memory_space<vmem>>, vector<2x1024xf32>
    %c14 = arith.constant 14 : index
    %c0_90 = arith.constant 0 : index
    %97 = vector.load %arg10[%c14, %c0_90] : memref<18x1024xf32, #tpu.memory_space<vmem>>, vector<2x1024xf32>
    tpu.vector_store %arg10[%c14, %c0_90], %96 {strides = array<i32>} : memref<18x1024xf32, #tpu.memory_space<vmem>>, vector<2x1024xf32>,
    %c0_91 = arith.constant 0 : index
    %c161_92 = arith.constant 161 : index
    %98 = vector.load %arg8[%c0_91, %c161_92] : memref<2x1280xf32, #tpu.memory_space<vmem>>, vector<2x1024xf32>
    %c2_93 = arith.constant 2 : index
    %c0_94 = arith.constant 0 : index
    %99 = vector.load %arg3[%c2_93, %c0_94] : memref<3x1024xf32, #tpu.memory_space<vmem>>, vector<1x1024xf32>
    %100 = vector.broadcast %99 : vector<1x1024xf32> to vector<2x1024xf32>
    %101 = arith.mulf %98, %100 : vector<2x1024xf32>
    %c16_95 = arith.constant 16 : index
    %c0_96 = arith.constant 0 : index
    %102 = vector.load %arg10[%c16_95, %c0_96] : memref<18x1024xf32, #tpu.memory_space<vmem>>, vector<2x1024xf32>
    tpu.vector_store %arg10[%c16_95, %c0_96], %101 {strides = array<i32>} : memref<18x1024xf32, #tpu.memory_space<vmem>>, vector<2x1024xf32>,
    %c0_97 = arith.constant 0 : index
    %c0_98 = arith.constant 0 : index
    %103 = vector.load %arg5[%c0_97, %c0_98] : memref<8x18xf32, #tpu.memory_space<vmem>>, vector<8x18xf32>
    %c0_99 = arith.constant 0 : index
    %c0_100 = arith.constant 0 : index
    %104 = vector.load %arg10[%c0_99, %c0_100] : memref<18x1024xf32, #tpu.memory_space<vmem>>, vector<18x1024xf32>
    %cst_101 = arith.constant dense<0.000000e+00> : vector<8x1024xf32>
    %105 = tpu.matmul %103, %104, %cst_101 {dimension_numbers = #tpu.dot_dimension_numbers<[1], [0], [0], [1], [0, 0, 1, 1], [], []>} : vector<8x18xf32>, vector<18x1024xf32>, vector<8x1024xf32> -> vector<8x1024xf32>
    %cst_102 = arith.constant dense<0.000000e+00> : vector<8xf32>
    %106 = vector.multi_reduction <add>, %105, %cst_102 [1] : vector<8x1024xf32> to vector<8xf32>
    %107 = vector.shape_cast %106 : vector<8xf32> to vector<8x1xf32>
    %cst_103 = arith.constant 1.024000e+03 : f32
    %108 = vector.broadcast %cst_103 : f32 to vector<8x1xf32>
    %109 = arith.divf %107, %108 : vector<8x1xf32>
    %110 = vector.broadcast %109 : vector<8x1xf32> to vector<8x1024xf32>
    %111 = arith.subf %105, %110 : vector<8x1024xf32>
    %112 = arith.mulf %111, %111 : vector<8x1024xf32>
    %cst_104 = arith.constant dense<0.000000e+00> : vector<8xf32>
    %113 = vector.multi_reduction <add>, %112, %cst_104 [1] : vector<8x1024xf32> to vector<8xf32>
    %114 = vector.shape_cast %113 : vector<8xf32> to vector<8x1xf32>
    %cst_105 = arith.constant 1.024000e+03 : f32
    %115 = vector.broadcast %cst_105 : f32 to vector<8x1xf32>
    %116 = arith.divf %114, %115 : vector<8x1xf32>
    %117 = vector.broadcast %109 : vector<8x1xf32> to vector<8x1024xf32>
    %118 = arith.subf %105, %117 : vector<8x1024xf32>
    %cst_106 = arith.constant 9.99999974E-6 : f32
    %119 = vector.broadcast %cst_106 : f32 to vector<8x1xf32>
    %120 = arith.addf %116, %119 : vector<8x1xf32>
    %121 = math.rsqrt %120 : vector<8x1xf32>
    %122 = vector.broadcast %121 : vector<8x1xf32> to vector<8x1024xf32>
    %123 = arith.mulf %118, %122 : vector<8x1024xf32>
    %cst_107 = arith.constant 0.000000e+00 : f32
    %124 = vector.broadcast %cst_107 : f32 to vector<8x1024xf32>
    %125 = arith.maximumf %123, %124 : vector<8x1024xf32>
    %c0_108 = arith.constant 0 : index
    %c0_109 = arith.constant 0 : index
    %c0_110 = arith.constant 0 : index
    %126 = vector.load %arg6[%c0_108, %c0_109, %c0_110] : memref<1x8x1024xf32, #tpu.memory_space<vmem>>, vector<1x8x1024xf32>
    %127 = vector.shape_cast %126 : vector<1x8x1024xf32> to vector<8x1024xf32>
    %128 = vector.shape_cast %125 : vector<8x1024xf32> to vector<1x8x1024xf32>
    tpu.vector_store %arg6[%c0_108, %c0_109, %c0_110], %128 {strides = array<i32>} : memref<1x8x1024xf32, #tpu.memory_space<vmem>>, vector<1x8x1024xf32>,
    return
  }
  func.func @transform_0(%arg0: i32) -> (i32, i32, i32) {
    %c0_i32 = arith.constant 0 : i32
    %c0_i32_0 = arith.constant 0 : i32
    %c0_i32_1 = arith.constant 0 : i32
    return %arg0, %c0_i32, %c0_i32_0 : i32, i32, i32
  }
  func.func @transform_1(%arg0: i32) -> (i32, i32) {
    %c0_i32 = arith.constant 0 : i32
    %c0_i32_0 = arith.constant 0 : i32
    %c0_i32_1 = arith.constant 0 : i32
    return %c0_i32, %c0_i32_0 : i32, i32
  }
  func.func @transform_2(%arg0: i32) -> (i32, i32) {
    %c0_i32 = arith.constant 0 : i32
    %c0_i32_0 = arith.constant 0 : i32
    %c0_i32_1 = arith.constant 0 : i32
    return %c0_i32, %c0_i32_0 : i32, i32
  }
  func.func @transform_3(%arg0: i32) -> (i32, i32) {
    %c0_i32 = arith.constant 0 : i32
    %c0_i32_0 = arith.constant 0 : i32
    %c0_i32_1 = arith.constant 0 : i32
    return %c0_i32, %c0_i32_0 : i32, i32
  }
  func.func @transform_4(%arg0: i32) -> (i32, i32) {
    %c0_i32 = arith.constant 0 : i32
    %c0_i32_0 = arith.constant 0 : i32
    %c0_i32_1 = arith.constant 0 : i32
    return %c0_i32, %c0_i32_0 : i32, i32
  }
  func.func @transform_5(%arg0: i32) -> (i32, i32, i32) {
    %c0_i32 = arith.constant 0 : i32
    %c0_i32_0 = arith.constant 0 : i32
    %c0_i32_1 = arith.constant 0 : i32
    return %arg0, %c0_i32, %c0_i32_0 : i32, i32, i32
  }
}

</mosaic_0001>

<llo_original>
// kernel: up_noskip_forward.1
$region0: #{up_noskip_forward.1}
  #allocation0 [shape = 'u32[]', space=smem, size = 0x4, offset = 0x4, fixed_abs, tag = 'smem constant byte address 0x4 - core index']
  #allocation1 [shape = 'u32[144,128]{1,0:T(1,128)}', space=vmem, size = 0x12000, scoped, tag = 'internal scratch']
  #allocation2 [shape = 'f32[4,1280]{1,0:T(4,128)}', space=vmem, size = 0x5000, scoped, tag = 'scratch operand']
  #allocation3 [shape = 'f32[2,1280]{1,0:T(2,128)}', space=vmem, size = 0x2800, scoped, tag = 'scratch operand']
  #allocation4 [shape = 'f32[36,1024]{1,0:T(8,128)}', space=vmem, size = 0x28000, scoped, tag = 'scratch operand']
  #allocation5 [shape = 'f32[18,1024]{1,0:T(8,128)}', space=vmem, size = 0x18000, scoped, tag = 'scratch operand']
  %s0 = inlined_call_operand.vmem [shape: f32[2,4,256], index: 0, kind: input, shape index: {}]
  %s1 = inlined_call_operand.hbm [shape: f32[256,1280], index: 1, kind: input, shape index: {}]
  %s2 = inlined_call_operand.hbm [shape: f32[3,1024], index: 2, kind: input, shape index: {}]
  %s3 = inlined_call_operand.vmem [shape: f32[2,36], index: 3, kind: input, shape index: {}]
  %s4 = inlined_call_operand.vmem [shape: f32[8,18], index: 4, kind: input, shape index: {}]
  %s5 = inlined_call_operand.vmem [shape: f32[2,8,1024], index: 5, kind: output, shape index: {}]
  %s6 = sld [smem:[#allocation0]]
  $region61: #{up_noskip_forward.1} parent=0
    _
  %s8 = ssub.s32 1, %s6
  %s9 = scalar_select 0, %s8, %s6
  $region1: #{up_noskip_forward.1} parent=0
    #allocation6 [shape = 'u8[1310720]{0}', space=vmem, size = 0x140000, scoped, tag = 'input window, operand 1, single buffered']
    #allocation7 [shape = 's32[2]{0}', space=sflag, size = 0x8, scoped, tag = 'scoped memory for up_noskip_forward.1']
    #allocation8 [shape = 'u8[16384]{0}', space=vmem, size = 0x4000, scoped, tag = 'input window, operand 2, single buffered']
    #allocation9 [shape = 's32[1]{0}', space=sflag, size = 0x4, scoped, tag = 'scoped memory for up_noskip_forward.1']
    %10 = vsyncpa [#allocation7], 0
    %11 = vsyncpa [#allocation9], 0
    loop: start=0, step=1, limit=4
    $region2: #{up_noskip_forward.1} parent=1 // loop_pre_header
      _
    $region3: #{up_noskip_forward.1} parent=1 // loop_header
      %s13 = sphi 0, %s17
      %p14 = scmp.ge.s32.totalorder %s13, 4
      %s23 = sphi 0, %s25
      %s26 = sphi 0, %s23
      %s27 = sphi 0, %s26
      %s43 = sphi 0, %s27
      %s47 = sphi 0, %s47
      %s49 = sphi 0, %s47
      %s50 = sphi 0, %s49
      %s64 = sphi 0, %s50
      %s68 = sphi 0, %s68
      %s70 = sphi 0, %s68
      %s71 = sphi 0, %s70
      %s85 = sphi 0, %s71
      %s89 = sphi 0, %s89
      %s91 = sphi 0, %s89
      %s92 = sphi 0, %s91
      %s106 = sphi 0, %s92
      %s110 = sphi 0, %s110
      %s112 = sphi 0, %s110
      %s113 = sphi 0, %s112
      %s127 = sphi 0, %s113
      %s133 = sphi 0, %s135
      %s136 = sphi 0, %s133
      %s137 = sphi 0, %s136
      %s153 = sphi 0, %s137
    $region4: #{up_noskip_forward.1} parent=1 // loop_header_branch
      %16 = sbr.rel (%p14) target = $region8
    $region5: #{up_noskip_forward.1} parent=1 // loop_body
      %s18 = ssub.s32 %s13, 1
      %s19 = ssub.s32 %s13, 2
      %s20 = sadd.s32 %s13, 1
      %s21 = ssub.s32 %s13, %s20
      %p22 = scmp.eq.s32.totalorder %s21, 0
      %s24 = sadd.s32 %s23, 1
      %s25 = scalar_select %p22, %s23, %s24
      %p28 = pneg %p22
      %p29 = scmp.eq.s32.totalorder %s13, 1
      %p30 = por %p28, %p29
      %p31 = scmp.ne.s32.totalorder %s23, %s26
      %p32 = scmp.eq.s32.totalorder %s13, 0
      %p33 = por %p31, %p32
      %p34 = scmp.ne.s32.totalorder %s23, %s26
      %p35 = scmp.eq.s32.totalorder %s18, 1
      %p36 = por %p34, %p35
      %p37 = scmp.ne.s32.totalorder %s26, %s27
      %p38 = scmp.eq.s32.totalorder %s18, 0
      %p39 = por %p37, %p38
      %p40 = scmp.ne.s32.totalorder %s26, %s27
      %p41 = scmp.eq.s32.totalorder %s19, 1
      %p42 = por %p40, %p41
      %p44 = scmp.ne.s32.totalorder %s27, %s43
      %p45 = scmp.eq.s32.totalorder %s19, 0
      %p46 = por %p44, %p45
      %s48 = sadd.s32 %s47, 1
      %p51 = scmp.eq.s32.totalorder %s13, 1
      %p52 = scmp.ne.s32.totalorder %s47, %s49
      %p53 = scmp.eq.s32.totalorder %s13, 0
      %p54 = por %p52, %p53
      %p55 = scmp.ne.s32.totalorder %s47, %s49
      %p56 = scmp.eq.s32.totalorder %s18, 1
      %p57 = por %p55, %p56
      %p58 = scmp.ne.s32.totalorder %s49, %s50
      %p59 = scmp.eq.s32.totalorder %s18, 0
      %p60 = por %p58, %p59
      %p61 = scmp.ne.s32.totalorder %s49, %s50
      %p62 = scmp.eq.s32.totalorder %s19, 1
      %p63 = por %p61, %p62
      %p65 = scmp.ne.s32.totalorder %s50, %s64
      %p66 = scmp.eq.s32.totalorder %s19, 0
      %p67 = por %p65, %p66
      %s69 = sadd.s32 %s68, 1
      %p72 = scmp.eq.s32.totalorder %s13, 1
      %p73 = scmp.ne.s32.totalorder %s68, %s70
      %p74 = scmp.eq.s32.totalorder %s13, 0
      %p75 = por %p73, %p74
      %p76 = scmp.ne.s32.totalorder %s68, %s70
      %p77 = scmp.eq.s32.totalorder %s18, 1
      %p78 = por %p76, %p77
      %p79 = scmp.ne.s32.totalorder %s70, %s71
      %p80 = scmp.eq.s32.totalorder %s18, 0
      %p81 = por %p79, %p80
      %p82 = scmp.ne.s32.totalorder %s70, %s71
      %p83 = scmp.eq.s32.totalorder %s19, 1
      %p84 = por %p82, %p83
      %p86 = scmp.ne.s32.totalorder %s71, %s85
      %p87 = scmp.eq.s32.totalorder %s19, 0
      %p88 = por %p86, %p87
      %s90 = sadd.s32 %s89, 1
      %p93 = scmp.eq.s32.totalorder %s13, 1
      %p94 = scmp.ne.s32.totalorder %s89, %s91
      %p95 = scmp.eq.s32.totalorder %s13, 0
      %p96 = por %p94, %p95
      %p97 = scmp.ne.s32.totalorder %s89, %s91
      %p98 = scmp.eq.s32.totalorder %s18, 1
      %p99 = por %p97, %p98
      %p100 = scmp.ne.s32.totalorder %s91, %s92
      %p101 = scmp.eq.s32.totalorder %s18, 0
      %p102 = por %p100, %p101
      %p103 = scmp.ne.s32.totalorder %s91, %s92
      %p104 = scmp.eq.s32.totalorder %s19, 1
      %p105 = por %p103, %p104
      %p107 = scmp.ne.s32.totalorder %s92, %s106
      %p108 = scmp.eq.s32.totalorder %s19, 0
      %p109 = por %p107, %p108
      %s111 = sadd.s32 %s110, 1
      %p114 = scmp.eq.s32.totalorder %s13, 1
      %p115 = scmp.ne.s32.totalorder %s110, %s112
      %p116 = scmp.eq.s32.totalorder %s13, 0
      %p117 = por %p115, %p116
      %p118 = scmp.ne.s32.totalorder %s110, %s112
      %p119 = scmp.eq.s32.totalorder %s18, 1
      %p120 = por %p118, %p119
      %p121 = scmp.ne.s32.totalorder %s112, %s113
      %p122 = scmp.eq.s32.totalorder %s18, 0
      %p123 = por %p121, %p122
      %p124 = scmp.ne.s32.totalorder %s112, %s113
      %p125 = scmp.eq.s32.totalorder %s19, 1
      %p126 = por %p124, %p125
      %p128 = scmp.ne.s32.totalorder %s113, %s127
      %p129 = scmp.eq.s32.totalorder %s19, 0
      %p130 = por %p128, %p129
      %s131 = ssub.s32 %s13, %s20
      %p132 = scmp.eq.s32.totalorder %s131, 0
      %s134 = sadd.s32 %s133, 1
      %s135 = scalar_select %p132, %s133, %s134
      %p138 = pneg %p132
      %p139 = scmp.eq.s32.totalorder %s13, 1
      %p140 = por %p138, %p139
      %p141 = scmp.ne.s32.totalorder %s133, %s136
      %p142 = scmp.eq.s32.totalorder %s13, 0
      %p143 = por %p141, %p142
      %p144 = scmp.ne.s32.totalorder %s133, %s136
      %p145 = scmp.eq.s32.totalorder %s18, 1
      %p146 = por %p144, %p145
      %p147 = scmp.ne.s32.totalorder %s136, %s137
      %p148 = scmp.eq.s32.totalorder %s18, 0
      %p149 = por %p147, %p148
      %p150 = scmp.ne.s32.totalorder %s136, %s137
      %p151 = scmp.eq.s32.totalorder %s19, 1
      %p152 = por %p150, %p151
      %p154 = scmp.ne.s32.totalorder %s137, %s153
      %p155 = scmp.eq.s32.totalorder %s19, 0
      %p156 = por %p154, %p155
      %p157 = scmp.le.s32.totalorder 1, %s13
      %p158 = scmp.lt.s32.totalorder %s13, 3
      %p159 = pnand %p157, %p158
      %p160 = pneg %p159
      // Predicated region
      $region9: #{up_noskip_forward.1} parent=5 // pred_check
        _
      $region10: #{up_noskip_forward.1} parent=5 // pred_check_branch
        %162 = sbr.rel (%p159) target = $region12
      $region11: #{up_noskip_forward.1} parent=5 // pred_region
        %s163 = ssub.s32 %s13, 1
        // Predicated region
        $region13: #{up_noskip_forward.1} parent=11 // pred_check
          %p164 = pneg %p60
        $region14: #{up_noskip_forward.1} parent=11 // pred_check_branch
          %166 = sbr.rel (%p164) target = $region16
        $region15: #{up_noskip_forward.1} parent=11 // pred_region
          %s168 = ssub.s32 40960, 40960
          %169 = vsyncadd [#allocation7], %s168
          %s170 = sshll.u32 [#allocation6], 4
          %s171 = int_to_ptr.vmem [resolvable:$true] %s170
          %176 = dma.hbm_to_vmem [thread:$0]  %s1, 40960, %s171, [#allocation7], 1280, 1280, 80
        $region16: #{up_noskip_forward.1} parent=11 // pred_fallthru
          _
        // Predicated region
        $region17: #{up_noskip_forward.1} parent=11 // pred_check
          %p177 = pneg %p81
        $region18: #{up_noskip_forward.1} parent=11 // pred_check_branch
          %179 = sbr.rel (%p177) target = $region20
        $region19: #{up_noskip_forward.1} parent=11 // pred_region
          %s181 = ssub.s32 512, 512
          %182 = vsyncadd [#allocation9], %s181
          %s184 = sshll.u32 [#allocation8], 4
          %s185 = int_to_ptr.vmem [resolvable:$true] %s184
          %187 = dma.hbm_to_vmem [thread:$0]  %s2, 512, %s185, [#allocation9]
        $region20: #{up_noskip_forward.1} parent=11 // pred_fallthru
          _
        // Predicated region
        $region21: #{up_noskip_forward.1} parent=11 // pred_check
          %p188 = pneg %p102
        $region22: #{up_noskip_forward.1} parent=11 // pred_check_branch
          %190 = sbr.rel (%p188) target = $region24
        $region23: #{up_noskip_forward.1} parent=11 // pred_region
          _
        $region24: #{up_noskip_forward.1} parent=11 // pred_fallthru
          _
        // Predicated region
        $region25: #{up_noskip_forward.1} parent=11 // pred_check
          %p191 = pneg %p123
        $region26: #{up_noskip_forward.1} parent=11 // pred_check_branch
          %193 = sbr.rel (%p191) target = $region28
        $region27: #{up_noskip_forward.1} parent=11 // pred_region
          _
        $region28: #{up_noskip_forward.1} parent=11 // pred_fallthru
          _
      $region12: #{up_noskip_forward.1} parent=5 // pred_fallthru
        _
      %p194 = scmp.lt.s32.totalorder %s13, 2
      // Predicated region
      $region29: #{up_noskip_forward.1} parent=5 // pred_check
        %p195 = pneg %p194
      $region30: #{up_noskip_forward.1} parent=5 // pred_check_branch
        %197 = sbr.rel (%p195) target = $region32
      $region31: #{up_noskip_forward.1} parent=5 // pred_region
        // Predicated region
        $region33: #{up_noskip_forward.1} parent=31 // pred_check
          %p198 = pneg %p33
        $region34: #{up_noskip_forward.1} parent=31 // pred_check_branch
          %200 = sbr.rel (%p198) target = $region36
        $region35: #{up_noskip_forward.1} parent=31 // pred_region
          %p201 = scmp.lt.s32.totalorder %s13, 1
          %s202 = scalar_select %p201, %s13, 1
          %s203 = smul.addr %s202, 2
          %s204 = smul.addr %s203, 4
          %s205 = scalar_lea.vmem %s0, %s204
        $region36: #{up_noskip_forward.1} parent=31 // pred_fallthru
          _
      $region32: #{up_noskip_forward.1} parent=5 // pred_fallthru
        _
      %p206 = scmp.le.s32.totalorder 1, %s13
      %p207 = scmp.lt.s32.totalorder %s13, 3
      %p208 = pnand %p206, %p207
      %p209 = pneg %p208
      // Predicated region
      $region37: #{up_noskip_forward.1} parent=5 // pred_check
        _
      $region38: #{up_noskip_forward.1} parent=5 // pred_check_branch
        %211 = sbr.rel (%p208) target = $region40
      $region39: #{up_noskip_forward.1} parent=5 // pred_region
        %s212 = ssub.s32 %s13, 1
        // Predicated region
        $region41: #{up_noskip_forward.1} parent=39 // pred_check
          %p213 = pneg %p60
        $region42: #{up_noskip_forward.1} parent=39 // pred_check_branch
          %215 = sbr.rel (%p213) target = $region44
        $region43: #{up_noskip_forward.1} parent=39 // pred_region
          %216 = dma.done [#allocation7], 40960
        $region44: #{up_noskip_forward.1} parent=39 // pred_fallthru
          _
        // Predicated region
        $region45: #{up_noskip_forward.1} parent=39 // pred_check
          %p217 = pneg %p81
        $region46: #{up_noskip_forward.1} parent=39 // pred_check_branch
          %219 = sbr.rel (%p217) target = $region48
        $region47: #{up_noskip_forward.1} parent=39 // pred_region
          %220 = dma.done [#allocation9], 512
        $region48: #{up_noskip_forward.1} parent=39 // pred_fallthru
          _
        %p221 = scmp.lt.s32.totalorder %s18, 1
        %s222 = scalar_select %p221, %s18, 1
        %s223 = smul.addr %s222, 2
        %s224 = smul.addr %s223, 4
        %s225 = scalar_lea.vmem %s0, %s224
        %p226 = pneg %p39
        %p227 = pneg %p36
        %p228 = pneg %p60
        %p229 = pneg %p57
        %p230 = pneg %p81
        %p231 = pneg %p78
        %p232 = pneg %p102
        %p233 = pneg %p99
        %p234 = pneg %p123
        %p235 = pneg %p120
        %p236 = pneg %p149
        %p237 = pneg %p146
        %p238 = scmp.lt.s32.totalorder %s18, 1
        %s239 = scalar_select %p238, %s18, 1
        %s240 = smul.addr %s239, 8
        %s241 = smul.addr %s240, 8
        %s242 = scalar_lea.vmem %s5, %s241
        %p243 = scmp.lt.s32.totalorder %s18, 1
        %s244 = scalar_select %p243, %s18, 1
        %s245 = smul.addr %s244, 2
        %s246 = smul.addr %s245, 4
        %s247 = scalar_lea.vmem %s0, %s246
        %p248 = scmp.lt.s32.totalorder %s18, 1
        %s249 = scalar_select %p248, %s18, 1
        %s250 = smul.addr %s249, 8
        %s251 = smul.addr %s250, 8
        %s252 = scalar_lea.vmem %s5, %s251
        %v253 = vld [vmem:[%s247] sm:$0xff]
        %v254 = vld [vmem:[#allocation6] sm:$0xff]
        %v255 = vld [vmem:[#allocation6 + $0x8] sm:$0xff]
        %v256 = vld [vmem:[#allocation6 + $0x10] sm:$0xff]
        %v257 = vld [vmem:[#allocation6 + $0x18] sm:$0xff]
        %v258 = vld [vmem:[#allocation6 + $0x20] sm:$0xff]
        %v259 = vld [vmem:[#allocation6 + $0x28] sm:$0xff]
        %v260 = vld [vmem:[#allocation6 + $0x30] sm:$0xff]
        %v261 = vld [vmem:[#allocation6 + $0x38] sm:$0xff]
        %v262 = vld [vmem:[#allocation6 + $0x40] sm:$0xff]
        %v263 = vld [vmem:[#allocation6 + $0x48] sm:$0xff]
        %v264 = vld [vmem:[#allocation6 + $0x50] sm:$0xff]
        %v265 = vld [vmem:[#allocation6 + $0x58] sm:$0xff]
        %v266 = vld [vmem:[#allocation6 + $0x60] sm:$0xff]
        %v267 = vld [vmem:[#allocation6 + $0x68] sm:$0xff]
        %v268 = vld [vmem:[#allocation6 + $0x70] sm:$0xff]
        %v269 = vld [vmem:[#allocation6 + $0x78] sm:$0xff]
        %v270 = vld [vmem:[#allocation6 + $0x80] sm:$0xff]
        %v271 = vld [vmem:[#allocation6 + $0x88] sm:$0xff]
        %v272 = vld [vmem:[#allocation6 + $0x90] sm:$0xff]
        %v273 = vld [vmem:[#allocation6 + $0x98] sm:$0xff]
        %v274 = vld [vmem:[#allocation6 + $0xa0] sm:$0xff]
        %v275 = vld [vmem:[#allocation6 + $0xa8] sm:$0xff]
        %v276 = vld [vmem:[#allocation6 + $0xb0] sm:$0xff]
        %v277 = vld [vmem:[#allocation6 + $0xb8] sm:$0xff]
        %v278 = vld [vmem:[#allocation6 + $0xc0] sm:$0xff]
        %v279 = vld [vmem:[#allocation6 + $0xc8] sm:$0xff]
        %v280 = vld [vmem:[#allocation6 + $0xd0] sm:$0xff]
        %v281 = vld [vmem:[#allocation6 + $0xd8] sm:$0xff]
        %v282 = vld [vmem:[#allocation6 + $0xe0] sm:$0xff]
        %v283 = vld [vmem:[#allocation6 + $0xe8] sm:$0xff]
        %v284 = vld [vmem:[#allocation6 + $0xf0] sm:$0xff]
        %v285 = vld [vmem:[#allocation6 + $0xf8] sm:$0xff]
        %v286 = vld [vmem:[#allocation6 + $0x100] sm:$0xff]
        %v287 = vld [vmem:[#allocation6 + $0x108] sm:$0xff]
        %v288 = vld [vmem:[#allocation6 + $0x110] sm:$0xff]
        %v289 = vld [vmem:[#allocation6 + $0x118] sm:$0xff]
        %v290 = vld [vmem:[#allocation6 + $0x120] sm:$0xff]
        %v291 = vld [vmem:[#allocation6 + $0x128] sm:$0xff]
        %v292 = vld [vmem:[#allocation6 + $0x130] sm:$0xff]
        %v293 = vld [vmem:[#allocation6 + $0x138] sm:$0xff]
        %v294 = vld [vmem:[#allocation6 + $0x140] sm:$0xff]
        %v295 = vld [vmem:[#allocation6 + $0x148] sm:$0xff]
        %v296 = vld [vmem:[#allocation6 + $0x150] sm:$0xff]
        %v297 = vld [vmem:[#allocation6 + $0x158] sm:$0xff]
        %v298 = vld [vmem:[#allocation6 + $0x160] sm:$0xff]
        %v299 = vld [vmem:[#allocation6 + $0x168] sm:$0xff]
        %v300 = vld [vmem:[#allocation6 + $0x170] sm:$0xff]
        %v301 = vld [vmem:[#allocation6 + $0x178] sm:$0xff]
        %v302 = vld [vmem:[#allocation6 + $0x180] sm:$0xff]
        %v303 = vld [vmem:[#allocation6 + $0x188] sm:$0xff]
        %v304 = vld [vmem:[#allocation6 + $0x190] sm:$0xff]
        %v305 = vld [vmem:[#allocation6 + $0x198] sm:$0xff]
        %v306 = vld [vmem:[#allocation6 + $0x1a0] sm:$0xff]
        %v307 = vld [vmem:[#allocation6 + $0x1a8] sm:$0xff]
        %v308 = vld [vmem:[#allocation6 + $0x1b0] sm:$0xff]
        %v309 = vld [vmem:[#allocation6 + $0x1b8] sm:$0xff]
        %v310 = vld [vmem:[#allocation6 + $0x1c0] sm:$0xff]
        %v311 = vld [vmem:[#allocation6 + $0x1c8] sm:$0xff]
        %v312 = vld [vmem:[#allocation6 + $0x1d0] sm:$0xff]
        %v313 = vld [vmem:[#allocation6 + $0x1d8] sm:$0xff]
        %v314 = vld [vmem:[#allocation6 + $0x1e0] sm:$0xff]
        %v315 = vld [vmem:[#allocation6 + $0x1e8] sm:$0xff]
        %v316 = vld [vmem:[#allocation6 + $0x1f0] sm:$0xff]
        %v317 = vld [vmem:[#allocation6 + $0x1f8] sm:$0xff]
        %v318 = vld [vmem:[#allocation6 + $0x200] sm:$0xff]
        %v319 = vld [vmem:[#allocation6 + $0x208] sm:$0xff]
        %v320 = vld [vmem:[#allocation6 + $0x210] sm:$0xff]
        %v321 = vld [vmem:[#allocation6 + $0x218] sm:$0xff]
        %v322 = vld [vmem:[#allocation6 + $0x220] sm:$0xff]
        %v323 = vld [vmem:[#allocation6 + $0x228] sm:$0xff]
        %v324 = vld [vmem:[#allocation6 + $0x230] sm:$0xff]
        %v325 = vld [vmem:[#allocation6 + $0x238] sm:$0xff]
        %v326 = vld [vmem:[#allocation6 + $0x240] sm:$0xff]
        %v327 = vld [vmem:[#allocation6 + $0x248] sm:$0xff]
        %v328 = vld [vmem:[#allocation6 + $0x250] sm:$0xff]
        %v329 = vld [vmem:[#allocation6 + $0x258] sm:$0xff]
        %v330 = vld [vmem:[#allocation6 + $0x260] sm:$0xff]
        %v331 = vld [vmem:[#allocation6 + $0x268] sm:$0xff]
        %v332 = vld [vmem:[#allocation6 + $0x270] sm:$0xff]
        %v333 = vld [vmem:[#allocation6 + $0x278] sm:$0xff]
        %v334 = vld [vmem:[#allocation6 + $0x280] sm:$0xff]
        %v335 = vld [vmem:[#allocation6 + $0x288] sm:$0xff]
        %v336 = vld [vmem:[#allocation6 + $0x290] sm:$0xff]
        %v337 = vld [vmem:[#allocation6 + $0x298] sm:$0xff]
        %v338 = vld [vmem:[#allocation6 + $0x2a0] sm:$0xff]
        %v339 = vld [vmem:[#allocation6 + $0x2a8] sm:$0xff]
        %v340 = vld [vmem:[#allocation6 + $0x2b0] sm:$0xff]
        %v341 = vld [vmem:[#allocation6 + $0x2b8] sm:$0xff]
        %v342 = vld [vmem:[#allocation6 + $0x2c0] sm:$0xff]
        %v343 = vld [vmem:[#allocation6 + $0x2c8] sm:$0xff]
        %v344 = vld [vmem:[#allocation6 + $0x2d0] sm:$0xff]
        %v345 = vld [vmem:[#allocation6 + $0x2d8] sm:$0xff]
        %v346 = vld [vmem:[#allocation6 + $0x2e0] sm:$0xff]
        %v347 = vld [vmem:[#allocation6 + $0x2e8] sm:$0xff]
        %v348 = vld [vmem:[#allocation6 + $0x2f0] sm:$0xff]
        %v349 = vld [vmem:[#allocation6 + $0x2f8] sm:$0xff]
        %v350 = vld [vmem:[#allocation6 + $0x300] sm:$0xff]
        %v351 = vld [vmem:[#allocation6 + $0x308] sm:$0xff]
        %v352 = vld [vmem:[#allocation6 + $0x310] sm:$0xff]
        %v353 = vld [vmem:[#allocation6 + $0x318] sm:$0xff]
        %v354 = vld [vmem:[#allocation6 + $0x320] sm:$0xff]
        %v355 = vld [vmem:[#allocation6 + $0x328] sm:$0xff]
        %v356 = vld [vmem:[#allocation6 + $0x330] sm:$0xff]
        %v357 = vld [vmem:[#allocation6 + $0x338] sm:$0xff]
        %v358 = vld [vmem:[#allocation6 + $0x340] sm:$0xff]
        %v359 = vld [vmem:[#allocation6 + $0x348] sm:$0xff]
        %v360 = vld [vmem:[#allocation6 + $0x350] sm:$0xff]
        %v361 = vld [vmem:[#allocation6 + $0x358] sm:$0xff]
        %v362 = vld [vmem:[#allocation6 + $0x360] sm:$0xff]
        %v363 = vld [vmem:[#allocation6 + $0x368] sm:$0xff]
        %v364 = vld [vmem:[#allocation6 + $0x370] sm:$0xff]
        %v365 = vld [vmem:[#allocation6 + $0x378] sm:$0xff]
        %v366 = vld [vmem:[#allocation6 + $0x380] sm:$0xff]
        %v367 = vld [vmem:[#allocation6 + $0x388] sm:$0xff]
        %v368 = vld [vmem:[#allocation6 + $0x390] sm:$0xff]
        %v369 = vld [vmem:[#allocation6 + $0x398] sm:$0xff]
        %v370 = vld [vmem:[#allocation6 + $0x3a0] sm:$0xff]
        %v371 = vld [vmem:[#allocation6 + $0x3a8] sm:$0xff]
        %v372 = vld [vmem:[#allocation6 + $0x3b0] sm:$0xff]
        %v373 = vld [vmem:[#allocation6 + $0x3b8] sm:$0xff]
        %v374 = vld [vmem:[#allocation6 + $0x3c0] sm:$0xff]
        %v375 = vld [vmem:[#allocation6 + $0x3c8] sm:$0xff]
        %v376 = vld [vmem:[#allocation6 + $0x3d0] sm:$0xff]
        %v377 = vld [vmem:[#allocation6 + $0x3d8] sm:$0xff]
        %v378 = vld [vmem:[#allocation6 + $0x3e0] sm:$0xff]
        %v379 = vld [vmem:[#allocation6 + $0x3e8] sm:$0xff]
        %v380 = vld [vmem:[#allocation6 + $0x3f0] sm:$0xff]
        %v381 = vld [vmem:[#allocation6 + $0x3f8] sm:$0xff]
        %v382 = vld [vmem:[#allocation6 + $0x400] sm:$0xff]
        %v383 = vld [vmem:[#allocation6 + $0x408] sm:$0xff]
        %v384 = vld [vmem:[#allocation6 + $0x410] sm:$0xff]
        %v385 = vld [vmem:[#allocation6 + $0x418] sm:$0xff]
        %v386 = vld [vmem:[#allocation6 + $0x420] sm:$0xff]
        %v387 = vld [vmem:[#allocation6 + $0x428] sm:$0xff]
        %v388 = vld [vmem:[#allocation6 + $0x430] sm:$0xff]
        %v389 = vld [vmem:[#allocation6 + $0x438] sm:$0xff]
        %v390 = vld [vmem:[#allocation6 + $0x440] sm:$0xff]
        %v391 = vld [vmem:[#allocation6 + $0x448] sm:$0xff]
        %v392 = vld [vmem:[#allocation6 + $0x450] sm:$0xff]
        %v393 = vld [vmem:[#allocation6 + $0x458] sm:$0xff]
        %v394 = vld [vmem:[#allocation6 + $0x460] sm:$0xff]
        %v395 = vld [vmem:[#allocation6 + $0x468] sm:$0xff]
        %v396 = vld [vmem:[#allocation6 + $0x470] sm:$0xff]
        %v397 = vld [vmem:[#allocation6 + $0x478] sm:$0xff]
        %v398 = vld [vmem:[#allocation6 + $0x480] sm:$0xff]
        %v399 = vld [vmem:[#allocation6 + $0x488] sm:$0xff]
        %v400 = vld [vmem:[#allocation6 + $0x490] sm:$0xff]
        %v401 = vld [vmem:[#allocation6 + $0x498] sm:$0xff]
        %v402 = vld [vmem:[#allocation6 + $0x4a0] sm:$0xff]
        %v403 = vld [vmem:[#allocation6 + $0x4a8] sm:$0xff]
        %v404 = vld [vmem:[#allocation6 + $0x4b0] sm:$0xff]
        %v405 = vld [vmem:[#allocation6 + $0x4b8] sm:$0xff]
        %v406 = vld [vmem:[#allocation6 + $0x4c0] sm:$0xff]
        %v407 = vld [vmem:[#allocation6 + $0x4c8] sm:$0xff]
        %v408 = vld [vmem:[#allocation6 + $0x4d0] sm:$0xff]
        %v409 = vld [vmem:[#allocation6 + $0x4d8] sm:$0xff]
        %v410 = vld [vmem:[#allocation6 + $0x4e0] sm:$0xff]
        %v411 = vld [vmem:[#allocation6 + $0x4e8] sm:$0xff]
        %v412 = vld [vmem:[#allocation6 + $0x4f0] sm:$0xff]
        %v413 = vld [vmem:[#allocation6 + $0x4f8] sm:$0xff]
        %v414 = vld [vmem:[#allocation6 + $0x500] sm:$0xff]
        %v415 = vld [vmem:[#allocation6 + $0x508] sm:$0xff]
        %v416 = vld [vmem:[#allocation6 + $0x510] sm:$0xff]
        %v417 = vld [vmem:[#allocation6 + $0x518] sm:$0xff]
        %v418 = vld [vmem:[#allocation6 + $0x520] sm:$0xff]
        %v419 = vld [vmem:[#allocation6 + $0x528] sm:$0xff]
        %v420 = vld [vmem:[#allocation6 + $0x530] sm:$0xff]
        %v421 = vld [vmem:[#allocation6 + $0x538] sm:$0xff]
        %v422 = vld [vmem:[#allocation6 + $0x540] sm:$0xff]
        %v423 = vld [vmem:[#allocation6 + $0x548] sm:$0xff]
        %v424 = vld [vmem:[#allocation6 + $0x550] sm:$0xff]
        %v425 = vld [vmem:[#allocation6 + $0x558] sm:$0xff]
        %v426 = vld [vmem:[#allocation6 + $0x560] sm:$0xff]
        %v427 = vld [vmem:[#allocation6 + $0x568] sm:$0xff]
        %v428 = vld [vmem:[#allocation6 + $0x570] sm:$0xff]
        %v429 = vld [vmem:[#allocation6 + $0x578] sm:$0xff]
        %v430 = vld [vmem:[#allocation6 + $0x580] sm:$0xff]
        %v431 = vld [vmem:[#allocation6 + $0x588] sm:$0xff]
        %v432 = vld [vmem:[#allocation6 + $0x590] sm:$0xff]
        %v433 = vld [vmem:[#allocation6 + $0x598] sm:$0xff]
        %v434 = vld [vmem:[#allocation6 + $0x5a0] sm:$0xff]
        %v435 = vld [vmem:[#allocation6 + $0x5a8] sm:$0xff]
        %v436 = vld [vmem:[#allocation6 + $0x5b0] sm:$0xff]
        %v437 = vld [vmem:[#allocation6 + $0x5b8] sm:$0xff]
        %v438 = vld [vmem:[#allocation6 + $0x5c0] sm:$0xff]
        %v439 = vld [vmem:[#allocation6 + $0x5c8] sm:$0xff]
        %v440 = vld [vmem:[#allocation6 + $0x5d0] sm:$0xff]
        %v441 = vld [vmem:[#allocation6 + $0x5d8] sm:$0xff]
        %v442 = vld [vmem:[#allocation6 + $0x5e0] sm:$0xff]
        %v443 = vld [vmem:[#allocation6 + $0x5e8] sm:$0xff]
        %v444 = vld [vmem:[#allocation6 + $0x5f0] sm:$0xff]
        %v445 = vld [vmem:[#allocation6 + $0x5f8] sm:$0xff]
        %v446 = vld [vmem:[#allocation6 + $0x600] sm:$0xff]
        %v447 = vld [vmem:[#allocation6 + $0x608] sm:$0xff]
        %v448 = vld [vmem:[#allocation6 + $0x610] sm:$0xff]
        %v449 = vld [vmem:[#allocation6 + $0x618] sm:$0xff]
        %v450 = vld [vmem:[#allocation6 + $0x620] sm:$0xff]
        %v451 = vld [vmem:[#allocation6 + $0x628] sm:$0xff]
        %v452 = vld [vmem:[#allocation6 + $0x630] sm:$0xff]
        %v453 = vld [vmem:[#allocation6 + $0x638] sm:$0xff]
        %v454 = vld [vmem:[#allocation6 + $0x640] sm:$0xff]
        %v455 = vld [vmem:[#allocation6 + $0x648] sm:$0xff]
        %v456 = vld [vmem:[#allocation6 + $0x650] sm:$0xff]
        %v457 = vld [vmem:[#allocation6 + $0x658] sm:$0xff]
        %v458 = vld [vmem:[#allocation6 + $0x660] sm:$0xff]
        %v459 = vld [vmem:[#allocation6 + $0x668] sm:$0xff]
        %v460 = vld [vmem:[#allocation6 + $0x670] sm:$0xff]
        %v461 = vld [vmem:[#allocation6 + $0x678] sm:$0xff]
        %v462 = vld [vmem:[#allocation6 + $0x680] sm:$0xff]
        %v463 = vld [vmem:[#allocation6 + $0x688] sm:$0xff]
        %v464 = vld [vmem:[#allocation6 + $0x690] sm:$0xff]
        %v465 = vld [vmem:[#allocation6 + $0x698] sm:$0xff]
        %v466 = vld [vmem:[#allocation6 + $0x6a0] sm:$0xff]
        %v467 = vld [vmem:[#allocation6 + $0x6a8] sm:$0xff]
        %v468 = vld [vmem:[#allocation6 + $0x6b0] sm:$0xff]
        %v469 = vld [vmem:[#allocation6 + $0x6b8] sm:$0xff]
        %v470 = vld [vmem:[#allocation6 + $0x6c0] sm:$0xff]
        %v471 = vld [vmem:[#allocation6 + $0x6c8] sm:$0xff]
        %v472 = vld [vmem:[#allocation6 + $0x6d0] sm:$0xff]
        %v473 = vld [vmem:[#allocation6 + $0x6d8] sm:$0xff]
        %v474 = vld [vmem:[#allocation6 + $0x6e0] sm:$0xff]
        %v475 = vld [vmem:[#allocation6 + $0x6e8] sm:$0xff]
        %v476 = vld [vmem:[#allocation6 + $0x6f0] sm:$0xff]
        %v477 = vld [vmem:[#allocation6 + $0x6f8] sm:$0xff]
        %v478 = vld [vmem:[#allocation6 + $0x700] sm:$0xff]
        %v479 = vld [vmem:[#allocation6 + $0x708] sm:$0xff]
        %v480 = vld [vmem:[#allocation6 + $0x710] sm:$0xff]
        %v481 = vld [vmem:[#allocation6 + $0x718] sm:$0xff]
        %v482 = vld [vmem:[#allocation6 + $0x720] sm:$0xff]
        %v483 = vld [vmem:[#allocation6 + $0x728] sm:$0xff]
        %v484 = vld [vmem:[#allocation6 + $0x730] sm:$0xff]
        %v485 = vld [vmem:[#allocation6 + $0x738] sm:$0xff]
        %v486 = vld [vmem:[#allocation6 + $0x740] sm:$0xff]
        %v487 = vld [vmem:[#allocation6 + $0x748] sm:$0xff]
        %v488 = vld [vmem:[#allocation6 + $0x750] sm:$0xff]
        %v489 = vld [vmem:[#allocation6 + $0x758] sm:$0xff]
        %v490 = vld [vmem:[#allocation6 + $0x760] sm:$0xff]
        %v491 = vld [vmem:[#allocation6 + $0x768] sm:$0xff]
        %v492 = vld [vmem:[#allocation6 + $0x770] sm:$0xff]
        %v493 = vld [vmem:[#allocation6 + $0x778] sm:$0xff]
        %v494 = vld [vmem:[#allocation6 + $0x780] sm:$0xff]
        %v495 = vld [vmem:[#allocation6 + $0x788] sm:$0xff]
        %v496 = vld [vmem:[#allocation6 + $0x790] sm:$0xff]
        %v497 = vld [vmem:[#allocation6 + $0x798] sm:$0xff]
        %v498 = vld [vmem:[#allocation6 + $0x7a0] sm:$0xff]
        %v499 = vld [vmem:[#allocation6 + $0x7a8] sm:$0xff]
        %v500 = vld [vmem:[#allocation6 + $0x7b0] sm:$0xff]
        %v501 = vld [vmem:[#allocation6 + $0x7b8] sm:$0xff]
        %v502 = vld [vmem:[#allocation6 + $0x7c0] sm:$0xff]
        %v503 = vld [vmem:[#allocation6 + $0x7c8] sm:$0xff]
        %v504 = vld [vmem:[#allocation6 + $0x7d0] sm:$0xff]
        %v505 = vld [vmem:[#allocation6 + $0x7d8] sm:$0xff]
        %v506 = vld [vmem:[#allocation6 + $0x7e0] sm:$0xff]
        %v507 = vld [vmem:[#allocation6 + $0x7e8] sm:$0xff]
        %v508 = vld [vmem:[#allocation6 + $0x7f0] sm:$0xff]
        %v509 = vld [vmem:[#allocation6 + $0x7f8] sm:$0xff]
        %v510 = vld [vmem:[#allocation6 + $0x800] sm:$0xff]
        %v511 = vld [vmem:[#allocation6 + $0x808] sm:$0xff]
        %v512 = vld [vmem:[#allocation6 + $0x810] sm:$0xff]
        %v513 = vld [vmem:[#allocation6 + $0x818] sm:$0xff]
        %v514 = vld [vmem:[#allocation6 + $0x820] sm:$0xff]
        %v515 = vld [vmem:[#allocation6 + $0x828] sm:$0xff]
        %v516 = vld [vmem:[#allocation6 + $0x830] sm:$0xff]
        %v517 = vld [vmem:[#allocation6 + $0x838] sm:$0xff]
        %v518 = vld [vmem:[#allocation6 + $0x840] sm:$0xff]
        %v519 = vld [vmem:[#allocation6 + $0x848] sm:$0xff]
        %v520 = vld [vmem:[#allocation6 + $0x850] sm:$0xff]
        %v521 = vld [vmem:[#allocation6 + $0x858] sm:$0xff]
        %v522 = vld [vmem:[#allocation6 + $0x860] sm:$0xff]
        %v523 = vld [vmem:[#allocation6 + $0x868] sm:$0xff]
        %v524 = vld [vmem:[#allocation6 + $0x870] sm:$0xff]
        %v525 = vld [vmem:[#allocation6 + $0x878] sm:$0xff]
        %v526 = vld [vmem:[#allocation6 + $0x880] sm:$0xff]
        %v527 = vld [vmem:[#allocation6 + $0x888] sm:$0xff]
        %v528 = vld [vmem:[#allocation6 + $0x890] sm:$0xff]
        %v529 = vld [vmem:[#allocation6 + $0x898] sm:$0xff]
        %v530 = vld [vmem:[#allocation6 + $0x8a0] sm:$0xff]
        %v531 = vld [vmem:[#allocation6 + $0x8a8] sm:$0xff]
        %v532 = vld [vmem:[#allocation6 + $0x8b0] sm:$0xff]
        %v533 = vld [vmem:[#allocation6 + $0x8b8] sm:$0xff]
        %v534 = vld [vmem:[#allocation6 + $0x8c0] sm:$0xff]
        %v535 = vld [vmem:[#allocation6 + $0x8c8] sm:$0xff]
        %v536 = vld [vmem:[#allocation6 + $0x8d0] sm:$0xff]
        %v537 = vld [vmem:[#allocation6 + $0x8d8] sm:$0xff]
        %v538 = vld [vmem:[#allocation6 + $0x8e0] sm:$0xff]
        %v539 = vld [vmem:[#allocation6 + $0x8e8] sm:$0xff]
        %v540 = vld [vmem:[#allocation6 + $0x8f0] sm:$0xff]
        %v541 = vld [vmem:[#allocation6 + $0x8f8] sm:$0xff]
        %v542 = vld [vmem:[#allocation6 + $0x900] sm:$0xff]
        %v543 = vld [vmem:[#allocation6 + $0x908] sm:$0xff]
        %v544 = vld [vmem:[#allocation6 + $0x910] sm:$0xff]
        %v545 = vld [vmem:[#allocation6 + $0x918] sm:$0xff]
        %v546 = vld [vmem:[#allocation6 + $0x920] sm:$0xff]
        %v547 = vld [vmem:[#allocation6 + $0x928] sm:$0xff]
        %v548 = vld [vmem:[#allocation6 + $0x930] sm:$0xff]
        %v549 = vld [vmem:[#allocation6 + $0x938] sm:$0xff]
        %v550 = vld [vmem:[#allocation6 + $0x940] sm:$0xff]
        %v551 = vld [vmem:[#allocation6 + $0x948] sm:$0xff]
        %v552 = vld [vmem:[#allocation6 + $0x950] sm:$0xff]
        %v553 = vld [vmem:[#allocation6 + $0x958] sm:$0xff]
        %v554 = vld [vmem:[#allocation6 + $0x960] sm:$0xff]
        %v555 = vld [vmem:[#allocation6 + $0x968] sm:$0xff]
        %v556 = vld [vmem:[#allocation6 + $0x970] sm:$0xff]
        %v557 = vld [vmem:[#allocation6 + $0x978] sm:$0xff]
        %v558 = vld [vmem:[#allocation6 + $0x980] sm:$0xff]
        %v559 = vld [vmem:[#allocation6 + $0x988] sm:$0xff]
        %v560 = vld [vmem:[#allocation6 + $0x990] sm:$0xff]
        %v561 = vld [vmem:[#allocation6 + $0x998] sm:$0xff]
        %v562 = vld [vmem:[#allocation6 + $0x9a0] sm:$0xff]
        %v563 = vld [vmem:[#allocation6 + $0x9a8] sm:$0xff]
        %v564 = vld [vmem:[#allocation6 + $0x9b0] sm:$0xff]
        %v565 = vld [vmem:[#allocation6 + $0x9b8] sm:$0xff]
        %v566 = vld [vmem:[#allocation6 + $0x9c0] sm:$0xff]
        %v567 = vld [vmem:[#allocation6 + $0x9c8] sm:$0xff]
        %v568 = vld [vmem:[#allocation6 + $0x9d0] sm:$0xff]
        %v569 = vld [vmem:[#allocation6 + $0x9d8] sm:$0xff]
        %v570 = vld [vmem:[#allocation6 + $0x9e0] sm:$0xff]
        %v571 = vld [vmem:[#allocation6 + $0x9e8] sm:$0xff]
        %v572 = vld [vmem:[#allocation6 + $0x9f0] sm:$0xff]
        %v573 = vld [vmem:[#allocation6 + $0x9f8] sm:$0xff]
        %v575 = vcombine.high %v253, %v253
        %577 = vmatprep.subr.mxu0 %v255
        %578 = vmatpush1.msra.mxu0 %v254
        %579 = vmatprep.subr.mxu0 %v265
        %580 = vmatpush1.msra.mxu0 %v264
        %581 = vmatprep.subr.mxu0 %v275
        %582 = vmatpush1.msra.mxu0 %v274
        %583 = vmatprep.subr.mxu0 %v285
        %584 = vmatpush1.msra.mxu0 %v284
        %585 = vmatprep.subr.mxu0 %v295
        %586 = vmatpush1.msra.mxu0 %v294
        %587 = vmatprep.subr.mxu0 %v305
        %588 = vmatpush1.msra.mxu0 %v304
        %589 = vmatprep.subr.mxu0 %v315
        %590 = vmatpush1.msra.mxu0 %v314
        %591 = vmatprep.subr.mxu0 %v325
        %592 = vmatpush1.msra.mxu0 %v324
        %593 = vmatprep.subr.mxu0 %v335
        %594 = vmatpush1.msra.mxu0 %v334
        %595 = vmatprep.subr.mxu0 %v345
        %596 = vmatpush1.msra.mxu0 %v344
        %597 = vmatprep.subr.mxu0 %v355
        %598 = vmatpush1.msra.mxu0 %v354
        %599 = vmatprep.subr.mxu0 %v365
        %600 = vmatpush1.msra.mxu0 %v364
        %601 = vmatprep.subr.mxu0 %v375
        %602 = vmatpush1.msra.mxu0 %v374
        %603 = vmatprep.subr.mxu0 %v385
        %604 = vmatpush1.msra.mxu0 %v384
        %605 = vmatprep.subr.mxu0 %v395
        %606 = vmatpush1.msra.mxu0 %v394
        %607 = vmatprep.subr.mxu0 %v405
        %608 = vmatpush1.msra.mxu0 %v404
        %609 = vmatprep.subr.mxu0 %v415
        %610 = vmatpush1.msra.mxu0 %v414
        %611 = vmatprep.subr.mxu0 %v425
        %612 = vmatpush1.msra.mxu0 %v424
        %613 = vmatprep.subr.mxu0 %v435
        %614 = vmatpush1.msra.mxu0 %v434
        %615 = vmatprep.subr.mxu0 %v445
        %616 = vmatpush1.msra.mxu0 %v444
        %617 = vmatprep.subr.mxu0 %v455
        %618 = vmatpush1.msra.mxu0 %v454
        %619 = vmatprep.subr.mxu0 %v465
        %620 = vmatpush1.msra.mxu0 %v464
        %621 = vmatprep.subr.mxu0 %v475
        %622 = vmatpush1.msra.mxu0 %v474
        %623 = vmatprep.subr.mxu0 %v485
        %624 = vmatpush1.msra.mxu0 %v484
        %625 = vmatprep.subr.mxu0 %v495
        %626 = vmatpush1.msra.mxu0 %v494
        %627 = vmatprep.subr.mxu0 %v505
        %628 = vmatpush1.msra.mxu0 %v504
        %629 = vmatprep.subr.mxu0 %v515
        %630 = vmatpush1.msra.mxu0 %v514
        %631 = vmatprep.subr.mxu0 %v525
        %632 = vmatpush1.msra.mxu0 %v524
        %633 = vmatprep.subr.mxu0 %v535
        %634 = vmatpush1.msra.mxu0 %v534
        %635 = vmatprep.subr.mxu0 %v545
        %636 = vmatpush1.msra.mxu0 %v544
        %637 = vmatprep.subr.mxu0 %v555
        %638 = vmatpush1.msra.mxu0 %v554
        %639 = vmatprep.subr.mxu0 %v565
        %640 = vmatpush1.msra.mxu0 %v564
        %641 = vmatprep.mubr.f32.mxu0 %v575
        %642 = vmatmul.mubr.f32.gmra.mrb[0].mxu0 %v253
        %v643 = vpop.f32.mrb[0].mxu0
        %v644 = vadd.f32 0.0, %v643
        %v645 = vpop.f32.mrb[0].mxu0
        %v646 = vadd.f32 0.0, %v645
        %647 = vdwg.mxu0
        %648 = vmatprep.subr.mxu0 %v257
        %649 = vmatpush1.msra.mxu0 %v256
        %650 = vmatprep.subr.mxu0 %v267
        %651 = vmatpush1.msra.mxu0 %v266
        %652 = vmatprep.subr.mxu0 %v277
        %653 = vmatpush1.msra.mxu0 %v276
        %654 = vmatprep.subr.mxu0 %v287
        %655 = vmatpush1.msra.mxu0 %v286
        %656 = vmatprep.subr.mxu0 %v297
        %657 = vmatpush1.msra.mxu0 %v296
        %658 = vmatprep.subr.mxu0 %v307
        %659 = vmatpush1.msra.mxu0 %v306
        %660 = vmatprep.subr.mxu0 %v317
        %661 = vmatpush1.msra.mxu0 %v316
        %662 = vmatprep.subr.mxu0 %v327
        %663 = vmatpush1.msra.mxu0 %v326
        %664 = vmatprep.subr.mxu0 %v337
        %665 = vmatpush1.msra.mxu0 %v336
        %666 = vmatprep.subr.mxu0 %v347
        %667 = vmatpush1.msra.mxu0 %v346
        %668 = vmatprep.subr.mxu0 %v357
        %669 = vmatpush1.msra.mxu0 %v356
        %670 = vmatprep.subr.mxu0 %v367
        %671 = vmatpush1.msra.mxu0 %v366
        %672 = vmatprep.subr.mxu0 %v377
        %673 = vmatpush1.msra.mxu0 %v376
        %674 = vmatprep.subr.mxu0 %v387
        %675 = vmatpush1.msra.mxu0 %v386
        %676 = vmatprep.subr.mxu0 %v397
        %677 = vmatpush1.msra.mxu0 %v396
        %678 = vmatprep.subr.mxu0 %v407
        %679 = vmatpush1.msra.mxu0 %v406
        %680 = vmatprep.subr.mxu0 %v417
        %681 = vmatpush1.msra.mxu0 %v416
        %682 = vmatprep.subr.mxu0 %v427
        %683 = vmatpush1.msra.mxu0 %v426
        %684 = vmatprep.subr.mxu0 %v437
        %685 = vmatpush1.msra.mxu0 %v436
        %686 = vmatprep.subr.mxu0 %v447
        %687 = vmatpush1.msra.mxu0 %v446
        %688 = vmatprep.subr.mxu0 %v457
        %689 = vmatpush1.msra.mxu0 %v456
        %690 = vmatprep.subr.mxu0 %v467
        %691 = vmatpush1.msra.mxu0 %v466
        %692 = vmatprep.subr.mxu0 %v477
        %693 = vmatpush1.msra.mxu0 %v476
        %694 = vmatprep.subr.mxu0 %v487
        %695 = vmatpush1.msra.mxu0 %v486
        %696 = vmatprep.subr.mxu0 %v497
        %697 = vmatpush1.msra.mxu0 %v496
        %698 = vmatprep.subr.mxu0 %v507
        %699 = vmatpush1.msra.mxu0 %v506
        %700 = vmatprep.subr.mxu0 %v517
        %701 = vmatpush1.msra.mxu0 %v516
        %702 = vmatprep.subr.mxu0 %v527
        %703 = vmatpush1.msra.mxu0 %v526
        %704 = vmatprep.subr.mxu0 %v537
        %705 = vmatpush1.msra.mxu0 %v536
        %706 = vmatprep.subr.mxu0 %v547
        %707 = vmatpush1.msra.mxu0 %v546
        %708 = vmatprep.subr.mxu0 %v557
        %709 = vmatpush1.msra.mxu0 %v556
        %710 = vmatprep.subr.mxu0 %v567
        %711 = vmatpush1.msra.mxu0 %v566
        %712 = vmatprep.mubr.f32.mxu0 %v575
        %713 = vmatmul.mubr.f32.gmra.mrb[0].mxu0 %v253
        %v714 = vpop.f32.mrb[0].mxu0
        %v715 = vadd.f32 0.0, %v714
        %v716 = vpop.f32.mrb[0].mxu0
        %v717 = vadd.f32 0.0, %v716
        %718 = vdwg.mxu0
        %719 = vmatprep.subr.mxu0 %v259
        %720 = vmatpush1.msra.mxu0 %v258
        %721 = vmatprep.subr.mxu0 %v269
        %722 = vmatpush1.msra.mxu0 %v268
        %723 = vmatprep.subr.mxu0 %v279
        %724 = vmatpush1.msra.mxu0 %v278
        %725 = vmatprep.subr.mxu0 %v289
        %726 = vmatpush1.msra.mxu0 %v288
        %727 = vmatprep.subr.mxu0 %v299
        %728 = vmatpush1.msra.mxu0 %v298
        %729 = vmatprep.subr.mxu0 %v309
        %730 = vmatpush1.msra.mxu0 %v308
        %731 = vmatprep.subr.mxu0 %v319
        %732 = vmatpush1.msra.mxu0 %v318
        %733 = vmatprep.subr.mxu0 %v329
        %734 = vmatpush1.msra.mxu0 %v328
        %735 = vmatprep.subr.mxu0 %v339
        %736 = vmatpush1.msra.mxu0 %v338
        %737 = vmatprep.subr.mxu0 %v349
        %738 = vmatpush1.msra.mxu0 %v348
        %739 = vmatprep.subr.mxu0 %v359
        %740 = vmatpush1.msra.mxu0 %v358
        %741 = vmatprep.subr.mxu0 %v369
        %742 = vmatpush1.msra.mxu0 %v368
        %743 = vmatprep.subr.mxu0 %v379
        %744 = vmatpush1.msra.mxu0 %v378
        %745 = vmatprep.subr.mxu0 %v389
        %746 = vmatpush1.msra.mxu0 %v388
        %747 = vmatprep.subr.mxu0 %v399
        %748 = vmatpush1.msra.mxu0 %v398
        %749 = vmatprep.subr.mxu0 %v409
        %750 = vmatpush1.msra.mxu0 %v408
        %751 = vmatprep.subr.mxu0 %v419
        %752 = vmatpush1.msra.mxu0 %v418
        %753 = vmatprep.subr.mxu0 %v429
        %754 = vmatpush1.msra.mxu0 %v428
        %755 = vmatprep.subr.mxu0 %v439
        %756 = vmatpush1.msra.mxu0 %v438
        %757 = vmatprep.subr.mxu0 %v449
        %758 = vmatpush1.msra.mxu0 %v448
        %759 = vmatprep.subr.mxu0 %v459
        %760 = vmatpush1.msra.mxu0 %v458
        %761 = vmatprep.subr.mxu0 %v469
        %762 = vmatpush1.msra.mxu0 %v468
        %763 = vmatprep.subr.mxu0 %v479
        %764 = vmatpush1.msra.mxu0 %v478
        %765 = vmatprep.subr.mxu0 %v489
        %766 = vmatpush1.msra.mxu0 %v488
        %767 = vmatprep.subr.mxu0 %v499
        %768 = vmatpush1.msra.mxu0 %v498
        %769 = vmatprep.subr.mxu0 %v509
        %770 = vmatpush1.msra.mxu0 %v508
        %771 = vmatprep.subr.mxu0 %v519
        %772 = vmatpush1.msra.mxu0 %v518
        %773 = vmatprep.subr.mxu0 %v529
        %774 = vmatpush1.msra.mxu0 %v528
        %775 = vmatprep.subr.mxu0 %v539
        %776 = vmatpush1.msra.mxu0 %v538
        %777 = vmatprep.subr.mxu0 %v549
        %778 = vmatpush1.msra.mxu0 %v548
        %779 = vmatprep.subr.mxu0 %v559
        %780 = vmatpush1.msra.mxu0 %v558
        %781 = vmatprep.subr.mxu0 %v569
        %782 = vmatpush1.msra.mxu0 %v568
        %783 = vmatprep.mubr.f32.mxu0 %v575
        %784 = vmatmul.mubr.f32.gmra.mrb[0].mxu0 %v253
        %v785 = vpop.f32.mrb[0].mxu0
        %v786 = vadd.f32 0.0, %v785
        %v787 = vpop.f32.mrb[0].mxu0
        %v788 = vadd.f32 0.0, %v787
        %789 = vdwg.mxu0
        %790 = vmatprep.subr.mxu0 %v261
        %791 = vmatpush1.msra.mxu0 %v260
        %792 = vmatprep.subr.mxu0 %v271
        %793 = vmatpush1.msra.mxu0 %v270
        %794 = vmatprep.subr.mxu0 %v281
        %795 = vmatpush1.msra.mxu0 %v280
        %796 = vmatprep.subr.mxu0 %v291
        %797 = vmatpush1.msra.mxu0 %v290
        %798 = vmatprep.subr.mxu0 %v301
        %799 = vmatpush1.msra.mxu0 %v300
        %800 = vmatprep.subr.mxu0 %v311
        %801 = vmatpush1.msra.mxu0 %v310
        %802 = vmatprep.subr.mxu0 %v321
        %803 = vmatpush1.msra.mxu0 %v320
        %804 = vmatprep.subr.mxu0 %v331
        %805 = vmatpush1.msra.mxu0 %v330
        %806 = vmatprep.subr.mxu0 %v341
        %807 = vmatpush1.msra.mxu0 %v340
        %808 = vmatprep.subr.mxu0 %v351
        %809 = vmatpush1.msra.mxu0 %v350
        %810 = vmatprep.subr.mxu0 %v361
        %811 = vmatpush1.msra.mxu0 %v360
        %812 = vmatprep.subr.mxu0 %v371
        %813 = vmatpush1.msra.mxu0 %v370
        %814 = vmatprep.subr.mxu0 %v381
        %815 = vmatpush1.msra.mxu0 %v380
        %816 = vmatprep.subr.mxu0 %v391
        %817 = vmatpush1.msra.mxu0 %v390
        %818 = vmatprep.subr.mxu0 %v401
        %819 = vmatpush1.msra.mxu0 %v400
        %820 = vmatprep.subr.mxu0 %v411
        %821 = vmatpush1.msra.mxu0 %v410
        %822 = vmatprep.subr.mxu0 %v421
        %823 = vmatpush1.msra.mxu0 %v420
        %824 = vmatprep.subr.mxu0 %v431
        %825 = vmatpush1.msra.mxu0 %v430
        %826 = vmatprep.subr.mxu0 %v441
        %827 = vmatpush1.msra.mxu0 %v440
        %828 = vmatprep.subr.mxu0 %v451
        %829 = vmatpush1.msra.mxu0 %v450
        %830 = vmatprep.subr.mxu0 %v461
        %831 = vmatpush1.msra.mxu0 %v460
        %832 = vmatprep.subr.mxu0 %v471
        %833 = vmatpush1.msra.mxu0 %v470
        %834 = vmatprep.subr.mxu0 %v481
        %835 = vmatpush1.msra.mxu0 %v480
        %836 = vmatprep.subr.mxu0 %v491
        %837 = vmatpush1.msra.mxu0 %v490
        %838 = vmatprep.subr.mxu0 %v501
        %839 = vmatpush1.msra.mxu0 %v500
        %840 = vmatprep.subr.mxu0 %v511
        %841 = vmatpush1.msra.mxu0 %v510
        %842 = vmatprep.subr.mxu0 %v521
        %843 = vmatpush1.msra.mxu0 %v520
        %844 = vmatprep.subr.mxu0 %v531
        %845 = vmatpush1.msra.mxu0 %v530
        %846 = vmatprep.subr.mxu0 %v541
        %847 = vmatpush1.msra.mxu0 %v540
        %848 = vmatprep.subr.mxu0 %v551
        %849 = vmatpush1.msra.mxu0 %v550
        %850 = vmatprep.subr.mxu0 %v561
        %851 = vmatpush1.msra.mxu0 %v560
        %852 = vmatprep.subr.mxu0 %v571
        %853 = vmatpush1.msra.mxu0 %v570
        %854 = vmatprep.mubr.f32.mxu0 %v575
        %855 = vmatmul.mubr.f32.gmra.mrb[0].mxu0 %v253
        %v856 = vpop.f32.mrb[0].mxu0
        %v857 = vadd.f32 0.0, %v856
        %v858 = vpop.f32.mrb[0].mxu0
        %v859 = vadd.f32 0.0, %v858
        %860 = vdwg.mxu0
        %861 = vmatprep.subr.mxu0 %v263
        %862 = vmatpush1.msra.mxu0 %v262
        %863 = vmatprep.subr.mxu0 %v273
        %864 = vmatpush1.msra.mxu0 %v272
        %865 = vmatprep.subr.mxu0 %v283
        %866 = vmatpush1.msra.mxu0 %v282
        %867 = vmatprep.subr.mxu0 %v293
        %868 = vmatpush1.msra.mxu0 %v292
        %869 = vmatprep.subr.mxu0 %v303
        %870 = vmatpush1.msra.mxu0 %v302
        %871 = vmatprep.subr.mxu0 %v313
        %872 = vmatpush1.msra.mxu0 %v312
        %873 = vmatprep.subr.mxu0 %v323
        %874 = vmatpush1.msra.mxu0 %v322
        %875 = vmatprep.subr.mxu0 %v333
        %876 = vmatpush1.msra.mxu0 %v332
        %877 = vmatprep.subr.mxu0 %v343
        %878 = vmatpush1.msra.mxu0 %v342
        %879 = vmatprep.subr.mxu0 %v353
        %880 = vmatpush1.msra.mxu0 %v352
        %881 = vmatprep.subr.mxu0 %v363
        %882 = vmatpush1.msra.mxu0 %v362
        %883 = vmatprep.subr.mxu0 %v373
        %884 = vmatpush1.msra.mxu0 %v372
        %885 = vmatprep.subr.mxu0 %v383
        %886 = vmatpush1.msra.mxu0 %v382
        %887 = vmatprep.subr.mxu0 %v393
        %888 = vmatpush1.msra.mxu0 %v392
        %889 = vmatprep.subr.mxu0 %v403
        %890 = vmatpush1.msra.mxu0 %v402
        %891 = vmatprep.subr.mxu0 %v413
        %892 = vmatpush1.msra.mxu0 %v412
        %893 = vmatprep.subr.mxu0 %v423
        %894 = vmatpush1.msra.mxu0 %v422
        %895 = vmatprep.subr.mxu0 %v433
        %896 = vmatpush1.msra.mxu0 %v432
        %897 = vmatprep.subr.mxu0 %v443
        %898 = vmatpush1.msra.mxu0 %v442
        %899 = vmatprep.subr.mxu0 %v453
        %900 = vmatpush1.msra.mxu0 %v452
        %901 = vmatprep.subr.mxu0 %v463
        %902 = vmatpush1.msra.mxu0 %v462
        %903 = vmatprep.subr.mxu0 %v473
        %904 = vmatpush1.msra.mxu0 %v472
        %905 = vmatprep.subr.mxu0 %v483
        %906 = vmatpush1.msra.mxu0 %v482
        %907 = vmatprep.subr.mxu0 %v493
        %908 = vmatpush1.msra.mxu0 %v492
        %909 = vmatprep.subr.mxu0 %v503
        %910 = vmatpush1.msra.mxu0 %v502
        %911 = vmatprep.subr.mxu0 %v513
        %912 = vmatpush1.msra.mxu0 %v512
        %913 = vmatprep.subr.mxu0 %v523
        %914 = vmatpush1.msra.mxu0 %v522
        %915 = vmatprep.subr.mxu0 %v533
        %916 = vmatpush1.msra.mxu0 %v532
        %917 = vmatprep.subr.mxu0 %v543
        %918 = vmatpush1.msra.mxu0 %v542
        %919 = vmatprep.subr.mxu0 %v553
        %920 = vmatpush1.msra.mxu0 %v552
        %921 = vmatprep.subr.mxu0 %v563
        %922 = vmatpush1.msra.mxu0 %v562
        %923 = vmatprep.subr.mxu0 %v573
        %924 = vmatpush1.msra.mxu0 %v572
        %925 = vmatprep.mubr.f32.mxu0 %v575
        %926 = vmatmul.mubr.f32.gmra.mrb[0].mxu0 %v253
        %v927 = vpop.f32.mrb[0].mxu0
        %v928 = vadd.f32 0.0, %v927
        %v929 = vpop.f32.mrb[0].mxu0
        %v930 = vadd.f32 0.0, %v929
        %931 = vdwg.mxu0
        %v942 = vcombine.low %v644, %v646
        %v943 = vcombine.low %v715, %v717
        %v944 = vcombine.low %v786, %v788
        %v945 = vcombine.low %v857, %v859
        %v946 = vcombine.low %v928, %v930
        %952 = vst [vmem:[#allocation2] sm:$0xff] %v942
        %953 = vst [vmem:[#allocation2 + $0x8] sm:$0xff] %v943
        %954 = vst [vmem:[#allocation2 + $0x10] sm:$0xff] %v944
        %955 = vst [vmem:[#allocation2 + $0x18] sm:$0xff] %v945
        %956 = vst [vmem:[#allocation2 + $0x20] sm:$0xff] %v946
        %v957 = vld [vmem:[#allocation2] sm:$0xff]
        %v958 = vld [vmem:[#allocation2 + $0x8] sm:$0xff]
        %v959 = vld [vmem:[#allocation2 + $0x10] sm:$0xff]
        %v960 = vld [vmem:[#allocation2 + $0x18] sm:$0xff]
        %v961 = vld [vmem:[#allocation2 + $0x20] sm:$0xf]
        %v962 = vld [vmem:[#allocation8] ss:$4 sm:$0xff]
        %v964 = vlaneseq
        %v965 = vshrl.u32 %v964, 7
        %v966 = vsub.s32 0, %v965
        %v967 = vrot.slane %v962, %v966
        %v968 = vlaneseq
        %v969 = vshrl.u32 %v968, 7
        %v970 = vsub.s32 1, %v969
        %v971 = vrot.slane %v962, %v970
        %v972 = vlaneseq
        %v973 = vshrl.u32 %v972, 7
        %v974 = vsub.s32 2, %v973
        %v975 = vrot.slane %v962, %v974
        %v976 = vlaneseq
        %v977 = vshrl.u32 %v976, 7
        %v978 = vsub.s32 3, %v977
        %v979 = vrot.slane %v962, %v978
        %v980 = vlaneseq
        %v981 = vshrl.u32 %v980, 7
        %v982 = vsub.s32 4, %v981
        %v983 = vrot.slane %v962, %v982
        %v984 = vlaneseq
        %v985 = vshrl.u32 %v984, 7
        %v986 = vsub.s32 5, %v985
        %v987 = vrot.slane %v962, %v986
        %v988 = vlaneseq
        %v989 = vshrl.u32 %v988, 7
        %v990 = vsub.s32 6, %v989
        %v991 = vrot.slane %v962, %v990
        %v992 = vlaneseq
        %v993 = vshrl.u32 %v992, 7
        %v994 = vsub.s32 7, %v993
        %v995 = vrot.slane %v962, %v994
        %v996 = vcombine.low %v967, %v971
        %v997 = vcombine.low %v975, %v979
        %v998 = vcombine.low %v983, %v987
        %v999 = vcombine.low %v991, %v995
        %1000 = vrot.lane.b32.xlu0 %v996, 95
        %v1001 = vpop.permute.xlu0 %1000
        %1002 = vrot.lane.b32.xlu0 %v997, 95
        %v1003 = vpop.permute.xlu0 %1002
        %1004 = vrot.lane.b32.xlu0 %v998, 95
        %v1005 = vpop.permute.xlu0 %1004
        %1006 = vrot.lane.b32.xlu0 %v999, 95
        %v1007 = vpop.permute.xlu0 %1006
        %v1008 = vrot.slane %v1001, 4
        %v1009 = vrot.slane %v1003, 4
        %v1010 = vrot.slane %v1005, 4
        %v1011 = vrot.slane %v1007, 4
        %vm1012 = vcmask 777216
        %v1013 = vsel %vm1012, %v1008, %v1001
        %vm1014 = vcmask 1043456
        %v1015 = vsel %vm1014, %v1008, %v1009
        %v1016 = vsel %vm1012, %v1015, %v1003
        %v1017 = vsel %vm1014, %v1009, %v1010
        %v1018 = vsel %vm1012, %v1017, %v1005
        %v1019 = vsel %vm1014, %v1010, %v1011
        %v1020 = vsel %vm1012, %v1019, %v1007
        %v1026 = vmul.f32 %v957, %v1013
        %v1027 = vmul.f32 %v958, %v1016
        %v1028 = vmul.f32 %v959, %v1018
        %v1029 = vmul.f32 %v960, %v1020
        %v1030 = vmul.f32 %v961, %v1011
        %v1036 = vcombine.high %v1026, %v1026
        %v1037 = vcombine.high %v1027, %v1027
        %v1038 = vcombine.high %v1028, %v1028
        %v1039 = vcombine.high %v1029, %v1029
        %1040 = vrot.lane.b32.xlu0 %v1026, 33
        %v1041 = vpop.permute.xlu0 %1040
        %1042 = vrot.lane.b32.xlu0 %v1036, 33
        %v1043 = vpop.permute.xlu0 %1042
        %1044 = vrot.lane.b32.xlu0 %v1027, 33
        %v1045 = vpop.permute.xlu0 %1044
        %1046 = vrot.lane.b32.xlu0 %v1037, 33
        %v1047 = vpop.permute.xlu0 %1046
        %1048 = vrot.lane.b32.xlu0 %v1028, 33
        %v1049 = vpop.permute.xlu0 %1048
        %1050 = vrot.lane.b32.xlu0 %v1038, 33
        %v1051 = vpop.permute.xlu0 %1050
        %1052 = vrot.lane.b32.xlu0 %v1029, 33
        %v1053 = vpop.permute.xlu0 %1052
        %1054 = vrot.lane.b32.xlu0 %v1039, 33
        %v1055 = vpop.permute.xlu0 %1054
        %1056 = vrot.lane.b32.xlu0 %v1030, 33
        %v1057 = vpop.permute.xlu0 %1056
        %vm1058 = vcmask 269312
        %v1059 = vsel %vm1058, %v1041, %v1043
        %v1060 = vsel %vm1058, %v1043, %v1045
        %v1061 = vsel %vm1058, %v1045, %v1047
        %v1062 = vsel %vm1058, %v1047, %v1049
        %v1063 = vsel %vm1058, %v1049, %v1051
        %v1064 = vsel %vm1058, %v1051, %v1053
        %v1065 = vsel %vm1058, %v1053, %v1055
        %v1066 = vsel %vm1058, %v1055, %v1057
        %1075 = vst [vmem:[#allocation4] sm:$0xf] %v1059
        %1076 = vst [vmem:[#allocation4 + $0x8] sm:$0xf] %v1060
        %1077 = vst [vmem:[#allocation4 + $0x10] sm:$0xf] %v1061
        %1078 = vst [vmem:[#allocation4 + $0x18] sm:$0xf] %v1062
        %1079 = vst [vmem:[#allocation4 + $0x20] sm:$0xf] %v1063
        %1080 = vst [vmem:[#allocation4 + $0x28] sm:$0xf] %v1064
        %1081 = vst [vmem:[#allocation4 + $0x30] sm:$0xf] %v1065
        %1082 = vst [vmem:[#allocation4 + $0x38] sm:$0xf] %v1066
        %v1083 = vld [vmem:[#allocation2] sm:$0xff]
        %v1084 = vld [vmem:[#allocation2 + $0x8] sm:$0xff]
        %v1085 = vld [vmem:[#allocation2 + $0x10] sm:$0xff]
        %v1086 = vld [vmem:[#allocation2 + $0x18] sm:$0xff]
        %v1087 = vld [vmem:[#allocation2 + $0x20] sm:$0xf]
        %v1093 = vcombine.low %v1083, %v1083
        %v1094 = vcombine.low %v1084, %v1084
        %v1095 = vcombine.low %v1085, %v1085
        %v1096 = vcombine.low %v1086, %v1086
        %v1097 = vcombine.low %v1087, %v1087
        %1098 = vrot.lane.b32.xlu0 %v1093, 32
        %v1099 = vpop.permute.xlu0 %1098
        %1100 = vrot.lane.b32.xlu0 %v1083, 32
        %v1101 = vpop.permute.xlu0 %1100
        %1102 = vrot.lane.b32.xlu0 %v1094, 32
        %v1103 = vpop.permute.xlu0 %1102
        %1104 = vrot.lane.b32.xlu0 %v1084, 32
        %v1105 = vpop.permute.xlu0 %1104
        %1106 = vrot.lane.b32.xlu0 %v1095, 32
        %v1107 = vpop.permute.xlu0 %1106
        %1108 = vrot.lane.b32.xlu0 %v1085, 32
        %v1109 = vpop.permute.xlu0 %1108
        %1110 = vrot.lane.b32.xlu0 %v1096, 32
        %v1111 = vpop.permute.xlu0 %1110
        %1112 = vrot.lane.b32.xlu0 %v1086, 32
        %v1113 = vpop.permute.xlu0 %1112
        %1114 = vrot.lane.b32.xlu0 %v1097, 32
        %v1115 = vpop.permute.xlu0 %1114
        %vm1116 = vcmask 261120
        %v1117 = vsel %vm1116, %v1099, %v1101
        %v1118 = vsel %vm1116, %v1101, %v1103
        %v1119 = vsel %vm1116, %v1103, %v1105
        %v1120 = vsel %vm1116, %v1105, %v1107
        %v1121 = vsel %vm1116, %v1107, %v1109
        %v1122 = vsel %vm1116, %v1109, %v1111
        %v1123 = vsel %vm1116, %v1111, %v1113
        %v1124 = vsel %vm1116, %v1113, %v1115
        %1133 = vst [vmem:[#allocation4] sm:$0xf0] %v1117
        %1134 = vst [vmem:[#allocation4 + $0x8] sm:$0xf0] %v1118
        %1135 = vst [vmem:[#allocation4 + $0x10] sm:$0xf0] %v1119
        %1136 = vst [vmem:[#allocation4 + $0x18] sm:$0xf0] %v1120
        %1137 = vst [vmem:[#allocation4 + $0x20] sm:$0xf0] %v1121
        %1138 = vst [vmem:[#allocation4 + $0x28] sm:$0xf0] %v1122
        %1139 = vst [vmem:[#allocation4 + $0x30] sm:$0xf0] %v1123
        %1140 = vst [vmem:[#allocation4 + $0x38] sm:$0xf0] %v1124
        %v1141 = vld [vmem:[#allocation2] sm:$0xff]
        %v1142 = vld [vmem:[#allocation2 + $0x8] sm:$0xff]
        %v1143 = vld [vmem:[#allocation2 + $0x10] sm:$0xff]
        %v1144 = vld [vmem:[#allocation2 + $0x18] sm:$0xff]
        %v1145 = vld [vmem:[#allocation2 + $0x20] sm:$0xf]
        %s1146 = scalar_lea.vmem [#allocation8], 2
        %v1147 = vld [vmem:[%s1146] ss:$4 sm:$0xff]
        %v1149 = vlaneseq
        %v1150 = vshrl.u32 %v1149, 7
        %v1151 = vsub.s32 0, %v1150
        %v1152 = vrot.slane %v1147, %v1151
        %v1153 = vlaneseq
        %v1154 = vshrl.u32 %v1153, 7
        %v1155 = vsub.s32 1, %v1154
        %v1156 = vrot.slane %v1147, %v1155
        %v1157 = vlaneseq
        %v1158 = vshrl.u32 %v1157, 7
        %v1159 = vsub.s32 2, %v1158
        %v1160 = vrot.slane %v1147, %v1159
        %v1161 = vlaneseq
        %v1162 = vshrl.u32 %v1161, 7
        %v1163 = vsub.s32 3, %v1162
        %v1164 = vrot.slane %v1147, %v1163
        %v1165 = vlaneseq
        %v1166 = vshrl.u32 %v1165, 7
        %v1167 = vsub.s32 4, %v1166
        %v1168 = vrot.slane %v1147, %v1167
        %v1169 = vlaneseq
        %v1170 = vshrl.u32 %v1169, 7
        %v1171 = vsub.s32 5, %v1170
        %v1172 = vrot.slane %v1147, %v1171
        %v1173 = vlaneseq
        %v1174 = vshrl.u32 %v1173, 7
        %v1175 = vsub.s32 6, %v1174
        %v1176 = vrot.slane %v1147, %v1175
        %v1177 = vlaneseq
        %v1178 = vshrl.u32 %v1177, 7
        %v1179 = vsub.s32 7, %v1178
        %v1180 = vrot.slane %v1147, %v1179
        %v1181 = vcombine.low %v1152, %v1156
        %v1182 = vcombine.low %v1160, %v1164
        %v1183 = vcombine.low %v1168, %v1172
        %v1184 = vcombine.low %v1176, %v1180
        %1185 = vrot.lane.b32.xlu0 %v1181, 97
        %v1186 = vpop.permute.xlu0 %1185
        %1187 = vrot.lane.b32.xlu0 %v1182, 97
        %v1188 = vpop.permute.xlu0 %1187
        %1189 = vrot.lane.b32.xlu0 %v1183, 97
        %v1190 = vpop.permute.xlu0 %1189
        %1191 = vrot.lane.b32.xlu0 %v1184, 97
        %v1192 = vpop.permute.xlu0 %1191
        %v1193 = vrot.slane %v1186, 4
        %v1194 = vrot.slane %v1188, 4
        %v1195 = vrot.slane %v1190, 4
        %v1196 = vrot.slane %v1192, 4
        %vm1197 = vcmask 793600
        %v1198 = vsel %vm1197, %v1193, %v1186
        %v1199 = vsel %vm1014, %v1193, %v1194
        %v1200 = vsel %vm1197, %v1199, %v1188
        %v1201 = vsel %vm1014, %v1194, %v1195
        %v1202 = vsel %vm1197, %v1201, %v1190
        %v1203 = vsel %vm1014, %v1195, %v1196
        %v1204 = vsel %vm1197, %v1203, %v1192
        %v1210 = vmul.f32 %v1141, %v1198
        %v1211 = vmul.f32 %v1142, %v1200
        %v1212 = vmul.f32 %v1143, %v1202
        %v1213 = vmul.f32 %v1144, %v1204
        %v1214 = vmul.f32 %v1145, %v1196
        %v1220 = vcombine.high %v1210, %v1210
        %v1221 = vcombine.high %v1211, %v1211
        %v1222 = vcombine.high %v1212, %v1212
        %v1223 = vcombine.high %v1213, %v1213
        %1224 = vrot.lane.b32.xlu0 %v1210, 31
        %v1225 = vpop.permute.xlu0 %1224
        %1226 = vrot.lane.b32.xlu0 %v1220, 31
        %v1227 = vpop.permute.xlu0 %1226
        %1228 = vrot.lane.b32.xlu0 %v1211, 31
        %v1229 = vpop.permute.xlu0 %1228
        %1230 = vrot.lane.b32.xlu0 %v1221, 31
        %v1231 = vpop.permute.xlu0 %1230
        %1232 = vrot.lane.b32.xlu0 %v1212, 31
        %v1233 = vpop.permute.xlu0 %1232
        %1234 = vrot.lane.b32.xlu0 %v1222, 31
        %v1235 = vpop.permute.xlu0 %1234
        %1236 = vrot.lane.b32.xlu0 %v1213, 31
        %v1237 = vpop.permute.xlu0 %1236
        %1238 = vrot.lane.b32.xlu0 %v1223, 31
        %v1239 = vpop.permute.xlu0 %1238
        %1240 = vrot.lane.b32.xlu0 %v1214, 31
        %v1241 = vpop.permute.xlu0 %1240
        %vm1242 = vcmask 252928
        %v1243 = vsel %vm1242, %v1225, %v1227
        %v1244 = vsel %vm1242, %v1227, %v1229
        %v1245 = vsel %vm1242, %v1229, %v1231
        %v1246 = vsel %vm1242, %v1231, %v1233
        %v1247 = vsel %vm1242, %v1233, %v1235
        %v1248 = vsel %vm1242, %v1235, %v1237
        %v1249 = vsel %vm1242, %v1237, %v1239
        %v1250 = vsel %vm1242, %v1239, %v1241
        %1259 = vst [vmem:[#allocation4 + $0x40] sm:$0xf] %v1243
        %1260 = vst [vmem:[#allocation4 + $0x48] sm:$0xf] %v1244
        %1261 = vst [vmem:[#allocation4 + $0x50] sm:$0xf] %v1245
        %1262 = vst [vmem:[#allocation4 + $0x58] sm:$0xf] %v1246
        %1263 = vst [vmem:[#allocation4 + $0x60] sm:$0xf] %v1247
        %1264 = vst [vmem:[#allocation4 + $0x68] sm:$0xf] %v1248
        %1265 = vst [vmem:[#allocation4 + $0x70] sm:$0xf] %v1249
        %1266 = vst [vmem:[#allocation4 + $0x78] sm:$0xf] %v1250
        %v1267 = vld [vmem:[#allocation2] sm:$0xff]
        %v1268 = vld [vmem:[#allocation2 + $0x8] sm:$0xff]
        %v1269 = vld [vmem:[#allocation2 + $0x10] sm:$0xff]
        %v1270 = vld [vmem:[#allocation2 + $0x18] sm:$0xff]
        %v1271 = vld [vmem:[#allocation2 + $0x20] sm:$0xf]
        %v1272 = vld [vmem:[#allocation8] ss:$4 sm:$0xff]
        %v1274 = vlaneseq
        %v1275 = vshrl.u32 %v1274, 7
        %v1276 = vsub.s32 0, %v1275
        %v1277 = vrot.slane %v1272, %v1276
        %v1278 = vlaneseq
        %v1279 = vshrl.u32 %v1278, 7
        %v1280 = vsub.s32 1, %v1279
        %v1281 = vrot.slane %v1272, %v1280
        %v1282 = vlaneseq
        %v1283 = vshrl.u32 %v1282, 7
        %v1284 = vsub.s32 2, %v1283
        %v1285 = vrot.slane %v1272, %v1284
        %v1286 = vlaneseq
        %v1287 = vshrl.u32 %v1286, 7
        %v1288 = vsub.s32 3, %v1287
        %v1289 = vrot.slane %v1272, %v1288
        %v1290 = vlaneseq
        %v1291 = vshrl.u32 %v1290, 7
        %v1292 = vsub.s32 4, %v1291
        %v1293 = vrot.slane %v1272, %v1292
        %v1294 = vlaneseq
        %v1295 = vshrl.u32 %v1294, 7
        %v1296 = vsub.s32 5, %v1295
        %v1297 = vrot.slane %v1272, %v1296
        %v1298 = vlaneseq
        %v1299 = vshrl.u32 %v1298, 7
        %v1300 = vsub.s32 6, %v1299
        %v1301 = vrot.slane %v1272, %v1300
        %v1302 = vlaneseq
        %v1303 = vshrl.u32 %v1302, 7
        %v1304 = vsub.s32 7, %v1303
        %v1305 = vrot.slane %v1272, %v1304
        %v1306 = vcombine.low %v1277, %v1281
        %v1307 = vcombine.low %v1285, %v1289
        %v1308 = vcombine.low %v1293, %v1297
        %v1309 = vcombine.low %v1301, %v1305
        %1310 = vrot.lane.b32.xlu0 %v1306, 127
        %v1311 = vpop.permute.xlu0 %1310
        %1312 = vrot.lane.b32.xlu0 %v1307, 127
        %v1313 = vpop.permute.xlu0 %1312
        %1314 = vrot.lane.b32.xlu0 %v1308, 127
        %v1315 = vpop.permute.xlu0 %1314
        %1316 = vrot.lane.b32.xlu0 %v1309, 127
        %v1317 = vpop.permute.xlu0 %1316
        %v1318 = vrot.slane %v1311, 4
        %v1319 = vrot.slane %v1313, 4
        %v1320 = vrot.slane %v1315, 4
        %v1321 = vrot.slane %v1317, 4
        %vm1322 = vcmask 1039360
        %v1323 = vsel %vm1322, %v1318, %v1311
        %v1324 = vsel %vm1014, %v1318, %v1319
        %v1325 = vsel %vm1322, %v1324, %v1313
        %v1326 = vsel %vm1014, %v1319, %v1320
        %v1327 = vsel %vm1322, %v1326, %v1315
        %v1328 = vsel %vm1014, %v1320, %v1321
        %v1329 = vsel %vm1322, %v1328, %v1317
        %v1335 = vmul.f32 %v1267, %v1323
        %v1336 = vmul.f32 %v1268, %v1325
        %v1337 = vmul.f32 %v1269, %v1327
        %v1338 = vmul.f32 %v1270, %v1329
        %v1339 = vmul.f32 %v1271, %v1321
        %v1345 = vcombine.low %v1335, %v1335
        %v1346 = vcombine.low %v1336, %v1336
        %v1347 = vcombine.low %v1337, %v1337
        %v1348 = vcombine.low %v1338, %v1338
        %v1349 = vcombine.low %v1339, %v1339
        %1350 = vrot.lane.b32.xlu0 %v1345, 1
        %v1351 = vpop.permute.xlu0 %1350
        %1352 = vrot.lane.b32.xlu0 %v1335, 1
        %v1353 = vpop.permute.xlu0 %1352
        %1354 = vrot.lane.b32.xlu0 %v1346, 1
        %v1355 = vpop.permute.xlu0 %1354
        %1356 = vrot.lane.b32.xlu0 %v1336, 1
        %v1357 = vpop.permute.xlu0 %1356
        %1358 = vrot.lane.b32.xlu0 %v1347, 1
        %v1359 = vpop.permute.xlu0 %1358
        %1360 = vrot.lane.b32.xlu0 %v1337, 1
        %v1361 = vpop.permute.xlu0 %1360
        %1362 = vrot.lane.b32.xlu0 %v1348, 1
        %v1363 = vpop.permute.xlu0 %1362
        %1364 = vrot.lane.b32.xlu0 %v1338, 1
        %v1365 = vpop.permute.xlu0 %1364
        %1366 = vrot.lane.b32.xlu0 %v1349, 1
        %v1367 = vpop.permute.xlu0 %1366
        %vm1368 = vcmask 7168
        %v1369 = vsel %vm1368, %v1351, %v1353
        %v1370 = vsel %vm1368, %v1353, %v1355
        %v1371 = vsel %vm1368, %v1355, %v1357
        %v1372 = vsel %vm1368, %v1357, %v1359
        %v1373 = vsel %vm1368, %v1359, %v1361
        %v1374 = vsel %vm1368, %v1361, %v1363
        %v1375 = vsel %vm1368, %v1363, %v1365
        %v1376 = vsel %vm1368, %v1365, %v1367
        %1385 = vst [vmem:[#allocation4 + $0x40] sm:$0xf0] %v1369
        %1386 = vst [vmem:[#allocation4 + $0x48] sm:$0xf0] %v1370
        %1387 = vst [vmem:[#allocation4 + $0x50] sm:$0xf0] %v1371
        %1388 = vst [vmem:[#allocation4 + $0x58] sm:$0xf0] %v1372
        %1389 = vst [vmem:[#allocation4 + $0x60] sm:$0xf0] %v1373
        %1390 = vst [vmem:[#allocation4 + $0x68] sm:$0xf0] %v1374
        %1391 = vst [vmem:[#allocation4 + $0x70] sm:$0xf0] %v1375
        %1392 = vst [vmem:[#allocation4 + $0x78] sm:$0xf0] %v1376
        %v1393 = vld [vmem:[#allocation2 + $0x4] sm:$0xff]
        %v1394 = vld [vmem:[#allocation2 + $0xc] sm:$0xff]
        %v1395 = vld [vmem:[#allocation2 + $0x14] sm:$0xff]
        %v1396 = vld [vmem:[#allocation2 + $0x1c] sm:$0xff]
        %v1401 = vcombine.high %v1393, %v1393
        %v1402 = vcombine.high %v1394, %v1394
        %v1403 = vcombine.high %v1395, %v1395
        %v1404 = vcombine.high %v1396, %v1396
        %1409 = vst [vmem:[#allocation4 + $0x80] sm:$0xf] %v1393
        %1410 = vst [vmem:[#allocation4 + $0x88] sm:$0xf] %v1401
        %1411 = vst [vmem:[#allocation4 + $0x90] sm:$0xf] %v1394
        %1412 = vst [vmem:[#allocation4 + $0x98] sm:$0xf] %v1402
        %1413 = vst [vmem:[#allocation4 + $0xa0] sm:$0xf] %v1395
        %1414 = vst [vmem:[#allocation4 + $0xa8] sm:$0xf] %v1403
        %1415 = vst [vmem:[#allocation4 + $0xb0] sm:$0xf] %v1396
        %1416 = vst [vmem:[#allocation4 + $0xb8] sm:$0xf] %v1404
        %v1417 = vld [vmem:[#allocation2 + $0x4] sm:$0xff]
        %v1418 = vld [vmem:[#allocation2 + $0xc] sm:$0xff]
        %v1419 = vld [vmem:[#allocation2 + $0x14] sm:$0xff]
        %v1420 = vld [vmem:[#allocation2 + $0x1c] sm:$0xff]
        %v1421 = vld [vmem:[#allocation2 + $0x24] sm:$0xf]
        %v1422 = vld [vmem:[%s1146] ss:$4 sm:$0xff]
        %v1424 = vlaneseq
        %v1425 = vshrl.u32 %v1424, 7
        %v1426 = vsub.s32 0, %v1425
        %v1427 = vrot.slane %v1422, %v1426
        %v1428 = vlaneseq
        %v1429 = vshrl.u32 %v1428, 7
        %v1430 = vsub.s32 1, %v1429
        %v1431 = vrot.slane %v1422, %v1430
        %v1432 = vlaneseq
        %v1433 = vshrl.u32 %v1432, 7
        %v1434 = vsub.s32 2, %v1433
        %v1435 = vrot.slane %v1422, %v1434
        %v1436 = vlaneseq
        %v1437 = vshrl.u32 %v1436, 7
        %v1438 = vsub.s32 3, %v1437
        %v1439 = vrot.slane %v1422, %v1438
        %v1440 = vlaneseq
        %v1441 = vshrl.u32 %v1440, 7
        %v1442 = vsub.s32 4, %v1441
        %v1443 = vrot.slane %v1422, %v1442
        %v1444 = vlaneseq
        %v1445 = vshrl.u32 %v1444, 7
        %v1446 = vsub.s32 5, %v1445
        %v1447 = vrot.slane %v1422, %v1446
        %v1448 = vlaneseq
        %v1449 = vshrl.u32 %v1448, 7
        %v1450 = vsub.s32 6, %v1449
        %v1451 = vrot.slane %v1422, %v1450
        %v1452 = vlaneseq
        %v1453 = vshrl.u32 %v1452, 7
        %v1454 = vsub.s32 7, %v1453
        %v1455 = vrot.slane %v1422, %v1454
        %v1456 = vcombine.low %v1427, %v1431
        %v1457 = vcombine.low %v1435, %v1439
        %v1458 = vcombine.low %v1443, %v1447
        %v1459 = vcombine.low %v1451, %v1455
        %1460 = vrot.lane.b32.xlu0 %v1456, 1
        %v1461 = vpop.permute.xlu0 %1460
        %1462 = vrot.lane.b32.xlu0 %v1457, 1
        %v1463 = vpop.permute.xlu0 %1462
        %1464 = vrot.lane.b32.xlu0 %v1458, 1
        %v1465 = vpop.permute.xlu0 %1464
        %1466 = vrot.lane.b32.xlu0 %v1459, 1
        %v1467 = vpop.permute.xlu0 %1466
        %v1468 = vrot.slane %v1461, 4
        %v1469 = vrot.slane %v1463, 4
        %v1470 = vrot.slane %v1465, 4
        %v1471 = vrot.slane %v1467, 4
        %v1472 = vsel %vm1368, %v1468, %v1461
        %v1473 = vsel %vm1014, %v1468, %v1469
        %v1474 = vsel %vm1368, %v1473, %v1463
        %v1475 = vsel %vm1014, %v1469, %v1470
        %v1476 = vsel %vm1368, %v1475, %v1465
        %v1477 = vsel %vm1014, %v1470, %v1471
        %v1478 = vsel %vm1368, %v1477, %v1467
        %v1484 = vmul.f32 %v1417, %v1472
        %v1485 = vmul.f32 %v1418, %v1474
        %v1486 = vmul.f32 %v1419, %v1476
        %v1487 = vmul.f32 %v1420, %v1478
        %v1488 = vmul.f32 %v1421, %v1471
        %v1494 = vcombine.low %v1484, %v1484
        %v1495 = vcombine.low %v1485, %v1485
        %v1496 = vcombine.low %v1486, %v1486
        %v1497 = vcombine.low %v1487, %v1487
        %v1498 = vcombine.low %v1488, %v1488
        %1499 = vrot.lane.b32.xlu0 %v1494, 127
        %v1500 = vpop.permute.xlu0 %1499
        %1501 = vrot.lane.b32.xlu0 %v1484, 127
        %v1502 = vpop.permute.xlu0 %1501
        %1503 = vrot.lane.b32.xlu0 %v1495, 127
        %v1504 = vpop.permute.xlu0 %1503
        %1505 = vrot.lane.b32.xlu0 %v1485, 127
        %v1506 = vpop.permute.xlu0 %1505
        %1507 = vrot.lane.b32.xlu0 %v1496, 127
        %v1508 = vpop.permute.xlu0 %1507
        %1509 = vrot.lane.b32.xlu0 %v1486, 127
        %v1510 = vpop.permute.xlu0 %1509
        %1511 = vrot.lane.b32.xlu0 %v1497, 127
        %v1512 = vpop.permute.xlu0 %1511
        %1513 = vrot.lane.b32.xlu0 %v1487, 127
        %v1514 = vpop.permute.xlu0 %1513
        %1515 = vrot.lane.b32.xlu0 %v1498, 127
        %v1516 = vpop.permute.xlu0 %1515
        %v1517 = vsel %vm1322, %v1500, %v1502
        %v1518 = vsel %vm1322, %v1502, %v1504
        %v1519 = vsel %vm1322, %v1504, %v1506
        %v1520 = vsel %vm1322, %v1506, %v1508
        %v1521 = vsel %vm1322, %v1508, %v1510
        %v1522 = vsel %vm1322, %v1510, %v1512
        %v1523 = vsel %vm1322, %v1512, %v1514
        %v1524 = vsel %vm1322, %v1514, %v1516
        %1533 = vst [vmem:[#allocation4 + $0x80] sm:$0xf0] %v1517
        %1534 = vst [vmem:[#allocation4 + $0x88] sm:$0xf0] %v1518
        %1535 = vst [vmem:[#allocation4 + $0x90] sm:$0xf0] %v1519
        %1536 = vst [vmem:[#allocation4 + $0x98] sm:$0xf0] %v1520
        %1537 = vst [vmem:[#allocation4 + $0xa0] sm:$0xf0] %v1521
        %1538 = vst [vmem:[#allocation4 + $0xa8] sm:$0xf0] %v1522
        %1539 = vst [vmem:[#allocation4 + $0xb0] sm:$0xf0] %v1523
        %1540 = vst [vmem:[#allocation4 + $0xb8] sm:$0xf0] %v1524
        %v1541 = vld [vmem:[#allocation2 + $0x4] sm:$0xff]
        %v1542 = vld [vmem:[#allocation2 + $0xc] sm:$0xff]
        %v1543 = vld [vmem:[#allocation2 + $0x14] sm:$0xff]
        %v1544 = vld [vmem:[#allocation2 + $0x1c] sm:$0xff]
        %v1545 = vld [vmem:[#allocation2 + $0x24] sm:$0xf]
        %v1546 = vld [vmem:[#allocation8] ss:$4 sm:$0xff]
        %v1548 = vlaneseq
        %v1549 = vshrl.u32 %v1548, 7
        %v1550 = vsub.s32 0, %v1549
        %v1551 = vrot.slane %v1546, %v1550
        %v1552 = vlaneseq
        %v1553 = vshrl.u32 %v1552, 7
        %v1554 = vsub.s32 1, %v1553
        %v1555 = vrot.slane %v1546, %v1554
        %v1556 = vlaneseq
        %v1557 = vshrl.u32 %v1556, 7
        %v1558 = vsub.s32 2, %v1557
        %v1559 = vrot.slane %v1546, %v1558
        %v1560 = vlaneseq
        %v1561 = vshrl.u32 %v1560, 7
        %v1562 = vsub.s32 3, %v1561
        %v1563 = vrot.slane %v1546, %v1562
        %v1564 = vlaneseq
        %v1565 = vshrl.u32 %v1564, 7
        %v1566 = vsub.s32 4, %v1565
        %v1567 = vrot.slane %v1546, %v1566
        %v1568 = vlaneseq
        %v1569 = vshrl.u32 %v1568, 7
        %v1570 = vsub.s32 5, %v1569
        %v1571 = vrot.slane %v1546, %v1570
        %v1572 = vlaneseq
        %v1573 = vshrl.u32 %v1572, 7
        %v1574 = vsub.s32 6, %v1573
        %v1575 = vrot.slane %v1546, %v1574
        %v1576 = vlaneseq
        %v1577 = vshrl.u32 %v1576, 7
        %v1578 = vsub.s32 7, %v1577
        %v1579 = vrot.slane %v1546, %v1578
        %v1580 = vcombine.low %v1551, %v1555
        %v1581 = vcombine.low %v1559, %v1563
        %v1582 = vcombine.low %v1567, %v1571
        %v1583 = vcombine.low %v1575, %v1579
        %1584 = vrot.lane.b32.xlu0 %v1580, 31
        %v1585 = vpop.permute.xlu0 %1584
        %1586 = vrot.lane.b32.xlu0 %v1581, 31
        %v1587 = vpop.permute.xlu0 %1586
        %1588 = vrot.lane.b32.xlu0 %v1582, 31
        %v1589 = vpop.permute.xlu0 %1588
        %1590 = vrot.lane.b32.xlu0 %v1583, 31
        %v1591 = vpop.permute.xlu0 %1590
        %v1592 = vrot.slane %v1585, 4
        %v1593 = vrot.slane %v1587, 4
        %v1594 = vrot.slane %v1589, 4
        %v1595 = vrot.slane %v1591, 4
        %v1596 = vsel %vm1242, %v1592, %v1585
        %v1597 = vsel %vm1014, %v1592, %v1593
        %v1598 = vsel %vm1242, %v1597, %v1587
        %v1599 = vsel %vm1014, %v1593, %v1594
        %v1600 = vsel %vm1242, %v1599, %v1589
        %v1601 = vsel %vm1014, %v1594, %v1595
        %v1602 = vsel %vm1242, %v1601, %v1591
        %v1608 = vmul.f32 %v1541, %v1596
        %v1609 = vmul.f32 %v1542, %v1598
        %v1610 = vmul.f32 %v1543, %v1600
        %v1611 = vmul.f32 %v1544, %v1602
        %v1612 = vmul.f32 %v1545, %v1595
        %v1618 = vcombine.high %v1608, %v1608
        %v1619 = vcombine.high %v1609, %v1609
        %v1620 = vcombine.high %v1610, %v1610
        %v1621 = vcombine.high %v1611, %v1611
        %1622 = vrot.lane.b32.xlu0 %v1608, 97
        %v1623 = vpop.permute.xlu0 %1622
        %1624 = vrot.lane.b32.xlu0 %v1618, 97
        %v1625 = vpop.permute.xlu0 %1624
        %1626 = vrot.lane.b32.xlu0 %v1609, 97
        %v1627 = vpop.permute.xlu0 %1626
        %1628 = vrot.lane.b32.xlu0 %v1619, 97
        %v1629 = vpop.permute.xlu0 %1628
        %1630 = vrot.lane.b32.xlu0 %v1610, 97
        %v1631 = vpop.permute.xlu0 %1630
        %1632 = vrot.lane.b32.xlu0 %v1620, 97
        %v1633 = vpop.permute.xlu0 %1632
        %1634 = vrot.lane.b32.xlu0 %v1611, 97
        %v1635 = vpop.permute.xlu0 %1634
        %1636 = vrot.lane.b32.xlu0 %v1621, 97
        %v1637 = vpop.permute.xlu0 %1636
        %1638 = vrot.lane.b32.xlu0 %v1612, 97
        %v1639 = vpop.permute.xlu0 %1638
        %v1640 = vsel %vm1197, %v1623, %v1625
        %v1641 = vsel %vm1197, %v1625, %v1627
        %v1642 = vsel %vm1197, %v1627, %v1629
        %v1643 = vsel %vm1197, %v1629, %v1631
        %v1644 = vsel %vm1197, %v1631, %v1633
        %v1645 = vsel %vm1197, %v1633, %v1635
        %v1646 = vsel %vm1197, %v1635, %v1637
        %v1647 = vsel %vm1197, %v1637, %v1639
        %1656 = vst [vmem:[#allocation4 + $0xc0] sm:$0xf] %v1640
        %1657 = vst [vmem:[#allocation4 + $0xc8] sm:$0xf] %v1641
        %1658 = vst [vmem:[#allocation4 + $0xd0] sm:$0xf] %v1642
        %1659 = vst [vmem:[#allocation4 + $0xd8] sm:$0xf] %v1643
        %1660 = vst [vmem:[#allocation4 + $0xe0] sm:$0xf] %v1644
        %1661 = vst [vmem:[#allocation4 + $0xe8] sm:$0xf] %v1645
        %1662 = vst [vmem:[#allocation4 + $0xf0] sm:$0xf] %v1646
        %1663 = vst [vmem:[#allocation4 + $0xf8] sm:$0xf] %v1647
        %v1664 = vld [vmem:[#allocation2 + $0x4] sm:$0xff]
        %v1665 = vld [vmem:[#allocation2 + $0xc] sm:$0xff]
        %v1666 = vld [vmem:[#allocation2 + $0x14] sm:$0xff]
        %v1667 = vld [vmem:[#allocation2 + $0x1c] sm:$0xff]
        %v1668 = vld [vmem:[#allocation2 + $0x24] sm:$0xf]
        %v1674 = vcombine.low %v1664, %v1664
        %v1675 = vcombine.low %v1665, %v1665
        %v1676 = vcombine.low %v1666, %v1666
        %v1677 = vcombine.low %v1667, %v1667
        %v1678 = vcombine.low %v1668, %v1668
        %1679 = vrot.lane.b32.xlu0 %v1674, 96
        %v1680 = vpop.permute.xlu0 %1679
        %1681 = vrot.lane.b32.xlu0 %v1664, 96
        %v1682 = vpop.permute.xlu0 %1681
        %1683 = vrot.lane.b32.xlu0 %v1675, 96
        %v1684 = vpop.permute.xlu0 %1683
        %1685 = vrot.lane.b32.xlu0 %v1665, 96
        %v1686 = vpop.permute.xlu0 %1685
        %1687 = vrot.lane.b32.xlu0 %v1676, 96
        %v1688 = vpop.permute.xlu0 %1687
        %1689 = vrot.lane.b32.xlu0 %v1666, 96
        %v1690 = vpop.permute.xlu0 %1689
        %1691 = vrot.lane.b32.xlu0 %v1677, 96
        %v1692 = vpop.permute.xlu0 %1691
        %1693 = vrot.lane.b32.xlu0 %v1667, 96
        %v1694 = vpop.permute.xlu0 %1693
        %1695 = vrot.lane.b32.xlu0 %v1678, 96
        %v1696 = vpop.permute.xlu0 %1695
        %vm1697 = vcmask 785408
        %v1698 = vsel %vm1697, %v1680, %v1682
        %v1699 = vsel %vm1697, %v1682, %v1684
        %v1700 = vsel %vm1697, %v1684, %v1686
        %v1701 = vsel %vm1697, %v1686, %v1688
        %v1702 = vsel %vm1697, %v1688, %v1690
        %v1703 = vsel %vm1697, %v1690, %v1692
        %v1704 = vsel %vm1697, %v1692, %v1694
        %v1705 = vsel %vm1697, %v1694, %v1696
        %1714 = vst [vmem:[#allocation4 + $0xc0] sm:$0xf0] %v1698
        %1715 = vst [vmem:[#allocation4 + $0xc8] sm:$0xf0] %v1699
        %1716 = vst [vmem:[#allocation4 + $0xd0] sm:$0xf0] %v1700
        %1717 = vst [vmem:[#allocation4 + $0xd8] sm:$0xf0] %v1701
        %1718 = vst [vmem:[#allocation4 + $0xe0] sm:$0xf0] %v1702
        %1719 = vst [vmem:[#allocation4 + $0xe8] sm:$0xf0] %v1703
        %1720 = vst [vmem:[#allocation4 + $0xf0] sm:$0xf0] %v1704
        %1721 = vst [vmem:[#allocation4 + $0xf8] sm:$0xf0] %v1705
        %v1722 = vld [vmem:[#allocation2 + $0x4] sm:$0xff]
        %v1723 = vld [vmem:[#allocation2 + $0xc] sm:$0xff]
        %v1724 = vld [vmem:[#allocation2 + $0x14] sm:$0xff]
        %v1725 = vld [vmem:[#allocation2 + $0x1c] sm:$0xff]
        %v1726 = vld [vmem:[#allocation2 + $0x24] sm:$0xf]
        %v1727 = vld [vmem:[%s1146] ss:$4 sm:$0xff]
        %v1729 = vlaneseq
        %v1730 = vshrl.u32 %v1729, 7
        %v1731 = vsub.s32 0, %v1730
        %v1732 = vrot.slane %v1727, %v1731
        %v1733 = vlaneseq
        %v1734 = vshrl.u32 %v1733, 7
        %v1735 = vsub.s32 1, %v1734
        %v1736 = vrot.slane %v1727, %v1735
        %v1737 = vlaneseq
        %v1738 = vshrl.u32 %v1737, 7
        %v1739 = vsub.s32 2, %v1738
        %v1740 = vrot.slane %v1727, %v1739
        %v1741 = vlaneseq
        %v1742 = vshrl.u32 %v1741, 7
        %v1743 = vsub.s32 3, %v1742
        %v1744 = vrot.slane %v1727, %v1743
        %v1745 = vlaneseq
        %v1746 = vshrl.u32 %v1745, 7
        %v1747 = vsub.s32 4, %v1746
        %v1748 = vrot.slane %v1727, %v1747
        %v1749 = vlaneseq
        %v1750 = vshrl.u32 %v1749, 7
        %v1751 = vsub.s32 5, %v1750
        %v1752 = vrot.slane %v1727, %v1751
        %v1753 = vlaneseq
        %v1754 = vshrl.u32 %v1753, 7
        %v1755 = vsub.s32 6, %v1754
        %v1756 = vrot.slane %v1727, %v1755
        %v1757 = vlaneseq
        %v1758 = vshrl.u32 %v1757, 7
        %v1759 = vsub.s32 7, %v1758
        %v1760 = vrot.slane %v1727, %v1759
        %v1761 = vcombine.low %v1732, %v1736
        %v1762 = vcombine.low %v1740, %v1744
        %v1763 = vcombine.low %v1748, %v1752
        %v1764 = vcombine.low %v1756, %v1760
        %1765 = vrot.lane.b32.xlu0 %v1761, 33
        %v1766 = vpop.permute.xlu0 %1765
        %1767 = vrot.lane.b32.xlu0 %v1762, 33
        %v1768 = vpop.permute.xlu0 %1767
        %1769 = vrot.lane.b32.xlu0 %v1763, 33
        %v1770 = vpop.permute.xlu0 %1769
        %1771 = vrot.lane.b32.xlu0 %v1764, 33
        %v1772 = vpop.permute.xlu0 %1771
        %v1773 = vrot.slane %v1766, 4
        %v1774 = vrot.slane %v1768, 4
        %v1775 = vrot.slane %v1770, 4
        %v1776 = vrot.slane %v1772, 4
        %v1777 = vsel %vm1058, %v1773, %v1766
        %v1778 = vsel %vm1014, %v1773, %v1774
        %v1779 = vsel %vm1058, %v1778, %v1768
        %v1780 = vsel %vm1014, %v1774, %v1775
        %v1781 = vsel %vm1058, %v1780, %v1770
        %v1782 = vsel %vm1014, %v1775, %v1776
        %v1783 = vsel %vm1058, %v1782, %v1772
        %v1789 = vmul.f32 %v1722, %v1777
        %v1790 = vmul.f32 %v1723, %v1779
        %v1791 = vmul.f32 %v1724, %v1781
        %v1792 = vmul.f32 %v1725, %v1783
        %v1793 = vmul.f32 %v1726, %v1776
        %v1799 = vcombine.high %v1789, %v1789
        %v1800 = vcombine.high %v1790, %v1790
        %v1801 = vcombine.high %v1791, %v1791
        %v1802 = vcombine.high %v1792, %v1792
        %1803 = vrot.lane.b32.xlu0 %v1789, 95
        %v1804 = vpop.permute.xlu0 %1803
        %1805 = vrot.lane.b32.xlu0 %v1799, 95
        %v1806 = vpop.permute.xlu0 %1805
        %1807 = vrot.lane.b32.xlu0 %v1790, 95
        %v1808 = vpop.permute.xlu0 %1807
        %1809 = vrot.lane.b32.xlu0 %v1800, 95
        %v1810 = vpop.permute.xlu0 %1809
        %1811 = vrot.lane.b32.xlu0 %v1791, 95
        %v1812 = vpop.permute.xlu0 %1811
        %1813 = vrot.lane.b32.xlu0 %v1801, 95
        %v1814 = vpop.permute.xlu0 %1813
        %1815 = vrot.lane.b32.xlu0 %v1792, 95
        %v1816 = vpop.permute.xlu0 %1815
        %1817 = vrot.lane.b32.xlu0 %v1802, 95
        %v1818 = vpop.permute.xlu0 %1817
        %1819 = vrot.lane.b32.xlu0 %v1793, 95
        %v1820 = vpop.permute.xlu0 %1819
        %v1821 = vsel %vm1012, %v1804, %v1806
        %v1822 = vsel %vm1012, %v1806, %v1808
        %v1823 = vsel %vm1012, %v1808, %v1810
        %v1824 = vsel %vm1012, %v1810, %v1812
        %v1825 = vsel %vm1012, %v1812, %v1814
        %v1826 = vsel %vm1012, %v1814, %v1816
        %v1827 = vsel %vm1012, %v1816, %v1818
        %v1828 = vsel %vm1012, %v1818, %v1820
        %1837 = vst [vmem:[#allocation4 + $0x100] sm:$0xf] %v1821
        %1838 = vst [vmem:[#allocation4 + $0x108] sm:$0xf] %v1822
        %1839 = vst [vmem:[#allocation4 + $0x110] sm:$0xf] %v1823
        %1840 = vst [vmem:[#allocation4 + $0x118] sm:$0xf] %v1824
        %1841 = vst [vmem:[#allocation4 + $0x120] sm:$0xf] %v1825
        %1842 = vst [vmem:[#allocation4 + $0x128] sm:$0xf] %v1826
        %1843 = vst [vmem:[#allocation4 + $0x130] sm:$0xf] %v1827
        %1844 = vst [vmem:[#allocation4 + $0x138] sm:$0xf] %v1828
        %v1845 = vld [vmem:[%s3] sm:$0x3]
        %v1846 = vld [vmem:[#allocation4] sm:$0xff]
        %v1847 = vld [vmem:[#allocation4 + $0x8] sm:$0xff]
        %v1848 = vld [vmem:[#allocation4 + $0x10] sm:$0xff]
        %v1849 = vld [vmem:[#allocation4 + $0x18] sm:$0xff]
        %v1850 = vld [vmem:[#allocation4 + $0x20] sm:$0xff]
        %v1851 = vld [vmem:[#allocation4 + $0x28] sm:$0xff]
        %v1852 = vld [vmem:[#allocation4 + $0x30] sm:$0xff]
        %v1853 = vld [vmem:[#allocation4 + $0x38] sm:$0xff]
        %v1854 = vld [vmem:[#allocation4 + $0x40] sm:$0xff]
        %v1855 = vld [vmem:[#allocation4 + $0x48] sm:$0xff]
        %v1856 = vld [vmem:[#allocation4 + $0x50] sm:$0xff]
        %v1857 = vld [vmem:[#allocation4 + $0x58] sm:$0xff]
        %v1858 = vld [vmem:[#allocation4 + $0x60] sm:$0xff]
        %v1859 = vld [vmem:[#allocation4 + $0x68] sm:$0xff]
        %v1860 = vld [vmem:[#allocation4 + $0x70] sm:$0xff]
        %v1861 = vld [vmem:[#allocation4 + $0x78] sm:$0xff]
        %v1862 = vld [vmem:[#allocation4 + $0x80] sm:$0xff]
        %v1863 = vld [vmem:[#allocation4 + $0x88] sm:$0xff]
        %v1864 = vld [vmem:[#allocation4 + $0x90] sm:$0xff]
        %v1865 = vld [vmem:[#allocation4 + $0x98] sm:$0xff]
        %v1866 = vld [vmem:[#allocation4 + $0xa0] sm:$0xff]
        %v1867 = vld [vmem:[#allocation4 + $0xa8] sm:$0xff]
        %v1868 = vld [vmem:[#allocation4 + $0xb0] sm:$0xff]
        %v1869 = vld [vmem:[#allocation4 + $0xb8] sm:$0xff]
        %v1870 = vld [vmem:[#allocation4 + $0xc0] sm:$0xff]
        %v1871 = vld [vmem:[#allocation4 + $0xc8] sm:$0xff]
        %v1872 = vld [vmem:[#allocation4 + $0xd0] sm:$0xff]
        %v1873 = vld [vmem:[#allocation4 + $0xd8] sm:$0xff]
        %v1874 = vld [vmem:[#allocation4 + $0xe0] sm:$0xff]
        %v1875 = vld [vmem:[#allocation4 + $0xe8] sm:$0xff]
        %v1876 = vld [vmem:[#allocation4 + $0xf0] sm:$0xff]
        %v1877 = vld [vmem:[#allocation4 + $0xf8] sm:$0xff]
        %v1878 = vld [vmem:[#allocation4 + $0x100] sm:$0xf]
        %v1879 = vld [vmem:[#allocation4 + $0x108] sm:$0xf]
        %v1880 = vld [vmem:[#allocation4 + $0x110] sm:$0xf]
        %v1881 = vld [vmem:[#allocation4 + $0x118] sm:$0xf]
        %v1882 = vld [vmem:[#allocation4 + $0x120] sm:$0xf]
        %v1883 = vld [vmem:[#allocation4 + $0x128] sm:$0xf]
        %v1884 = vld [vmem:[#allocation4 + $0x130] sm:$0xf]
        %v1885 = vld [vmem:[#allocation4 + $0x138] sm:$0xf]
        %vm1886 = vcmask 293888
        %v1888 = vsel %vm1886, %v1845, 0
        %v1891 = vsel %vm1014, %v1878, 0
        %v1894 = vsel %vm1014, %v1879, 0
        %v1897 = vsel %vm1014, %v1880, 0
        %v1900 = vsel %vm1014, %v1881, 0
        %v1903 = vsel %vm1014, %v1882, 0
        %v1906 = vsel %vm1014, %v1883, 0
        %v1909 = vsel %vm1014, %v1884, 0
        %v1912 = vsel %vm1014, %v1885, 0
        %1914 = vmatprep.subr.mxu0 %v1847
        %1915 = vmatpush1.msra.mxu0 %v1846
        %1916 = vmatprep.subr.mxu0 %v1855
        %1917 = vmatpush1.msra.mxu0 %v1854
        %1918 = vmatprep.subr.mxu0 %v1863
        %1919 = vmatpush1.msra.mxu0 %v1862
        %1920 = vmatprep.subr.mxu0 %v1871
        %1921 = vmatpush1.msra.mxu0 %v1870
        %1922 = vmatprep.subr.mxu0 %v1894
        %1923 = vmatpush1.msra.mxu0 %v1891
        %1924 = vmatprep.subr.mxu0 0.0
        %1925 = vmatpush1.msra.mxu0 0.0
        %1926 = vmatprep.subr.mxu0 0.0
        %1927 = vmatpush1.msra.mxu0 0.0
        %1928 = vmatprep.subr.mxu0 0.0
        %1929 = vmatpush1.msra.mxu0 0.0
        %1930 = vmatprep.subr.mxu0 0.0
        %1931 = vmatpush1.msra.mxu0 0.0
        %1932 = vmatprep.subr.mxu0 0.0
        %1933 = vmatpush1.msra.mxu0 0.0
        %1934 = vmatprep.subr.mxu0 0.0
        %1935 = vmatpush1.msra.mxu0 0.0
        %1936 = vmatprep.subr.mxu0 0.0
        %1937 = vmatpush1.msra.mxu0 0.0
        %1938 = vmatprep.subr.mxu0 0.0
        %1939 = vmatpush1.msra.mxu0 0.0
        %1940 = vmatprep.subr.mxu0 0.0
        %1941 = vmatpush1.msra.mxu0 0.0
        %1942 = vmatprep.subr.mxu0 0.0
        %1943 = vmatpush1.msra.mxu0 0.0
        %1944 = vmatprep.subr.mxu0 0.0
        %1945 = vmatpush1.msra.mxu0 0.0
        %1946 = vmatprep.subr.mxu0 0.0
        %1947 = vmatpush1.msra.mxu0 0.0
        %1948 = vmatprep.subr.mxu0 0.0
        %1949 = vmatpush1.msra.mxu0 0.0
        %1950 = vmatprep.subr.mxu0 0.0
        %1951 = vmatpush1.msra.mxu0 0.0
        %1952 = vmatprep.subr.mxu0 0.0
        %1953 = vmatpush1.msra.mxu0 0.0
        %1954 = vmatprep.subr.mxu0 0.0
        %1955 = vmatpush1.msra.mxu0 0.0
        %1956 = vmatprep.subr.mxu0 0.0
        %1957 = vmatpush1.msra.mxu0 0.0
        %1958 = vmatprep.subr.mxu0 0.0
        %1959 = vmatpush1.msra.mxu0 0.0
        %1960 = vmatprep.subr.mxu0 0.0
        %1961 = vmatpush1.msra.mxu0 0.0
        %1962 = vmatprep.subr.mxu0 0.0
        %1963 = vmatpush1.msra.mxu0 0.0
        %1964 = vmatprep.subr.mxu0 0.0
        %1965 = vmatpush1.msra.mxu0 0.0
        %1966 = vmatprep.subr.mxu0 0.0
        %1967 = vmatpush1.msra.mxu0 0.0
        %1968 = vmatprep.subr.mxu0 0.0
        %1969 = vmatpush1.msra.mxu0 0.0
        %1970 = vmatprep.subr.mxu0 0.0
        %1971 = vmatpush1.msra.mxu0 0.0
        %1972 = vmatprep.subr.mxu0 0.0
        %1973 = vmatpush1.msra.mxu0 0.0
        %1974 = vmatprep.subr.mxu0 0.0
        %1975 = vmatpush1.msra.mxu0 0.0
        %1976 = vmatprep.subr.mxu0 0.0
        %1977 = vmatpush1.msra.mxu0 0.0
        %1978 = vmatprep.mubr.f32.mxu0 0.0
        %1979 = vmatmul.mubr.f32.gmra.mrb[0].mxu0 %v1888
        %v1980 = vpop.f32.mrb[0].mxu0
        %v1981 = vadd.f32 0.0, %v1980
        %v1982 = vpop.f32.mrb[0].mxu0
        %v1983 = vadd.f32 0.0, %v1982
        %1984 = vdwg.mxu0
        %1985 = vmatprep.subr.mxu0 %v1849
        %1986 = vmatpush1.msra.mxu0 %v1848
        %1987 = vmatprep.subr.mxu0 %v1857
        %1988 = vmatpush1.msra.mxu0 %v1856
        %1989 = vmatprep.subr.mxu0 %v1865
        %1990 = vmatpush1.msra.mxu0 %v1864
        %1991 = vmatprep.subr.mxu0 %v1873
        %1992 = vmatpush1.msra.mxu0 %v1872
        %1993 = vmatprep.subr.mxu0 %v1900
        %1994 = vmatpush1.msra.mxu0 %v1897
        %1995 = vmatprep.subr.mxu0 0.0
        %1996 = vmatpush1.msra.mxu0 0.0
        %1997 = vmatprep.subr.mxu0 0.0
        %1998 = vmatpush1.msra.mxu0 0.0
        %1999 = vmatprep.subr.mxu0 0.0
        %2000 = vmatpush1.msra.mxu0 0.0
        %2001 = vmatprep.subr.mxu0 0.0
        %2002 = vmatpush1.msra.mxu0 0.0
        %2003 = vmatprep.subr.mxu0 0.0
        %2004 = vmatpush1.msra.mxu0 0.0
        %2005 = vmatprep.subr.mxu0 0.0
        %2006 = vmatpush1.msra.mxu0 0.0
        %2007 = vmatprep.subr.mxu0 0.0
        %2008 = vmatpush1.msra.mxu0 0.0
        %2009 = vmatprep.subr.mxu0 0.0
        %2010 = vmatpush1.msra.mxu0 0.0
        %2011 = vmatprep.subr.mxu0 0.0
        %2012 = vmatpush1.msra.mxu0 0.0
        %2013 = vmatprep.subr.mxu0 0.0
        %2014 = vmatpush1.msra.mxu0 0.0
        %2015 = vmatprep.subr.mxu0 0.0
        %2016 = vmatpush1.msra.mxu0 0.0
        %2017 = vmatprep.subr.mxu0 0.0
        %2018 = vmatpush1.msra.mxu0 0.0
        %2019 = vmatprep.subr.mxu0 0.0
        %2020 = vmatpush1.msra.mxu0 0.0
        %2021 = vmatprep.subr.mxu0 0.0
        %2022 = vmatpush1.msra.mxu0 0.0
        %2023 = vmatprep.subr.mxu0 0.0
        %2024 = vmatpush1.msra.mxu0 0.0
        %2025 = vmatprep.subr.mxu0 0.0
        %2026 = vmatpush1.msra.mxu0 0.0
        %2027 = vmatprep.subr.mxu0 0.0
        %2028 = vmatpush1.msra.mxu0 0.0
        %2029 = vmatprep.subr.mxu0 0.0
        %2030 = vmatpush1.msra.mxu0 0.0
        %2031 = vmatprep.subr.mxu0 0.0
        %2032 = vmatpush1.msra.mxu0 0.0
        %2033 = vmatprep.subr.mxu0 0.0
        %2034 = vmatpush1.msra.mxu0 0.0
        %2035 = vmatprep.subr.mxu0 0.0
        %2036 = vmatpush1.msra.mxu0 0.0
        %2037 = vmatprep.subr.mxu0 0.0
        %2038 = vmatpush1.msra.mxu0 0.0
        %2039 = vmatprep.subr.mxu0 0.0
        %2040 = vmatpush1.msra.mxu0 0.0
        %2041 = vmatprep.subr.mxu0 0.0
        %2042 = vmatpush1.msra.mxu0 0.0
        %2043 = vmatprep.subr.mxu0 0.0
        %2044 = vmatpush1.msra.mxu0 0.0
        %2045 = vmatprep.subr.mxu0 0.0
        %2046 = vmatpush1.msra.mxu0 0.0
        %2047 = vmatprep.subr.mxu0 0.0
        %2048 = vmatpush1.msra.mxu0 0.0
        %2049 = vmatprep.mubr.f32.mxu0 0.0
        %2050 = vmatmul.mubr.f32.gmra.mrb[0].mxu0 %v1888
        %v2051 = vpop.f32.mrb[0].mxu0
        %v2052 = vadd.f32 0.0, %v2051
        %v2053 = vpop.f32.mrb[0].mxu0
        %v2054 = vadd.f32 0.0, %v2053
        %2055 = vdwg.mxu0
        %2056 = vmatprep.subr.mxu0 %v1851
        %2057 = vmatpush1.msra.mxu0 %v1850
        %2058 = vmatprep.subr.mxu0 %v1859
        %2059 = vmatpush1.msra.mxu0 %v1858
        %2060 = vmatprep.subr.mxu0 %v1867
        %2061 = vmatpush1.msra.mxu0 %v1866
        %2062 = vmatprep.subr.mxu0 %v1875
        %2063 = vmatpush1.msra.mxu0 %v1874
        %2064 = vmatprep.subr.mxu0 %v1906
        %2065 = vmatpush1.msra.mxu0 %v1903
        %2066 = vmatprep.subr.mxu0 0.0
        %2067 = vmatpush1.msra.mxu0 0.0
        %2068 = vmatprep.subr.mxu0 0.0
        %2069 = vmatpush1.msra.mxu0 0.0
        %2070 = vmatprep.subr.mxu0 0.0
        %2071 = vmatpush1.msra.mxu0 0.0
        %2072 = vmatprep.subr.mxu0 0.0
        %2073 = vmatpush1.msra.mxu0 0.0
        %2074 = vmatprep.subr.mxu0 0.0
        %2075 = vmatpush1.msra.mxu0 0.0
        %2076 = vmatprep.subr.mxu0 0.0
        %2077 = vmatpush1.msra.mxu0 0.0
        %2078 = vmatprep.subr.mxu0 0.0
        %2079 = vmatpush1.msra.mxu0 0.0
        %2080 = vmatprep.subr.mxu0 0.0
        %2081 = vmatpush1.msra.mxu0 0.0
        %2082 = vmatprep.subr.mxu0 0.0
        %2083 = vmatpush1.msra.mxu0 0.0
        %2084 = vmatprep.subr.mxu0 0.0
        %2085 = vmatpush1.msra.mxu0 0.0
        %2086 = vmatprep.subr.mxu0 0.0
        %2087 = vmatpush1.msra.mxu0 0.0
        %2088 = vmatprep.subr.mxu0 0.0
        %2089 = vmatpush1.msra.mxu0 0.0
        %2090 = vmatprep.subr.mxu0 0.0
        %2091 = vmatpush1.msra.mxu0 0.0
        %2092 = vmatprep.subr.mxu0 0.0
        %2093 = vmatpush1.msra.mxu0 0.0
        %2094 = vmatprep.subr.mxu0 0.0
        %2095 = vmatpush1.msra.mxu0 0.0
        %2096 = vmatprep.subr.mxu0 0.0
        %2097 = vmatpush1.msra.mxu0 0.0
        %2098 = vmatprep.subr.mxu0 0.0
        %2099 = vmatpush1.msra.mxu0 0.0
        %2100 = vmatprep.subr.mxu0 0.0
        %2101 = vmatpush1.msra.mxu0 0.0
        %2102 = vmatprep.subr.mxu0 0.0
        %2103 = vmatpush1.msra.mxu0 0.0
        %2104 = vmatprep.subr.mxu0 0.0
        %2105 = vmatpush1.msra.mxu0 0.0
        %2106 = vmatprep.subr.mxu0 0.0
        %2107 = vmatpush1.msra.mxu0 0.0
        %2108 = vmatprep.subr.mxu0 0.0
        %2109 = vmatpush1.msra.mxu0 0.0
        %2110 = vmatprep.subr.mxu0 0.0
        %2111 = vmatpush1.msra.mxu0 0.0
        %2112 = vmatprep.subr.mxu0 0.0
        %2113 = vmatpush1.msra.mxu0 0.0
        %2114 = vmatprep.subr.mxu0 0.0
        %2115 = vmatpush1.msra.mxu0 0.0
        %2116 = vmatprep.subr.mxu0 0.0
        %2117 = vmatpush1.msra.mxu0 0.0
        %2118 = vmatprep.subr.mxu0 0.0
        %2119 = vmatpush1.msra.mxu0 0.0
        %2120 = vmatprep.mubr.f32.mxu0 0.0
        %2121 = vmatmul.mubr.f32.gmra.mrb[0].mxu0 %v1888
        %v2122 = vpop.f32.mrb[0].mxu0
        %v2123 = vadd.f32 0.0, %v2122
        %v2124 = vpop.f32.mrb[0].mxu0
        %v2125 = vadd.f32 0.0, %v2124
        %2126 = vdwg.mxu0
        %2127 = vmatprep.subr.mxu0 %v1853
        %2128 = vmatpush1.msra.mxu0 %v1852
        %2129 = vmatprep.subr.mxu0 %v1861
        %2130 = vmatpush1.msra.mxu0 %v1860
        %2131 = vmatprep.subr.mxu0 %v1869
        %2132 = vmatpush1.msra.mxu0 %v1868
        %2133 = vmatprep.subr.mxu0 %v1877
        %2134 = vmatpush1.msra.mxu0 %v1876
        %2135 = vmatprep.subr.mxu0 %v1912
        %2136 = vmatpush1.msra.mxu0 %v1909
        %2137 = vmatprep.subr.mxu0 0.0
        %2138 = vmatpush1.msra.mxu0 0.0
        %2139 = vmatprep.subr.mxu0 0.0
        %2140 = vmatpush1.msra.mxu0 0.0
        %2141 = vmatprep.subr.mxu0 0.0
        %2142 = vmatpush1.msra.mxu0 0.0
        %2143 = vmatprep.subr.mxu0 0.0
        %2144 = vmatpush1.msra.mxu0 0.0
        %2145 = vmatprep.subr.mxu0 0.0
        %2146 = vmatpush1.msra.mxu0 0.0
        %2147 = vmatprep.subr.mxu0 0.0
        %2148 = vmatpush1.msra.mxu0 0.0
        %2149 = vmatprep.subr.mxu0 0.0
        %2150 = vmatpush1.msra.mxu0 0.0
        %2151 = vmatprep.subr.mxu0 0.0
        %2152 = vmatpush1.msra.mxu0 0.0
        %2153 = vmatprep.subr.mxu0 0.0
        %2154 = vmatpush1.msra.mxu0 0.0
        %2155 = vmatprep.subr.mxu0 0.0
        %2156 = vmatpush1.msra.mxu0 0.0
        %2157 = vmatprep.subr.mxu0 0.0
        %2158 = vmatpush1.msra.mxu0 0.0
        %2159 = vmatprep.subr.mxu0 0.0
        %2160 = vmatpush1.msra.mxu0 0.0
        %2161 = vmatprep.subr.mxu0 0.0
        %2162 = vmatpush1.msra.mxu0 0.0
        %2163 = vmatprep.subr.mxu0 0.0
        %2164 = vmatpush1.msra.mxu0 0.0
        %2165 = vmatprep.subr.mxu0 0.0
        %2166 = vmatpush1.msra.mxu0 0.0
        %2167 = vmatprep.subr.mxu0 0.0
        %2168 = vmatpush1.msra.mxu0 0.0
        %2169 = vmatprep.subr.mxu0 0.0
        %2170 = vmatpush1.msra.mxu0 0.0
        %2171 = vmatprep.subr.mxu0 0.0
        %2172 = vmatpush1.msra.mxu0 0.0
        %2173 = vmatprep.subr.mxu0 0.0
        %2174 = vmatpush1.msra.mxu0 0.0
        %2175 = vmatprep.subr.mxu0 0.0
        %2176 = vmatpush1.msra.mxu0 0.0
        %2177 = vmatprep.subr.mxu0 0.0
        %2178 = vmatpush1.msra.mxu0 0.0
        %2179 = vmatprep.subr.mxu0 0.0
        %2180 = vmatpush1.msra.mxu0 0.0
        %2181 = vmatprep.subr.mxu0 0.0
        %2182 = vmatpush1.msra.mxu0 0.0
        %2183 = vmatprep.subr.mxu0 0.0
        %2184 = vmatpush1.msra.mxu0 0.0
        %2185 = vmatprep.subr.mxu0 0.0
        %2186 = vmatpush1.msra.mxu0 0.0
        %2187 = vmatprep.subr.mxu0 0.0
        %2188 = vmatpush1.msra.mxu0 0.0
        %2189 = vmatprep.subr.mxu0 0.0
        %2190 = vmatpush1.msra.mxu0 0.0
        %2191 = vmatprep.mubr.f32.mxu0 0.0
        %2192 = vmatmul.mubr.f32.gmra.mrb[0].mxu0 %v1888
        %v2193 = vpop.f32.mrb[0].mxu0
        %v2194 = vadd.f32 0.0, %v2193
        %v2195 = vpop.f32.mrb[0].mxu0
        %v2196 = vadd.f32 0.0, %v2195
        %2197 = vdwg.mxu0
        %vm2198 = vcmask 1041408
        %v2199 = vsel %vm2198, %v1981, 0.0
        %v2200 = vsel %vm2198, %v1983, 0.0
        %v2201 = vadd.f32 %v2199, %v2200
        %v2202 = vsel %vm2198, %v2052, 0.0
        %v2203 = vadd.f32 %v2201, %v2202
        %v2204 = vsel %vm2198, %v2054, 0.0
        %v2205 = vadd.f32 %v2203, %v2204
        %v2206 = vsel %vm2198, %v2123, 0.0
        %v2207 = vadd.f32 %v2205, %v2206
        %v2208 = vsel %vm2198, %v2125, 0.0
        %v2209 = vadd.f32 %v2207, %v2208
        %v2210 = vsel %vm2198, %v2194, 0.0
        %v2211 = vadd.f32 %v2209, %v2210
        %v2212 = vsel %vm2198, %v2196, 0.0
        %v2213 = vadd.f32 %v2211, %v2212
        %2214 = vadd.xlane.f32.xlu0 %v2213
        %v2215 = vpop.xlane.xlu0 %2214
        %v2216 = vrcp.pop 1024.0
        %v2217 = vmul.f32 %v2215, %v2216
        %v2218 = vsub.f32 %v1981, %v2217
        %v2219 = vsub.f32 %v1983, %v2217
        %v2220 = vsub.f32 %v2052, %v2217
        %v2221 = vsub.f32 %v2054, %v2217
        %v2222 = vsub.f32 %v2123, %v2217
        %v2223 = vsub.f32 %v2125, %v2217
        %v2224 = vsub.f32 %v2194, %v2217
        %v2225 = vsub.f32 %v2196, %v2217
        %v2226 = vmul.f32 %v2218, %v2218
        %v2227 = vmul.f32 %v2219, %v2219
        %v2228 = vmul.f32 %v2220, %v2220
        %v2229 = vmul.f32 %v2221, %v2221
        %v2230 = vmul.f32 %v2222, %v2222
        %v2231 = vmul.f32 %v2223, %v2223
        %v2232 = vmul.f32 %v2224, %v2224
        %v2233 = vmul.f32 %v2225, %v2225
        %v2234 = vsel %vm2198, %v2226, 0.0
        %v2235 = vsel %vm2198, %v2227, 0.0
        %v2236 = vadd.f32 %v2234, %v2235
        %v2237 = vsel %vm2198, %v2228, 0.0
        %v2238 = vadd.f32 %v2236, %v2237
        %v2239 = vsel %vm2198, %v2229, 0.0
        %v2240 = vadd.f32 %v2238, %v2239
        %v2241 = vsel %vm2198, %v2230, 0.0
        %v2242 = vadd.f32 %v2240, %v2241
        %v2243 = vsel %vm2198, %v2231, 0.0
        %v2244 = vadd.f32 %v2242, %v2243
        %v2245 = vsel %vm2198, %v2232, 0.0
        %v2246 = vadd.f32 %v2244, %v2245
        %v2247 = vsel %vm2198, %v2233, 0.0
        %v2248 = vadd.f32 %v2246, %v2247
        %2249 = vadd.xlane.f32.xlu0 %v2248
        %v2250 = vpop.xlane.xlu0 %2249
        %v2251 = vmul.f32 %v2250, %v2216
        %v2252 = vadd.f32 %v2251, 1e-05
        %v2253 = vrsqrt.pop %v2252
        %v2254 = vmul.f32 %v2218, %v2253
        %v2255 = vmul.f32 %v2219, %v2253
        %v2256 = vmul.f32 %v2220, %v2253
        %v2257 = vmul.f32 %v2221, %v2253
        %v2258 = vmul.f32 %v2222, %v2253
        %v2259 = vmul.f32 %v2223, %v2253
        %v2260 = vmul.f32 %v2224, %v2253
        %v2261 = vmul.f32 %v2225, %v2253
        %v2262 = vmax.f32 %v2254, 0.0
        %v2263 = vmax.f32 %v2255, 0.0
        %v2264 = vmax.f32 %v2256, 0.0
        %v2265 = vmax.f32 %v2257, 0.0
        %v2266 = vmax.f32 %v2258, 0.0
        %v2267 = vmax.f32 %v2259, 0.0
        %v2268 = vmax.f32 %v2260, 0.0
        %v2269 = vmax.f32 %v2261, 0.0
        %2270 = vst [vmem:[#allocation3] sm:$0xff] 0.0
        %2271 = vst [vmem:[#allocation3 + $0x8] sm:$0xff] 0.0
        %2272 = vst [vmem:[#allocation3 + $0x10] sm:$0xf] 0.0
        %v2281 = vcombine.low %v2262, %v2263
        %v2282 = vcombine.low %v2264, %v2265
        %v2284 = vunpack.c.l.s4 1983009808
        %v2285 = vunpack.c.0.s8 %v2284
        %v2286 = vlaneseq
        %v2287 = vshrl.u32 %v2286, 7
        %v2288 = vsub.s32 %v2285, %v2287
        %v2289 = vrot.slane %v2281, %v2288
        %v2291 = vunpack.c.l.s4 1983009808
        %v2292 = vunpack.c.0.s8 %v2291
        %v2293 = vlaneseq
        %v2294 = vshrl.u32 %v2293, 7
        %v2295 = vsub.s32 %v2292, %v2294
        %v2296 = vrot.slane %v2282, %v2295
        %v2297 = vcombine.low %v2289, %v2296
        %v2298 = vcombine.low %v2266, %v2267
        %v2299 = vcombine.low %v2268, %v2269
        %v2301 = vunpack.c.l.s4 1983009808
        %v2302 = vunpack.c.0.s8 %v2301
        %v2303 = vlaneseq
        %v2304 = vshrl.u32 %v2303, 7
        %v2305 = vsub.s32 %v2302, %v2304
        %v2306 = vrot.slane %v2298, %v2305
        %v2308 = vunpack.c.l.s4 1983009808
        %v2309 = vunpack.c.0.s8 %v2308
        %v2310 = vlaneseq
        %v2311 = vshrl.u32 %v2310, 7
        %v2312 = vsub.s32 %v2309, %v2311
        %v2313 = vrot.slane %v2299, %v2312
        %v2314 = vcombine.low %v2306, %v2313
        %2317 = vst [vmem:[#allocation3 + $0x2] sm:$0xff] %v2297
        %2318 = vst [vmem:[#allocation3 + $0xa] sm:$0xff] %v2314
        %v2319 = vld [vmem:[#allocation3] sm:$0xff]
        %v2320 = vld [vmem:[#allocation3 + $0x8] sm:$0xff]
        %v2321 = vld [vmem:[#allocation3 + $0x10] sm:$0x3]
        %v2322 = vld [vmem:[#allocation8] ss:$4 sm:$0xff]
        %v2324 = vlaneseq
        %v2325 = vshrl.u32 %v2324, 7
        %v2326 = vsub.s32 0, %v2325
        %v2327 = vrot.slane %v2322, %v2326
        %v2328 = vlaneseq
        %v2329 = vshrl.u32 %v2328, 7
        %v2330 = vsub.s32 1, %v2329
        %v2331 = vrot.slane %v2322, %v2330
        %v2332 = vlaneseq
        %v2333 = vshrl.u32 %v2332, 7
        %v2334 = vsub.s32 2, %v2333
        %v2335 = vrot.slane %v2322, %v2334
        %v2336 = vlaneseq
        %v2337 = vshrl.u32 %v2336, 7
        %v2338 = vsub.s32 3, %v2337
        %v2339 = vrot.slane %v2322, %v2338
        %v2340 = vlaneseq
        %v2341 = vshrl.u32 %v2340, 7
        %v2342 = vsub.s32 4, %v2341
        %v2343 = vrot.slane %v2322, %v2342
        %v2344 = vlaneseq
        %v2345 = vshrl.u32 %v2344, 7
        %v2346 = vsub.s32 5, %v2345
        %v2347 = vrot.slane %v2322, %v2346
        %v2348 = vlaneseq
        %v2349 = vshrl.u32 %v2348, 7
        %v2350 = vsub.s32 6, %v2349
        %v2351 = vrot.slane %v2322, %v2350
        %v2352 = vlaneseq
        %v2353 = vshrl.u32 %v2352, 7
        %v2354 = vsub.s32 7, %v2353
        %v2355 = vrot.slane %v2322, %v2354
        %v2356 = vcombine.low %v2327, %v2331
        %v2357 = vcombine.low %v2335, %v2339
        %v2359 = vunpack.c.l.s4 1983009808
        %v2360 = vunpack.c.0.s8 %v2359
        %v2361 = vlaneseq
        %v2362 = vshrl.u32 %v2361, 7
        %v2363 = vsub.s32 %v2360, %v2362
        %v2364 = vrot.slane %v2356, %v2363
        %v2366 = vunpack.c.l.s4 1983009808
        %v2367 = vunpack.c.0.s8 %v2366
        %v2368 = vlaneseq
        %v2369 = vshrl.u32 %v2368, 7
        %v2370 = vsub.s32 %v2367, %v2369
        %v2371 = vrot.slane %v2357, %v2370
        %v2372 = vcombine.low %v2364, %v2371
        %v2373 = vcombine.low %v2343, %v2347
        %v2374 = vcombine.low %v2351, %v2355
        %v2376 = vunpack.c.l.s4 1983009808
        %v2377 = vunpack.c.0.s8 %v2376
        %v2378 = vlaneseq
        %v2379 = vshrl.u32 %v2378, 7
        %v2380 = vsub.s32 %v2377, %v2379
        %v2381 = vrot.slane %v2373, %v2380
        %v2383 = vunpack.c.l.s4 1983009808
        %v2384 = vunpack.c.0.s8 %v2383
        %v2385 = vlaneseq
        %v2386 = vshrl.u32 %v2385, 7
        %v2387 = vsub.s32 %v2384, %v2386
        %v2388 = vrot.slane %v2374, %v2387
        %v2389 = vcombine.low %v2381, %v2388
        %2390 = vrot.lane.b32.xlu0 %v2372, 95
        %v2391 = vpop.permute.xlu0 %2390
        %2392 = vrot.lane.b32.xlu0 %v2389, 95
        %v2393 = vpop.permute.xlu0 %2392
        %v2394 = vrot.slane %v2391, 6
        %v2395 = vrot.slane %v2393, 6
        %v2396 = vsel %vm1012, %v2394, %v2391
        %v2397 = vsel %vm2198, %v2394, %v2395
        %v2398 = vsel %vm1012, %v2397, %v2393
        %v2402 = vmul.f32 %v2319, %v2396
        %v2403 = vmul.f32 %v2320, %v2398
        %v2404 = vmul.f32 %v2321, %v2395
        %v2408 = vcombine.high %v2402, %v2402
        %v2410 = vunpack.c.l.s4 1983009808
        %v2411 = vunpack.c.0.s8 %v2410
        %v2412 = vlaneseq
        %v2413 = vshrl.u32 %v2412, 7
        %v2414 = vsub.s32 %v2411, %v2413
        %v2415 = vrot.slane %v2402, %v2414
        %v2417 = vunpack.c.l.s4 1983009808
        %v2418 = vunpack.c.0.s8 %v2417
        %v2419 = vlaneseq
        %v2420 = vshrl.u32 %v2419, 7
        %v2421 = vsub.s32 %v2418, %v2420
        %v2422 = vrot.slane %v2408, %v2421
        %v2423 = vcombine.high %v2415, %v2415
        %v2424 = vcombine.high %v2422, %v2422
        %v2425 = vcombine.high %v2403, %v2403
        %v2427 = vunpack.c.l.s4 1983009808
        %v2428 = vunpack.c.0.s8 %v2427
        %v2429 = vlaneseq
        %v2430 = vshrl.u32 %v2429, 7
        %v2431 = vsub.s32 %v2428, %v2430
        %v2432 = vrot.slane %v2403, %v2431
        %v2434 = vunpack.c.l.s4 1983009808
        %v2435 = vunpack.c.0.s8 %v2434
        %v2436 = vlaneseq
        %v2437 = vshrl.u32 %v2436, 7
        %v2438 = vsub.s32 %v2435, %v2437
        %v2439 = vrot.slane %v2425, %v2438
        %v2440 = vcombine.high %v2432, %v2432
        %v2441 = vcombine.high %v2439, %v2439
        %v2443 = vunpack.c.l.s4 1983009808
        %v2444 = vunpack.c.0.s8 %v2443
        %v2445 = vlaneseq
        %v2446 = vshrl.u32 %v2445, 7
        %v2447 = vsub.s32 %v2444, %v2446
        %v2448 = vrot.slane %v2404, %v2447
        %2449 = vrot.lane.b32.xlu0 %v2415, 33
        %v2450 = vpop.permute.xlu0 %2449
        %2451 = vrot.lane.b32.xlu0 %v2423, 33
        %v2452 = vpop.permute.xlu0 %2451
        %2453 = vrot.lane.b32.xlu0 %v2422, 33
        %v2454 = vpop.permute.xlu0 %2453
        %2455 = vrot.lane.b32.xlu0 %v2424, 33
        %v2456 = vpop.permute.xlu0 %2455
        %2457 = vrot.lane.b32.xlu0 %v2432, 33
        %v2458 = vpop.permute.xlu0 %2457
        %2459 = vrot.lane.b32.xlu0 %v2440, 33
        %v2460 = vpop.permute.xlu0 %2459
        %2461 = vrot.lane.b32.xlu0 %v2439, 33
        %v2462 = vpop.permute.xlu0 %2461
        %2463 = vrot.lane.b32.xlu0 %v2441, 33
        %v2464 = vpop.permute.xlu0 %2463
        %2465 = vrot.lane.b32.xlu0 %v2448, 33
        %v2466 = vpop.permute.xlu0 %2465
        %v2467 = vsel %vm1058, %v2450, %v2452
        %v2468 = vsel %vm1058, %v2452, %v2454
        %v2469 = vsel %vm1058, %v2454, %v2456
        %v2470 = vsel %vm1058, %v2456, %v2458
        %v2471 = vsel %vm1058, %v2458, %v2460
        %v2472 = vsel %vm1058, %v2460, %v2462
        %v2473 = vsel %vm1058, %v2462, %v2464
        %v2474 = vsel %vm1058, %v2464, %v2466
        %2483 = vst [vmem:[#allocation5] sm:$0x3] %v2467
        %2484 = vst [vmem:[#allocation5 + $0x8] sm:$0x3] %v2468
        %2485 = vst [vmem:[#allocation5 + $0x10] sm:$0x3] %v2469
        %2486 = vst [vmem:[#allocation5 + $0x18] sm:$0x3] %v2470
        %2487 = vst [vmem:[#allocation5 + $0x20] sm:$0x3] %v2471
        %2488 = vst [vmem:[#allocation5 + $0x28] sm:$0x3] %v2472
        %2489 = vst [vmem:[#allocation5 + $0x30] sm:$0x3] %v2473
        %2490 = vst [vmem:[#allocation5 + $0x38] sm:$0x3] %v2474
        %v2491 = vld [vmem:[#allocation3] sm:$0xff]
        %v2492 = vld [vmem:[#allocation3 + $0x8] sm:$0xff]
        %v2493 = vld [vmem:[#allocation3 + $0x10] sm:$0x3]
        %v2497 = vcombine.low %v2491, %v2491
        %v2499 = vunpack.c.l.s4 1983009808
        %v2500 = vunpack.c.0.s8 %v2499
        %v2501 = vlaneseq
        %v2502 = vshrl.u32 %v2501, 7
        %v2503 = vsub.s32 %v2500, %v2502
        %v2504 = vrot.slane %v2497, %v2503
        %v2506 = vunpack.c.l.s4 1983009808
        %v2507 = vunpack.c.0.s8 %v2506
        %v2508 = vlaneseq
        %v2509 = vshrl.u32 %v2508, 7
        %v2510 = vsub.s32 %v2507, %v2509
        %v2511 = vrot.slane %v2491, %v2510
        %v2512 = vcombine.high %v2504, %v2504
        %v2513 = vcombine.high %v2511, %v2511
        %v2514 = vcombine.low %v2492, %v2492
        %v2516 = vunpack.c.l.s4 1983009808
        %v2517 = vunpack.c.0.s8 %v2516
        %v2518 = vlaneseq
        %v2519 = vshrl.u32 %v2518, 7
        %v2520 = vsub.s32 %v2517, %v2519
        %v2521 = vrot.slane %v2514, %v2520
        %v2523 = vunpack.c.l.s4 1983009808
        %v2524 = vunpack.c.0.s8 %v2523
        %v2525 = vlaneseq
        %v2526 = vshrl.u32 %v2525, 7
        %v2527 = vsub.s32 %v2524, %v2526
        %v2528 = vrot.slane %v2492, %v2527
        %v2529 = vcombine.high %v2521, %v2521
        %v2530 = vcombine.high %v2528, %v2528
        %v2531 = vcombine.low %v2493, %v2493
        %v2533 = vunpack.c.l.s4 1983009808
        %v2534 = vunpack.c.0.s8 %v2533
        %v2535 = vlaneseq
        %v2536 = vshrl.u32 %v2535, 7
        %v2537 = vsub.s32 %v2534, %v2536
        %v2538 = vrot.slane %v2531, %v2537
        %2539 = vrot.lane.b32.xlu0 %v2504, 32
        %v2540 = vpop.permute.xlu0 %2539
        %2541 = vrot.lane.b32.xlu0 %v2512, 32
        %v2542 = vpop.permute.xlu0 %2541
        %2543 = vrot.lane.b32.xlu0 %v2511, 32
        %v2544 = vpop.permute.xlu0 %2543
        %2545 = vrot.lane.b32.xlu0 %v2513, 32
        %v2546 = vpop.permute.xlu0 %2545
        %2547 = vrot.lane.b32.xlu0 %v2521, 32
        %v2548 = vpop.permute.xlu0 %2547
        %2549 = vrot.lane.b32.xlu0 %v2529, 32
        %v2550 = vpop.permute.xlu0 %2549
        %2551 = vrot.lane.b32.xlu0 %v2528, 32
        %v2552 = vpop.permute.xlu0 %2551
        %2553 = vrot.lane.b32.xlu0 %v2530, 32
        %v2554 = vpop.permute.xlu0 %2553
        %2555 = vrot.lane.b32.xlu0 %v2538, 32
        %v2556 = vpop.permute.xlu0 %2555
        %v2557 = vsel %vm1116, %v2540, %v2542
        %v2558 = vsel %vm1116, %v2542, %v2544
        %v2559 = vsel %vm1116, %v2544, %v2546
        %v2560 = vsel %vm1116, %v2546, %v2548
        %v2561 = vsel %vm1116, %v2548, %v2550
        %v2562 = vsel %vm1116, %v2550, %v2552
        %v2563 = vsel %vm1116, %v2552, %v2554
        %v2564 = vsel %vm1116, %v2554, %v2556
        %2573 = vst [vmem:[#allocation5] sm:$0xc] %v2557
        %2574 = vst [vmem:[#allocation5 + $0x8] sm:$0xc] %v2558
        %2575 = vst [vmem:[#allocation5 + $0x10] sm:$0xc] %v2559
        %2576 = vst [vmem:[#allocation5 + $0x18] sm:$0xc] %v2560
        %2577 = vst [vmem:[#allocation5 + $0x20] sm:$0xc] %v2561
        %2578 = vst [vmem:[#allocation5 + $0x28] sm:$0xc] %v2562
        %2579 = vst [vmem:[#allocation5 + $0x30] sm:$0xc] %v2563
        %2580 = vst [vmem:[#allocation5 + $0x38] sm:$0xc] %v2564
        %v2581 = vld [vmem:[#allocation3] sm:$0xff]
        %v2582 = vld [vmem:[#allocation3 + $0x8] sm:$0xff]
        %v2583 = vld [vmem:[#allocation3 + $0x10] sm:$0x3]
        %v2584 = vld [vmem:[%s1146] ss:$4 sm:$0xff]
        %v2586 = vlaneseq
        %v2587 = vshrl.u32 %v2586, 7
        %v2588 = vsub.s32 0, %v2587
        %v2589 = vrot.slane %v2584, %v2588
        %v2590 = vlaneseq
        %v2591 = vshrl.u32 %v2590, 7
        %v2592 = vsub.s32 1, %v2591
        %v2593 = vrot.slane %v2584, %v2592
        %v2594 = vlaneseq
        %v2595 = vshrl.u32 %v2594, 7
        %v2596 = vsub.s32 2, %v2595
        %v2597 = vrot.slane %v2584, %v2596
        %v2598 = vlaneseq
        %v2599 = vshrl.u32 %v2598, 7
        %v2600 = vsub.s32 3, %v2599
        %v2601 = vrot.slane %v2584, %v2600
        %v2602 = vlaneseq
        %v2603 = vshrl.u32 %v2602, 7
        %v2604 = vsub.s32 4, %v2603
        %v2605 = vrot.slane %v2584, %v2604
        %v2606 = vlaneseq
        %v2607 = vshrl.u32 %v2606, 7
        %v2608 = vsub.s32 5, %v2607
        %v2609 = vrot.slane %v2584, %v2608
        %v2610 = vlaneseq
        %v2611 = vshrl.u32 %v2610, 7
        %v2612 = vsub.s32 6, %v2611
        %v2613 = vrot.slane %v2584, %v2612
        %v2614 = vlaneseq
        %v2615 = vshrl.u32 %v2614, 7
        %v2616 = vsub.s32 7, %v2615
        %v2617 = vrot.slane %v2584, %v2616
        %v2618 = vcombine.low %v2589, %v2593
        %v2619 = vcombine.low %v2597, %v2601
        %v2621 = vunpack.c.l.s4 1983009808
        %v2622 = vunpack.c.0.s8 %v2621
        %v2623 = vlaneseq
        %v2624 = vshrl.u32 %v2623, 7
        %v2625 = vsub.s32 %v2622, %v2624
        %v2626 = vrot.slane %v2618, %v2625
        %v2628 = vunpack.c.l.s4 1983009808
        %v2629 = vunpack.c.0.s8 %v2628
        %v2630 = vlaneseq
        %v2631 = vshrl.u32 %v2630, 7
        %v2632 = vsub.s32 %v2629, %v2631
        %v2633 = vrot.slane %v2619, %v2632
        %v2634 = vcombine.low %v2626, %v2633
        %v2635 = vcombine.low %v2605, %v2609
        %v2636 = vcombine.low %v2613, %v2617
        %v2638 = vunpack.c.l.s4 1983009808
        %v2639 = vunpack.c.0.s8 %v2638
        %v2640 = vlaneseq
        %v2641 = vshrl.u32 %v2640, 7
        %v2642 = vsub.s32 %v2639, %v2641
        %v2643 = vrot.slane %v2635, %v2642
        %v2645 = vunpack.c.l.s4 1983009808
        %v2646 = vunpack.c.0.s8 %v2645
        %v2647 = vlaneseq
        %v2648 = vshrl.u32 %v2647, 7
        %v2649 = vsub.s32 %v2646, %v2648
        %v2650 = vrot.slane %v2636, %v2649
        %v2651 = vcombine.low %v2643, %v2650
        %2652 = vrot.lane.b32.xlu0 %v2634, 97
        %v2653 = vpop.permute.xlu0 %2652
        %2654 = vrot.lane.b32.xlu0 %v2651, 97
        %v2655 = vpop.permute.xlu0 %2654
        %v2656 = vrot.slane %v2653, 6
        %v2657 = vrot.slane %v2655, 6
        %v2658 = vsel %vm1197, %v2656, %v2653
        %v2659 = vsel %vm2198, %v2656, %v2657
        %v2660 = vsel %vm1197, %v2659, %v2655
        %v2664 = vmul.f32 %v2581, %v2658
        %v2665 = vmul.f32 %v2582, %v2660
        %v2666 = vmul.f32 %v2583, %v2657
        %v2670 = vcombine.high %v2664, %v2664
        %v2672 = vunpack.c.l.s4 1983009808
        %v2673 = vunpack.c.0.s8 %v2672
        %v2674 = vlaneseq
        %v2675 = vshrl.u32 %v2674, 7
        %v2676 = vsub.s32 %v2673, %v2675
        %v2677 = vrot.slane %v2664, %v2676
        %v2679 = vunpack.c.l.s4 1983009808
        %v2680 = vunpack.c.0.s8 %v2679
        %v2681 = vlaneseq
        %v2682 = vshrl.u32 %v2681, 7
        %v2683 = vsub.s32 %v2680, %v2682
        %v2684 = vrot.slane %v2670, %v2683
        %v2685 = vcombine.low %v2677, %v2677
        %v2686 = vcombine.low %v2684, %v2684
        %v2687 = vcombine.high %v2665, %v2665
        %v2689 = vunpack.c.l.s4 1983009808
        %v2690 = vunpack.c.0.s8 %v2689
        %v2691 = vlaneseq
        %v2692 = vshrl.u32 %v2691, 7
        %v2693 = vsub.s32 %v2690, %v2692
        %v2694 = vrot.slane %v2665, %v2693
        %v2696 = vunpack.c.l.s4 1983009808
        %v2697 = vunpack.c.0.s8 %v2696
        %v2698 = vlaneseq
        %v2699 = vshrl.u32 %v2698, 7
        %v2700 = vsub.s32 %v2697, %v2699
        %v2701 = vrot.slane %v2687, %v2700
        %v2702 = vcombine.low %v2694, %v2694
        %v2703 = vcombine.low %v2701, %v2701
        %v2705 = vunpack.c.l.s4 1983009808
        %v2706 = vunpack.c.0.s8 %v2705
        %v2707 = vlaneseq
        %v2708 = vshrl.u32 %v2707, 7
        %v2709 = vsub.s32 %v2706, %v2708
        %v2710 = vrot.slane %v2666, %v2709
        %v2711 = vcombine.low %v2710, %v2710
        %2712 = vrot.lane.b32.xlu0 %v2685, 31
        %v2713 = vpop.permute.xlu0 %2712
        %2714 = vrot.lane.b32.xlu0 %v2677, 31
        %v2715 = vpop.permute.xlu0 %2714
        %2716 = vrot.lane.b32.xlu0 %v2686, 31
        %v2717 = vpop.permute.xlu0 %2716
        %2718 = vrot.lane.b32.xlu0 %v2684, 31
        %v2719 = vpop.permute.xlu0 %2718
        %2720 = vrot.lane.b32.xlu0 %v2702, 31
        %v2721 = vpop.permute.xlu0 %2720
        %2722 = vrot.lane.b32.xlu0 %v2694, 31
        %v2723 = vpop.permute.xlu0 %2722
        %2724 = vrot.lane.b32.xlu0 %v2703, 31
        %v2725 = vpop.permute.xlu0 %2724
        %2726 = vrot.lane.b32.xlu0 %v2701, 31
        %v2727 = vpop.permute.xlu0 %2726
        %2728 = vrot.lane.b32.xlu0 %v2711, 31
        %v2729 = vpop.permute.xlu0 %2728
        %v2730 = vsel %vm1242, %v2713, %v2715
        %v2731 = vsel %vm1242, %v2715, %v2717
        %v2732 = vsel %vm1242, %v2717, %v2719
        %v2733 = vsel %vm1242, %v2719, %v2721
        %v2734 = vsel %vm1242, %v2721, %v2723
        %v2735 = vsel %vm1242, %v2723, %v2725
        %v2736 = vsel %vm1242, %v2725, %v2727
        %v2737 = vsel %vm1242, %v2727, %v2729
        %2746 = vst [vmem:[#allocation5] sm:$0x30] %v2730
        %2747 = vst [vmem:[#allocation5 + $0x8] sm:$0x30] %v2731
        %2748 = vst [vmem:[#allocation5 + $0x10] sm:$0x30] %v2732
        %2749 = vst [vmem:[#allocation5 + $0x18] sm:$0x30] %v2733
        %2750 = vst [vmem:[#allocation5 + $0x20] sm:$0x30] %v2734
        %2751 = vst [vmem:[#allocation5 + $0x28] sm:$0x30] %v2735
        %2752 = vst [vmem:[#allocation5 + $0x30] sm:$0x30] %v2736
        %2753 = vst [vmem:[#allocation5 + $0x38] sm:$0x30] %v2737
        %v2754 = vld [vmem:[#allocation3] sm:$0xff]
        %v2755 = vld [vmem:[#allocation3 + $0x8] sm:$0xff]
        %v2756 = vld [vmem:[#allocation3 + $0x10] sm:$0x3]
        %v2757 = vld [vmem:[#allocation8] ss:$4 sm:$0xff]
        %v2759 = vlaneseq
        %v2760 = vshrl.u32 %v2759, 7
        %v2761 = vsub.s32 0, %v2760
        %v2762 = vrot.slane %v2757, %v2761
        %v2763 = vlaneseq
        %v2764 = vshrl.u32 %v2763, 7
        %v2765 = vsub.s32 1, %v2764
        %v2766 = vrot.slane %v2757, %v2765
        %v2767 = vlaneseq
        %v2768 = vshrl.u32 %v2767, 7
        %v2769 = vsub.s32 2, %v2768
        %v2770 = vrot.slane %v2757, %v2769
        %v2771 = vlaneseq
        %v2772 = vshrl.u32 %v2771, 7
        %v2773 = vsub.s32 3, %v2772
        %v2774 = vrot.slane %v2757, %v2773
        %v2775 = vlaneseq
        %v2776 = vshrl.u32 %v2775, 7
        %v2777 = vsub.s32 4, %v2776
        %v2778 = vrot.slane %v2757, %v2777
        %v2779 = vlaneseq
        %v2780 = vshrl.u32 %v2779, 7
        %v2781 = vsub.s32 5, %v2780
        %v2782 = vrot.slane %v2757, %v2781
        %v2783 = vlaneseq
        %v2784 = vshrl.u32 %v2783, 7
        %v2785 = vsub.s32 6, %v2784
        %v2786 = vrot.slane %v2757, %v2785
        %v2787 = vlaneseq
        %v2788 = vshrl.u32 %v2787, 7
        %v2789 = vsub.s32 7, %v2788
        %v2790 = vrot.slane %v2757, %v2789
        %v2791 = vcombine.low %v2762, %v2766
        %v2792 = vcombine.low %v2770, %v2774
        %v2794 = vunpack.c.l.s4 1983009808
        %v2795 = vunpack.c.0.s8 %v2794
        %v2796 = vlaneseq
        %v2797 = vshrl.u32 %v2796, 7
        %v2798 = vsub.s32 %v2795, %v2797
        %v2799 = vrot.slane %v2791, %v2798
        %v2801 = vunpack.c.l.s4 1983009808
        %v2802 = vunpack.c.0.s8 %v2801
        %v2803 = vlaneseq
        %v2804 = vshrl.u32 %v2803, 7
        %v2805 = vsub.s32 %v2802, %v2804
        %v2806 = vrot.slane %v2792, %v2805
        %v2807 = vcombine.low %v2799, %v2806
        %v2808 = vcombine.low %v2778, %v2782
        %v2809 = vcombine.low %v2786, %v2790
        %v2811 = vunpack.c.l.s4 1983009808
        %v2812 = vunpack.c.0.s8 %v2811
        %v2813 = vlaneseq
        %v2814 = vshrl.u32 %v2813, 7
        %v2815 = vsub.s32 %v2812, %v2814
        %v2816 = vrot.slane %v2808, %v2815
        %v2818 = vunpack.c.l.s4 1983009808
        %v2819 = vunpack.c.0.s8 %v2818
        %v2820 = vlaneseq
        %v2821 = vshrl.u32 %v2820, 7
        %v2822 = vsub.s32 %v2819, %v2821
        %v2823 = vrot.slane %v2809, %v2822
        %v2824 = vcombine.low %v2816, %v2823
        %2825 = vrot.lane.b32.xlu0 %v2807, 127
        %v2826 = vpop.permute.xlu0 %2825
        %2827 = vrot.lane.b32.xlu0 %v2824, 127
        %v2828 = vpop.permute.xlu0 %2827
        %v2829 = vrot.slane %v2826, 6
        %v2830 = vrot.slane %v2828, 6
        %v2831 = vsel %vm1322, %v2829, %v2826
        %v2832 = vsel %vm2198, %v2829, %v2830
        %v2833 = vsel %vm1322, %v2832, %v2828
        %v2837 = vmul.f32 %v2754, %v2831
        %v2838 = vmul.f32 %v2755, %v2833
        %v2839 = vmul.f32 %v2756, %v2830
        %v2843 = vcombine.low %v2837, %v2837
        %v2845 = vunpack.c.l.s4 1983009808
        %v2846 = vunpack.c.0.s8 %v2845
        %v2847 = vlaneseq
        %v2848 = vshrl.u32 %v2847, 7
        %v2849 = vsub.s32 %v2846, %v2848
        %v2850 = vrot.slane %v2843, %v2849
        %v2852 = vunpack.c.l.s4 1983009808
        %v2853 = vunpack.c.0.s8 %v2852
        %v2854 = vlaneseq
        %v2855 = vshrl.u32 %v2854, 7
        %v2856 = vsub.s32 %v2853, %v2855
        %v2857 = vrot.slane %v2837, %v2856
        %v2858 = vcombine.low %v2850, %v2850
        %v2859 = vcombine.low %v2857, %v2857
        %v2860 = vcombine.low %v2838, %v2838
        %v2862 = vunpack.c.l.s4 1983009808
        %v2863 = vunpack.c.0.s8 %v2862
        %v2864 = vlaneseq
        %v2865 = vshrl.u32 %v2864, 7
        %v2866 = vsub.s32 %v2863, %v2865
        %v2867 = vrot.slane %v2860, %v2866
        %v2869 = vunpack.c.l.s4 1983009808
        %v2870 = vunpack.c.0.s8 %v2869
        %v2871 = vlaneseq
        %v2872 = vshrl.u32 %v2871, 7
        %v2873 = vsub.s32 %v2870, %v2872
        %v2874 = vrot.slane %v2838, %v2873
        %v2875 = vcombine.low %v2867, %v2867
        %v2876 = vcombine.low %v2874, %v2874
        %v2877 = vcombine.low %v2839, %v2839
        %v2879 = vunpack.c.l.s4 1983009808
        %v2880 = vunpack.c.0.s8 %v2879
        %v2881 = vlaneseq
        %v2882 = vshrl.u32 %v2881, 7
        %v2883 = vsub.s32 %v2880, %v2882
        %v2884 = vrot.slane %v2877, %v2883
        %v2885 = vcombine.low %v2884, %v2884
        %2886 = vrot.lane.b32.xlu0 %v2858, 1
        %v2887 = vpop.permute.xlu0 %2886
        %2888 = vrot.lane.b32.xlu0 %v2850, 1
        %v2889 = vpop.permute.xlu0 %2888
        %2890 = vrot.lane.b32.xlu0 %v2859, 1
        %v2891 = vpop.permute.xlu0 %2890
        %2892 = vrot.lane.b32.xlu0 %v2857, 1
        %v2893 = vpop.permute.xlu0 %2892
        %2894 = vrot.lane.b32.xlu0 %v2875, 1
        %v2895 = vpop.permute.xlu0 %2894
        %2896 = vrot.lane.b32.xlu0 %v2867, 1
        %v2897 = vpop.permute.xlu0 %2896
        %2898 = vrot.lane.b32.xlu0 %v2876, 1
        %v2899 = vpop.permute.xlu0 %2898
        %2900 = vrot.lane.b32.xlu0 %v2874, 1
        %v2901 = vpop.permute.xlu0 %2900
        %2902 = vrot.lane.b32.xlu0 %v2885, 1
        %v2903 = vpop.permute.xlu0 %2902
        %v2904 = vsel %vm1368, %v2887, %v2889
        %v2905 = vsel %vm1368, %v2889, %v2891
        %v2906 = vsel %vm1368, %v2891, %v2893
        %v2907 = vsel %vm1368, %v2893, %v2895
        %v2908 = vsel %vm1368, %v2895, %v2897
        %v2909 = vsel %vm1368, %v2897, %v2899
        %v2910 = vsel %vm1368, %v2899, %v2901
        %v2911 = vsel %vm1368, %v2901, %v2903
        %2920 = vst [vmem:[#allocation5] sm:$0xc0] %v2904
        %2921 = vst [vmem:[#allocation5 + $0x8] sm:$0xc0] %v2905
        %2922 = vst [vmem:[#allocation5 + $0x10] sm:$0xc0] %v2906
        %2923 = vst [vmem:[#allocation5 + $0x18] sm:$0xc0] %v2907
        %2924 = vst [vmem:[#allocation5 + $0x20] sm:$0xc0] %v2908
        %2925 = vst [vmem:[#allocation5 + $0x28] sm:$0xc0] %v2909
        %2926 = vst [vmem:[#allocation5 + $0x30] sm:$0xc0] %v2910
        %2927 = vst [vmem:[#allocation5 + $0x38] sm:$0xc0] %v2911
        %v2928 = vld [vmem:[#allocation3 + $0x2] sm:$0xff]
        %v2929 = vld [vmem:[#allocation3 + $0xa] sm:$0xff]
        %v2932 = vcombine.high %v2928, %v2928
        %v2934 = vunpack.c.l.s4 1983009808
        %v2935 = vunpack.c.0.s8 %v2934
        %v2936 = vlaneseq
        %v2937 = vshrl.u32 %v2936, 7
        %v2938 = vsub.s32 %v2935, %v2937
        %v2939 = vrot.slane %v2928, %v2938
        %v2941 = vunpack.c.l.s4 1983009808
        %v2942 = vunpack.c.0.s8 %v2941
        %v2943 = vlaneseq
        %v2944 = vshrl.u32 %v2943, 7
        %v2945 = vsub.s32 %v2942, %v2944
        %v2946 = vrot.slane %v2932, %v2945
        %v2947 = vcombine.high %v2939, %v2939
        %v2948 = vcombine.high %v2946, %v2946
        %v2949 = vcombine.high %v2929, %v2929
        %v2951 = vunpack.c.l.s4 1983009808
        %v2952 = vunpack.c.0.s8 %v2951
        %v2953 = vlaneseq
        %v2954 = vshrl.u32 %v2953, 7
        %v2955 = vsub.s32 %v2952, %v2954
        %v2956 = vrot.slane %v2929, %v2955
        %v2958 = vunpack.c.l.s4 1983009808
        %v2959 = vunpack.c.0.s8 %v2958
        %v2960 = vlaneseq
        %v2961 = vshrl.u32 %v2960, 7
        %v2962 = vsub.s32 %v2959, %v2961
        %v2963 = vrot.slane %v2949, %v2962
        %v2964 = vcombine.high %v2956, %v2956
        %v2965 = vcombine.high %v2963, %v2963
        %2974 = vst [vmem:[#allocation5 + $0x40] sm:$0x3] %v2939
        %2975 = vst [vmem:[#allocation5 + $0x48] sm:$0x3] %v2947
        %2976 = vst [vmem:[#allocation5 + $0x50] sm:$0x3] %v2946
        %2977 = vst [vmem:[#allocation5 + $0x58] sm:$0x3] %v2948
        %2978 = vst [vmem:[#allocation5 + $0x60] sm:$0x3] %v2956
        %2979 = vst [vmem:[#allocation5 + $0x68] sm:$0x3] %v2964
        %2980 = vst [vmem:[#allocation5 + $0x70] sm:$0x3] %v2963
        %2981 = vst [vmem:[#allocation5 + $0x78] sm:$0x3] %v2965
        %v2982 = vld [vmem:[#allocation3 + $0x2] sm:$0xff]
        %v2983 = vld [vmem:[#allocation3 + $0xa] sm:$0xff]
        %v2984 = vld [vmem:[#allocation3 + $0x12] sm:$0x3]
        %v2985 = vld [vmem:[%s1146] ss:$4 sm:$0xff]
        %v2987 = vlaneseq
        %v2988 = vshrl.u32 %v2987, 7
        %v2989 = vsub.s32 0, %v2988
        %v2990 = vrot.slane %v2985, %v2989
        %v2991 = vlaneseq
        %v2992 = vshrl.u32 %v2991, 7
        %v2993 = vsub.s32 1, %v2992
        %v2994 = vrot.slane %v2985, %v2993
        %v2995 = vlaneseq
        %v2996 = vshrl.u32 %v2995, 7
        %v2997 = vsub.s32 2, %v2996
        %v2998 = vrot.slane %v2985, %v2997
        %v2999 = vlaneseq
        %v3000 = vshrl.u32 %v2999, 7
        %v3001 = vsub.s32 3, %v3000
        %v3002 = vrot.slane %v2985, %v3001
        %v3003 = vlaneseq
        %v3004 = vshrl.u32 %v3003, 7
        %v3005 = vsub.s32 4, %v3004
        %v3006 = vrot.slane %v2985, %v3005
        %v3007 = vlaneseq
        %v3008 = vshrl.u32 %v3007, 7
        %v3009 = vsub.s32 5, %v3008
        %v3010 = vrot.slane %v2985, %v3009
        %v3011 = vlaneseq
        %v3012 = vshrl.u32 %v3011, 7
        %v3013 = vsub.s32 6, %v3012
        %v3014 = vrot.slane %v2985, %v3013
        %v3015 = vlaneseq
        %v3016 = vshrl.u32 %v3015, 7
        %v3017 = vsub.s32 7, %v3016
        %v3018 = vrot.slane %v2985, %v3017
        %v3019 = vcombine.low %v2990, %v2994
        %v3020 = vcombine.low %v2998, %v3002
        %v3022 = vunpack.c.l.s4 1983009808
        %v3023 = vunpack.c.0.s8 %v3022
        %v3024 = vlaneseq
        %v3025 = vshrl.u32 %v3024, 7
        %v3026 = vsub.s32 %v3023, %v3025
        %v3027 = vrot.slane %v3019, %v3026
        %v3029 = vunpack.c.l.s4 1983009808
        %v3030 = vunpack.c.0.s8 %v3029
        %v3031 = vlaneseq
        %v3032 = vshrl.u32 %v3031, 7
        %v3033 = vsub.s32 %v3030, %v3032
        %v3034 = vrot.slane %v3020, %v3033
        %v3035 = vcombine.low %v3027, %v3034
        %v3036 = vcombine.low %v3006, %v3010
        %v3037 = vcombine.low %v3014, %v3018
        %v3039 = vunpack.c.l.s4 1983009808
        %v3040 = vunpack.c.0.s8 %v3039
        %v3041 = vlaneseq
        %v3042 = vshrl.u32 %v3041, 7
        %v3043 = vsub.s32 %v3040, %v3042
        %v3044 = vrot.slane %v3036, %v3043
        %v3046 = vunpack.c.l.s4 1983009808
        %v3047 = vunpack.c.0.s8 %v3046
        %v3048 = vlaneseq
        %v3049 = vshrl.u32 %v3048, 7
        %v3050 = vsub.s32 %v3047, %v3049
        %v3051 = vrot.slane %v3037, %v3050
        %v3052 = vcombine.low %v3044, %v3051
        %3053 = vrot.lane.b32.xlu0 %v3035, 1
        %v3054 = vpop.permute.xlu0 %3053
        %3055 = vrot.lane.b32.xlu0 %v3052, 1
        %v3056 = vpop.permute.xlu0 %3055
        %v3057 = vrot.slane %v3054, 6
        %v3058 = vrot.slane %v3056, 6
        %v3059 = vsel %vm1368, %v3057, %v3054
        %v3060 = vsel %vm2198, %v3057, %v3058
        %v3061 = vsel %vm1368, %v3060, %v3056
        %v3065 = vmul.f32 %v2982, %v3059
        %v3066 = vmul.f32 %v2983, %v3061
        %v3067 = vmul.f32 %v2984, %v3058
        %v3071 = vcombine.low %v3065, %v3065
        %v3073 = vunpack.c.l.s4 1983009808
        %v3074 = vunpack.c.0.s8 %v3073
        %v3075 = vlaneseq
        %v3076 = vshrl.u32 %v3075, 7
        %v3077 = vsub.s32 %v3074, %v3076
        %v3078 = vrot.slane %v3071, %v3077
        %v3080 = vunpack.c.l.s4 1983009808
        %v3081 = vunpack.c.0.s8 %v3080
        %v3082 = vlaneseq
        %v3083 = vshrl.u32 %v3082, 7
        %v3084 = vsub.s32 %v3081, %v3083
        %v3085 = vrot.slane %v3065, %v3084
        %v3086 = vcombine.high %v3078, %v3078
        %v3087 = vcombine.high %v3085, %v3085
        %v3088 = vcombine.low %v3066, %v3066
        %v3090 = vunpack.c.l.s4 1983009808
        %v3091 = vunpack.c.0.s8 %v3090
        %v3092 = vlaneseq
        %v3093 = vshrl.u32 %v3092, 7
        %v3094 = vsub.s32 %v3091, %v3093
        %v3095 = vrot.slane %v3088, %v3094
        %v3097 = vunpack.c.l.s4 1983009808
        %v3098 = vunpack.c.0.s8 %v3097
        %v3099 = vlaneseq
        %v3100 = vshrl.u32 %v3099, 7
        %v3101 = vsub.s32 %v3098, %v3100
        %v3102 = vrot.slane %v3066, %v3101
        %v3103 = vcombine.high %v3095, %v3095
        %v3104 = vcombine.high %v3102, %v3102
        %v3105 = vcombine.low %v3067, %v3067
        %v3107 = vunpack.c.l.s4 1983009808
        %v3108 = vunpack.c.0.s8 %v3107
        %v3109 = vlaneseq
        %v3110 = vshrl.u32 %v3109, 7
        %v3111 = vsub.s32 %v3108, %v3110
        %v3112 = vrot.slane %v3105, %v3111
        %3113 = vrot.lane.b32.xlu0 %v3078, 127
        %v3114 = vpop.permute.xlu0 %3113
        %3115 = vrot.lane.b32.xlu0 %v3086, 127
        %v3116 = vpop.permute.xlu0 %3115
        %3117 = vrot.lane.b32.xlu0 %v3085, 127
        %v3118 = vpop.permute.xlu0 %3117
        %3119 = vrot.lane.b32.xlu0 %v3087, 127
        %v3120 = vpop.permute.xlu0 %3119
        %3121 = vrot.lane.b32.xlu0 %v3095, 127
        %v3122 = vpop.permute.xlu0 %3121
        %3123 = vrot.lane.b32.xlu0 %v3103, 127
        %v3124 = vpop.permute.xlu0 %3123
        %3125 = vrot.lane.b32.xlu0 %v3102, 127
        %v3126 = vpop.permute.xlu0 %3125
        %3127 = vrot.lane.b32.xlu0 %v3104, 127
        %v3128 = vpop.permute.xlu0 %3127
        %3129 = vrot.lane.b32.xlu0 %v3112, 127
        %v3130 = vpop.permute.xlu0 %3129
        %v3131 = vsel %vm1322, %v3114, %v3116
        %v3132 = vsel %vm1322, %v3116, %v3118
        %v3133 = vsel %vm1322, %v3118, %v3120
        %v3134 = vsel %vm1322, %v3120, %v3122
        %v3135 = vsel %vm1322, %v3122, %v3124
        %v3136 = vsel %vm1322, %v3124, %v3126
        %v3137 = vsel %vm1322, %v3126, %v3128
        %v3138 = vsel %vm1322, %v3128, %v3130
        %3147 = vst [vmem:[#allocation5 + $0x40] sm:$0xc] %v3131
        %3148 = vst [vmem:[#allocation5 + $0x48] sm:$0xc] %v3132
        %3149 = vst [vmem:[#allocation5 + $0x50] sm:$0xc] %v3133
        %3150 = vst [vmem:[#allocation5 + $0x58] sm:$0xc] %v3134
        %3151 = vst [vmem:[#allocation5 + $0x60] sm:$0xc] %v3135
        %3152 = vst [vmem:[#allocation5 + $0x68] sm:$0xc] %v3136
        %3153 = vst [vmem:[#allocation5 + $0x70] sm:$0xc] %v3137
        %3154 = vst [vmem:[#allocation5 + $0x78] sm:$0xc] %v3138
        %v3155 = vld [vmem:[#allocation3 + $0x2] sm:$0xff]
        %v3156 = vld [vmem:[#allocation3 + $0xa] sm:$0xff]
        %v3157 = vld [vmem:[#allocation3 + $0x12] sm:$0x3]
        %v3158 = vld [vmem:[#allocation8] ss:$4 sm:$0xff]
        %v3160 = vlaneseq
        %v3161 = vshrl.u32 %v3160, 7
        %v3162 = vsub.s32 0, %v3161
        %v3163 = vrot.slane %v3158, %v3162
        %v3164 = vlaneseq
        %v3165 = vshrl.u32 %v3164, 7
        %v3166 = vsub.s32 1, %v3165
        %v3167 = vrot.slane %v3158, %v3166
        %v3168 = vlaneseq
        %v3169 = vshrl.u32 %v3168, 7
        %v3170 = vsub.s32 2, %v3169
        %v3171 = vrot.slane %v3158, %v3170
        %v3172 = vlaneseq
        %v3173 = vshrl.u32 %v3172, 7
        %v3174 = vsub.s32 3, %v3173
        %v3175 = vrot.slane %v3158, %v3174
        %v3176 = vlaneseq
        %v3177 = vshrl.u32 %v3176, 7
        %v3178 = vsub.s32 4, %v3177
        %v3179 = vrot.slane %v3158, %v3178
        %v3180 = vlaneseq
        %v3181 = vshrl.u32 %v3180, 7
        %v3182 = vsub.s32 5, %v3181
        %v3183 = vrot.slane %v3158, %v3182
        %v3184 = vlaneseq
        %v3185 = vshrl.u32 %v3184, 7
        %v3186 = vsub.s32 6, %v3185
        %v3187 = vrot.slane %v3158, %v3186
        %v3188 = vlaneseq
        %v3189 = vshrl.u32 %v3188, 7
        %v3190 = vsub.s32 7, %v3189
        %v3191 = vrot.slane %v3158, %v3190
        %v3192 = vcombine.low %v3163, %v3167
        %v3193 = vcombine.low %v3171, %v3175
        %v3195 = vunpack.c.l.s4 1983009808
        %v3196 = vunpack.c.0.s8 %v3195
        %v3197 = vlaneseq
        %v3198 = vshrl.u32 %v3197, 7
        %v3199 = vsub.s32 %v3196, %v3198
        %v3200 = vrot.slane %v3192, %v3199
        %v3202 = vunpack.c.l.s4 1983009808
        %v3203 = vunpack.c.0.s8 %v3202
        %v3204 = vlaneseq
        %v3205 = vshrl.u32 %v3204, 7
        %v3206 = vsub.s32 %v3203, %v3205
        %v3207 = vrot.slane %v3193, %v3206
        %v3208 = vcombine.low %v3200, %v3207
        %v3209 = vcombine.low %v3179, %v3183
        %v3210 = vcombine.low %v3187, %v3191
        %v3212 = vunpack.c.l.s4 1983009808
        %v3213 = vunpack.c.0.s8 %v3212
        %v3214 = vlaneseq
        %v3215 = vshrl.u32 %v3214, 7
        %v3216 = vsub.s32 %v3213, %v3215
        %v3217 = vrot.slane %v3209, %v3216
        %v3219 = vunpack.c.l.s4 1983009808
        %v3220 = vunpack.c.0.s8 %v3219
        %v3221 = vlaneseq
        %v3222 = vshrl.u32 %v3221, 7
        %v3223 = vsub.s32 %v3220, %v3222
        %v3224 = vrot.slane %v3210, %v3223
        %v3225 = vcombine.low %v3217, %v3224
        %3226 = vrot.lane.b32.xlu0 %v3208, 31
        %v3227 = vpop.permute.xlu0 %3226
        %3228 = vrot.lane.b32.xlu0 %v3225, 31
        %v3229 = vpop.permute.xlu0 %3228
        %v3230 = vrot.slane %v3227, 6
        %v3231 = vrot.slane %v3229, 6
        %v3232 = vsel %vm1242, %v3230, %v3227
        %v3233 = vsel %vm2198, %v3230, %v3231
        %v3234 = vsel %vm1242, %v3233, %v3229
        %v3238 = vmul.f32 %v3155, %v3232
        %v3239 = vmul.f32 %v3156, %v3234
        %v3240 = vmul.f32 %v3157, %v3231
        %v3244 = vcombine.high %v3238, %v3238
        %v3246 = vunpack.c.l.s4 1983009808
        %v3247 = vunpack.c.0.s8 %v3246
        %v3248 = vlaneseq
        %v3249 = vshrl.u32 %v3248, 7
        %v3250 = vsub.s32 %v3247, %v3249
        %v3251 = vrot.slane %v3238, %v3250
        %v3253 = vunpack.c.l.s4 1983009808
        %v3254 = vunpack.c.0.s8 %v3253
        %v3255 = vlaneseq
        %v3256 = vshrl.u32 %v3255, 7
        %v3257 = vsub.s32 %v3254, %v3256
        %v3258 = vrot.slane %v3244, %v3257
        %v3259 = vcombine.low %v3251, %v3251
        %v3260 = vcombine.low %v3258, %v3258
        %v3261 = vcombine.high %v3239, %v3239
        %v3263 = vunpack.c.l.s4 1983009808
        %v3264 = vunpack.c.0.s8 %v3263
        %v3265 = vlaneseq
        %v3266 = vshrl.u32 %v3265, 7
        %v3267 = vsub.s32 %v3264, %v3266
        %v3268 = vrot.slane %v3239, %v3267
        %v3270 = vunpack.c.l.s4 1983009808
        %v3271 = vunpack.c.0.s8 %v3270
        %v3272 = vlaneseq
        %v3273 = vshrl.u32 %v3272, 7
        %v3274 = vsub.s32 %v3271, %v3273
        %v3275 = vrot.slane %v3261, %v3274
        %v3276 = vcombine.low %v3268, %v3268
        %v3277 = vcombine.low %v3275, %v3275
        %v3279 = vunpack.c.l.s4 1983009808
        %v3280 = vunpack.c.0.s8 %v3279
        %v3281 = vlaneseq
        %v3282 = vshrl.u32 %v3281, 7
        %v3283 = vsub.s32 %v3280, %v3282
        %v3284 = vrot.slane %v3240, %v3283
        %v3285 = vcombine.low %v3284, %v3284
        %3286 = vrot.lane.b32.xlu0 %v3259, 97
        %v3287 = vpop.permute.xlu0 %3286
        %3288 = vrot.lane.b32.xlu0 %v3251, 97
        %v3289 = vpop.permute.xlu0 %3288
        %3290 = vrot.lane.b32.xlu0 %v3260, 97
        %v3291 = vpop.permute.xlu0 %3290
        %3292 = vrot.lane.b32.xlu0 %v3258, 97
        %v3293 = vpop.permute.xlu0 %3292
        %3294 = vrot.lane.b32.xlu0 %v3276, 97
        %v3295 = vpop.permute.xlu0 %3294
        %3296 = vrot.lane.b32.xlu0 %v3268, 97
        %v3297 = vpop.permute.xlu0 %3296
        %3298 = vrot.lane.b32.xlu0 %v3277, 97
        %v3299 = vpop.permute.xlu0 %3298
        %3300 = vrot.lane.b32.xlu0 %v3275, 97
        %v3301 = vpop.permute.xlu0 %3300
        %3302 = vrot.lane.b32.xlu0 %v3285, 97
        %v3303 = vpop.permute.xlu0 %3302
        %v3304 = vsel %vm1197, %v3287, %v3289
        %v3305 = vsel %vm1197, %v3289, %v3291
        %v3306 = vsel %vm1197, %v3291, %v3293
        %v3307 = vsel %vm1197, %v3293, %v3295
        %v3308 = vsel %vm1197, %v3295, %v3297
        %v3309 = vsel %vm1197, %v3297, %v3299
        %v3310 = vsel %vm1197, %v3299, %v3301
        %v3311 = vsel %vm1197, %v3301, %v3303
        %3320 = vst [vmem:[#allocation5 + $0x40] sm:$0x30] %v3304
        %3321 = vst [vmem:[#allocation5 + $0x48] sm:$0x30] %v3305
        %3322 = vst [vmem:[#allocation5 + $0x50] sm:$0x30] %v3306
        %3323 = vst [vmem:[#allocation5 + $0x58] sm:$0x30] %v3307
        %3324 = vst [vmem:[#allocation5 + $0x60] sm:$0x30] %v3308
        %3325 = vst [vmem:[#allocation5 + $0x68] sm:$0x30] %v3309
        %3326 = vst [vmem:[#allocation5 + $0x70] sm:$0x30] %v3310
        %3327 = vst [vmem:[#allocation5 + $0x78] sm:$0x30] %v3311
        %v3328 = vld [vmem:[#allocation3 + $0x2] sm:$0xff]
        %v3329 = vld [vmem:[#allocation3 + $0xa] sm:$0xff]
        %v3330 = vld [vmem:[#allocation3 + $0x12] sm:$0x3]
        %v3334 = vcombine.low %v3328, %v3328
        %v3336 = vunpack.c.l.s4 1983009808
        %v3337 = vunpack.c.0.s8 %v3336
        %v3338 = vlaneseq
        %v3339 = vshrl.u32 %v3338, 7
        %v3340 = vsub.s32 %v3337, %v3339
        %v3341 = vrot.slane %v3334, %v3340
        %v3343 = vunpack.c.l.s4 1983009808
        %v3344 = vunpack.c.0.s8 %v3343
        %v3345 = vlaneseq
        %v3346 = vshrl.u32 %v3345, 7
        %v3347 = vsub.s32 %v3344, %v3346
        %v3348 = vrot.slane %v3328, %v3347
        %v3349 = vcombine.low %v3341, %v3341
        %v3350 = vcombine.low %v3348, %v3348
        %v3351 = vcombine.low %v3329, %v3329
        %v3353 = vunpack.c.l.s4 1983009808
        %v3354 = vunpack.c.0.s8 %v3353
        %v3355 = vlaneseq
        %v3356 = vshrl.u32 %v3355, 7
        %v3357 = vsub.s32 %v3354, %v3356
        %v3358 = vrot.slane %v3351, %v3357
        %v3360 = vunpack.c.l.s4 1983009808
        %v3361 = vunpack.c.0.s8 %v3360
        %v3362 = vlaneseq
        %v3363 = vshrl.u32 %v3362, 7
        %v3364 = vsub.s32 %v3361, %v3363
        %v3365 = vrot.slane %v3329, %v3364
        %v3366 = vcombine.low %v3358, %v3358
        %v3367 = vcombine.low %v3365, %v3365
        %v3368 = vcombine.low %v3330, %v3330
        %v3370 = vunpack.c.l.s4 1983009808
        %v3371 = vunpack.c.0.s8 %v3370
        %v3372 = vlaneseq
        %v3373 = vshrl.u32 %v3372, 7
        %v3374 = vsub.s32 %v3371, %v3373
        %v3375 = vrot.slane %v3368, %v3374
        %v3376 = vcombine.low %v3375, %v3375
        %3377 = vrot.lane.b32.xlu0 %v3349, 96
        %v3378 = vpop.permute.xlu0 %3377
        %3379 = vrot.lane.b32.xlu0 %v3341, 96
        %v3380 = vpop.permute.xlu0 %3379
        %3381 = vrot.lane.b32.xlu0 %v3350, 96
        %v3382 = vpop.permute.xlu0 %3381
        %3383 = vrot.lane.b32.xlu0 %v3348, 96
        %v3384 = vpop.permute.xlu0 %3383
        %3385 = vrot.lane.b32.xlu0 %v3366, 96
        %v3386 = vpop.permute.xlu0 %3385
        %3387 = vrot.lane.b32.xlu0 %v3358, 96
        %v3388 = vpop.permute.xlu0 %3387
        %3389 = vrot.lane.b32.xlu0 %v3367, 96
        %v3390 = vpop.permute.xlu0 %3389
        %3391 = vrot.lane.b32.xlu0 %v3365, 96
        %v3392 = vpop.permute.xlu0 %3391
        %3393 = vrot.lane.b32.xlu0 %v3376, 96
        %v3394 = vpop.permute.xlu0 %3393
        %v3395 = vsel %vm1697, %v3378, %v3380
        %v3396 = vsel %vm1697, %v3380, %v3382
        %v3397 = vsel %vm1697, %v3382, %v3384
        %v3398 = vsel %vm1697, %v3384, %v3386
        %v3399 = vsel %vm1697, %v3386, %v3388
        %v3400 = vsel %vm1697, %v3388, %v3390
        %v3401 = vsel %vm1697, %v3390, %v3392
        %v3402 = vsel %vm1697, %v3392, %v3394
        %3411 = vst [vmem:[#allocation5 + $0x40] sm:$0xc0] %v3395
        %3412 = vst [vmem:[#allocation5 + $0x48] sm:$0xc0] %v3396
        %3413 = vst [vmem:[#allocation5 + $0x50] sm:$0xc0] %v3397
        %3414 = vst [vmem:[#allocation5 + $0x58] sm:$0xc0] %v3398
        %3415 = vst [vmem:[#allocation5 + $0x60] sm:$0xc0] %v3399
        %3416 = vst [vmem:[#allocation5 + $0x68] sm:$0xc0] %v3400
        %3417 = vst [vmem:[#allocation5 + $0x70] sm:$0xc0] %v3401
        %3418 = vst [vmem:[#allocation5 + $0x78] sm:$0xc0] %v3402
        %v3419 = vld [vmem:[#allocation3 + $0x2] sm:$0xff]
        %v3420 = vld [vmem:[#allocation3 + $0xa] sm:$0xff]
        %v3421 = vld [vmem:[#allocation3 + $0x12] sm:$0x3]
        %v3422 = vld [vmem:[%s1146] ss:$4 sm:$0xff]
        %v3424 = vlaneseq
        %v3425 = vshrl.u32 %v3424, 7
        %v3426 = vsub.s32 0, %v3425
        %v3427 = vrot.slane %v3422, %v3426
        %v3428 = vlaneseq
        %v3429 = vshrl.u32 %v3428, 7
        %v3430 = vsub.s32 1, %v3429
        %v3431 = vrot.slane %v3422, %v3430
        %v3432 = vlaneseq
        %v3433 = vshrl.u32 %v3432, 7
        %v3434 = vsub.s32 2, %v3433
        %v3435 = vrot.slane %v3422, %v3434
        %v3436 = vlaneseq
        %v3437 = vshrl.u32 %v3436, 7
        %v3438 = vsub.s32 3, %v3437
        %v3439 = vrot.slane %v3422, %v3438
        %v3440 = vlaneseq
        %v3441 = vshrl.u32 %v3440, 7
        %v3442 = vsub.s32 4, %v3441
        %v3443 = vrot.slane %v3422, %v3442
        %v3444 = vlaneseq
        %v3445 = vshrl.u32 %v3444, 7
        %v3446 = vsub.s32 5, %v3445
        %v3447 = vrot.slane %v3422, %v3446
        %v3448 = vlaneseq
        %v3449 = vshrl.u32 %v3448, 7
        %v3450 = vsub.s32 6, %v3449
        %v3451 = vrot.slane %v3422, %v3450
        %v3452 = vlaneseq
        %v3453 = vshrl.u32 %v3452, 7
        %v3454 = vsub.s32 7, %v3453
        %v3455 = vrot.slane %v3422, %v3454
        %v3456 = vcombine.low %v3427, %v3431
        %v3457 = vcombine.low %v3435, %v3439
        %v3459 = vunpack.c.l.s4 1983009808
        %v3460 = vunpack.c.0.s8 %v3459
        %v3461 = vlaneseq
        %v3462 = vshrl.u32 %v3461, 7
        %v3463 = vsub.s32 %v3460, %v3462
        %v3464 = vrot.slane %v3456, %v3463
        %v3466 = vunpack.c.l.s4 1983009808
        %v3467 = vunpack.c.0.s8 %v3466
        %v3468 = vlaneseq
        %v3469 = vshrl.u32 %v3468, 7
        %v3470 = vsub.s32 %v3467, %v3469
        %v3471 = vrot.slane %v3457, %v3470
        %v3472 = vcombine.low %v3464, %v3471
        %v3473 = vcombine.low %v3443, %v3447
        %v3474 = vcombine.low %v3451, %v3455
        %v3476 = vunpack.c.l.s4 1983009808
        %v3477 = vunpack.c.0.s8 %v3476
        %v3478 = vlaneseq
        %v3479 = vshrl.u32 %v3478, 7
        %v3480 = vsub.s32 %v3477, %v3479
        %v3481 = vrot.slane %v3473, %v3480
        %v3483 = vunpack.c.l.s4 1983009808
        %v3484 = vunpack.c.0.s8 %v3483
        %v3485 = vlaneseq
        %v3486 = vshrl.u32 %v3485, 7
        %v3487 = vsub.s32 %v3484, %v3486
        %v3488 = vrot.slane %v3474, %v3487
        %v3489 = vcombine.low %v3481, %v3488
        %3490 = vrot.lane.b32.xlu0 %v3472, 33
        %v3491 = vpop.permute.xlu0 %3490
        %3492 = vrot.lane.b32.xlu0 %v3489, 33
        %v3493 = vpop.permute.xlu0 %3492
        %v3494 = vrot.slane %v3491, 6
        %v3495 = vrot.slane %v3493, 6
        %v3496 = vsel %vm1058, %v3494, %v3491
        %v3497 = vsel %vm2198, %v3494, %v3495
        %v3498 = vsel %vm1058, %v3497, %v3493
        %v3502 = vmul.f32 %v3419, %v3496
        %v3503 = vmul.f32 %v3420, %v3498
        %v3504 = vmul.f32 %v3421, %v3495
        %v3508 = vcombine.high %v3502, %v3502
        %v3510 = vunpack.c.l.s4 1983009808
        %v3511 = vunpack.c.0.s8 %v3510
        %v3512 = vlaneseq
        %v3513 = vshrl.u32 %v3512, 7
        %v3514 = vsub.s32 %v3511, %v3513
        %v3515 = vrot.slane %v3502, %v3514
        %v3517 = vunpack.c.l.s4 1983009808
        %v3518 = vunpack.c.0.s8 %v3517
        %v3519 = vlaneseq
        %v3520 = vshrl.u32 %v3519, 7
        %v3521 = vsub.s32 %v3518, %v3520
        %v3522 = vrot.slane %v3508, %v3521
        %v3523 = vcombine.high %v3515, %v3515
        %v3524 = vcombine.high %v3522, %v3522
        %v3525 = vcombine.high %v3503, %v3503
        %v3527 = vunpack.c.l.s4 1983009808
        %v3528 = vunpack.c.0.s8 %v3527
        %v3529 = vlaneseq
        %v3530 = vshrl.u32 %v3529, 7
        %v3531 = vsub.s32 %v3528, %v3530
        %v3532 = vrot.slane %v3503, %v3531
        %v3534 = vunpack.c.l.s4 1983009808
        %v3535 = vunpack.c.0.s8 %v3534
        %v3536 = vlaneseq
        %v3537 = vshrl.u32 %v3536, 7
        %v3538 = vsub.s32 %v3535, %v3537
        %v3539 = vrot.slane %v3525, %v3538
        %v3540 = vcombine.high %v3532, %v3532
        %v3541 = vcombine.high %v3539, %v3539
        %v3543 = vunpack.c.l.s4 1983009808
        %v3544 = vunpack.c.0.s8 %v3543
        %v3545 = vlaneseq
        %v3546 = vshrl.u32 %v3545, 7
        %v3547 = vsub.s32 %v3544, %v3546
        %v3548 = vrot.slane %v3504, %v3547
        %3549 = vrot.lane.b32.xlu0 %v3515, 95
        %v3550 = vpop.permute.xlu0 %3549
        %3551 = vrot.lane.b32.xlu0 %v3523, 95
        %v3552 = vpop.permute.xlu0 %3551
        %3553 = vrot.lane.b32.xlu0 %v3522, 95
        %v3554 = vpop.permute.xlu0 %3553
        %3555 = vrot.lane.b32.xlu0 %v3524, 95
        %v3556 = vpop.permute.xlu0 %3555
        %3557 = vrot.lane.b32.xlu0 %v3532, 95
        %v3558 = vpop.permute.xlu0 %3557
        %3559 = vrot.lane.b32.xlu0 %v3540, 95
        %v3560 = vpop.permute.xlu0 %3559
        %3561 = vrot.lane.b32.xlu0 %v3539, 95
        %v3562 = vpop.permute.xlu0 %3561
        %3563 = vrot.lane.b32.xlu0 %v3541, 95
        %v3564 = vpop.permute.xlu0 %3563
        %3565 = vrot.lane.b32.xlu0 %v3548, 95
        %v3566 = vpop.permute.xlu0 %3565
        %v3567 = vsel %vm1012, %v3550, %v3552
        %v3568 = vsel %vm1012, %v3552, %v3554
        %v3569 = vsel %vm1012, %v3554, %v3556
        %v3570 = vsel %vm1012, %v3556, %v3558
        %v3571 = vsel %vm1012, %v3558, %v3560
        %v3572 = vsel %vm1012, %v3560, %v3562
        %v3573 = vsel %vm1012, %v3562, %v3564
        %v3574 = vsel %vm1012, %v3564, %v3566
        %3583 = vst [vmem:[#allocation5 + $0x80] sm:$0x3] %v3567
        %3584 = vst [vmem:[#allocation5 + $0x88] sm:$0x3] %v3568
        %3585 = vst [vmem:[#allocation5 + $0x90] sm:$0x3] %v3569
        %3586 = vst [vmem:[#allocation5 + $0x98] sm:$0x3] %v3570
        %3587 = vst [vmem:[#allocation5 + $0xa0] sm:$0x3] %v3571
        %3588 = vst [vmem:[#allocation5 + $0xa8] sm:$0x3] %v3572
        %3589 = vst [vmem:[#allocation5 + $0xb0] sm:$0x3] %v3573
        %3590 = vst [vmem:[#allocation5 + $0xb8] sm:$0x3] %v3574
        %v3591 = vld [vmem:[%s4] sm:$0xff]
        %v3592 = vld [vmem:[#allocation5] sm:$0xff]
        %v3593 = vld [vmem:[#allocation5 + $0x8] sm:$0xff]
        %v3594 = vld [vmem:[#allocation5 + $0x10] sm:$0xff]
        %v3595 = vld [vmem:[#allocation5 + $0x18] sm:$0xff]
        %v3596 = vld [vmem:[#allocation5 + $0x20] sm:$0xff]
        %v3597 = vld [vmem:[#allocation5 + $0x28] sm:$0xff]
        %v3598 = vld [vmem:[#allocation5 + $0x30] sm:$0xff]
        %v3599 = vld [vmem:[#allocation5 + $0x38] sm:$0xff]
        %v3600 = vld [vmem:[#allocation5 + $0x40] sm:$0xff]
        %v3601 = vld [vmem:[#allocation5 + $0x48] sm:$0xff]
        %v3602 = vld [vmem:[#allocation5 + $0x50] sm:$0xff]
        %v3603 = vld [vmem:[#allocation5 + $0x58] sm:$0xff]
        %v3604 = vld [vmem:[#allocation5 + $0x60] sm:$0xff]
        %v3605 = vld [vmem:[#allocation5 + $0x68] sm:$0xff]
        %v3606 = vld [vmem:[#allocation5 + $0x70] sm:$0xff]
        %v3607 = vld [vmem:[#allocation5 + $0x78] sm:$0xff]
        %v3608 = vld [vmem:[#allocation5 + $0x80] sm:$0x3]
        %v3609 = vld [vmem:[#allocation5 + $0x88] sm:$0x3]
        %v3610 = vld [vmem:[#allocation5 + $0x90] sm:$0x3]
        %v3611 = vld [vmem:[#allocation5 + $0x98] sm:$0x3]
        %v3612 = vld [vmem:[#allocation5 + $0xa0] sm:$0x3]
        %v3613 = vld [vmem:[#allocation5 + $0xa8] sm:$0x3]
        %v3614 = vld [vmem:[#allocation5 + $0xb0] sm:$0x3]
        %v3615 = vld [vmem:[#allocation5 + $0xb8] sm:$0x3]
        %vm3616 = vcmask 146432
        %v3618 = vsel %vm3616, %v3591, 0
        %v3621 = vsel %vm2198, %v3608, 0
        %v3624 = vsel %vm2198, %v3609, 0
        %v3627 = vsel %vm2198, %v3610, 0
        %v3630 = vsel %vm2198, %v3611, 0
        %v3633 = vsel %vm2198, %v3612, 0
        %v3636 = vsel %vm2198, %v3613, 0
        %v3639 = vsel %vm2198, %v3614, 0
        %v3642 = vsel %vm2198, %v3615, 0
        %3644 = vmatprep.subr.mxu0 %v3593
        %3645 = vmatpush1.msra.mxu0 %v3592
        %3646 = vmatprep.subr.mxu0 %v3601
        %3647 = vmatpush1.msra.mxu0 %v3600
        %3648 = vmatprep.subr.mxu0 %v3624
        %3649 = vmatpush1.msra.mxu0 %v3621
        %3650 = vmatprep.subr.mxu0 0.0
        %3651 = vmatpush1.msra.mxu0 0.0
        %3652 = vmatprep.subr.mxu0 0.0
        %3653 = vmatpush1.msra.mxu0 0.0
        %3654 = vmatprep.subr.mxu0 0.0
        %3655 = vmatpush1.msra.mxu0 0.0
        %3656 = vmatprep.subr.mxu0 0.0
        %3657 = vmatpush1.msra.mxu0 0.0
        %3658 = vmatprep.subr.mxu0 0.0
        %3659 = vmatpush1.msra.mxu0 0.0
        %3660 = vmatprep.subr.mxu0 0.0
        %3661 = vmatpush1.msra.mxu0 0.0
        %3662 = vmatprep.subr.mxu0 0.0
        %3663 = vmatpush1.msra.mxu0 0.0
        %3664 = vmatprep.subr.mxu0 0.0
        %3665 = vmatpush1.msra.mxu0 0.0
        %3666 = vmatprep.subr.mxu0 0.0
        %3667 = vmatpush1.msra.mxu0 0.0
        %3668 = vmatprep.subr.mxu0 0.0
        %3669 = vmatpush1.msra.mxu0 0.0
        %3670 = vmatprep.subr.mxu0 0.0
        %3671 = vmatpush1.msra.mxu0 0.0
        %3672 = vmatprep.subr.mxu0 0.0
        %3673 = vmatpush1.msra.mxu0 0.0
        %3674 = vmatprep.subr.mxu0 0.0
        %3675 = vmatpush1.msra.mxu0 0.0
        %3676 = vmatprep.subr.mxu0 0.0
        %3677 = vmatpush1.msra.mxu0 0.0
        %3678 = vmatprep.subr.mxu0 0.0
        %3679 = vmatpush1.msra.mxu0 0.0
        %3680 = vmatprep.subr.mxu0 0.0
        %3681 = vmatpush1.msra.mxu0 0.0
        %3682 = vmatprep.subr.mxu0 0.0
        %3683 = vmatpush1.msra.mxu0 0.0
        %3684 = vmatprep.subr.mxu0 0.0
        %3685 = vmatpush1.msra.mxu0 0.0
        %3686 = vmatprep.subr.mxu0 0.0
        %3687 = vmatpush1.msra.mxu0 0.0
        %3688 = vmatprep.subr.mxu0 0.0
        %3689 = vmatpush1.msra.mxu0 0.0
        %3690 = vmatprep.subr.mxu0 0.0
        %3691 = vmatpush1.msra.mxu0 0.0
        %3692 = vmatprep.subr.mxu0 0.0
        %3693 = vmatpush1.msra.mxu0 0.0
        %3694 = vmatprep.subr.mxu0 0.0
        %3695 = vmatpush1.msra.mxu0 0.0
        %3696 = vmatprep.subr.mxu0 0.0
        %3697 = vmatpush1.msra.mxu0 0.0
        %3698 = vmatprep.subr.mxu0 0.0
        %3699 = vmatpush1.msra.mxu0 0.0
        %3700 = vmatprep.subr.mxu0 0.0
        %3701 = vmatpush1.msra.mxu0 0.0
        %3702 = vmatprep.subr.mxu0 0.0
        %3703 = vmatpush1.msra.mxu0 0.0
        %3704 = vmatprep.subr.mxu0 0.0
        %3705 = vmatpush1.msra.mxu0 0.0
        %3706 = vmatprep.subr.mxu0 0.0
        %3707 = vmatpush1.msra.mxu0 0.0
        %3708 = vmatprep.mubr.f32.mxu0 0.0
        %3709 = vmatmul.mubr.f32.gmra.mrb[0].mxu0 %v3618
        %v3710 = vpop.f32.mrb[0].mxu0
        %v3711 = vadd.f32 0.0, %v3710
        %v3712 = vpop.f32.mrb[0].mxu0
        %v3713 = vadd.f32 0.0, %v3712
        %3714 = vdwg.mxu0
        %3715 = vmatprep.subr.mxu0 %v3595
        %3716 = vmatpush1.msra.mxu0 %v3594
        %3717 = vmatprep.subr.mxu0 %v3603
        %3718 = vmatpush1.msra.mxu0 %v3602
        %3719 = vmatprep.subr.mxu0 %v3630
        %3720 = vmatpush1.msra.mxu0 %v3627
        %3721 = vmatprep.subr.mxu0 0.0
        %3722 = vmatpush1.msra.mxu0 0.0
        %3723 = vmatprep.subr.mxu0 0.0
        %3724 = vmatpush1.msra.mxu0 0.0
        %3725 = vmatprep.subr.mxu0 0.0
        %3726 = vmatpush1.msra.mxu0 0.0
        %3727 = vmatprep.subr.mxu0 0.0
        %3728 = vmatpush1.msra.mxu0 0.0
        %3729 = vmatprep.subr.mxu0 0.0
        %3730 = vmatpush1.msra.mxu0 0.0
        %3731 = vmatprep.subr.mxu0 0.0
        %3732 = vmatpush1.msra.mxu0 0.0
        %3733 = vmatprep.subr.mxu0 0.0
        %3734 = vmatpush1.msra.mxu0 0.0
        %3735 = vmatprep.subr.mxu0 0.0
        %3736 = vmatpush1.msra.mxu0 0.0
        %3737 = vmatprep.subr.mxu0 0.0
        %3738 = vmatpush1.msra.mxu0 0.0
        %3739 = vmatprep.subr.mxu0 0.0
        %3740 = vmatpush1.msra.mxu0 0.0
        %3741 = vmatprep.subr.mxu0 0.0
        %3742 = vmatpush1.msra.mxu0 0.0
        %3743 = vmatprep.subr.mxu0 0.0
        %3744 = vmatpush1.msra.mxu0 0.0
        %3745 = vmatprep.subr.mxu0 0.0
        %3746 = vmatpush1.msra.mxu0 0.0
        %3747 = vmatprep.subr.mxu0 0.0
        %3748 = vmatpush1.msra.mxu0 0.0
        %3749 = vmatprep.subr.mxu0 0.0
        %3750 = vmatpush1.msra.mxu0 0.0
        %3751 = vmatprep.subr.mxu0 0.0
        %3752 = vmatpush1.msra.mxu0 0.0
        %3753 = vmatprep.subr.mxu0 0.0
        %3754 = vmatpush1.msra.mxu0 0.0
        %3755 = vmatprep.subr.mxu0 0.0
        %3756 = vmatpush1.msra.mxu0 0.0
        %3757 = vmatprep.subr.mxu0 0.0
        %3758 = vmatpush1.msra.mxu0 0.0
        %3759 = vmatprep.subr.mxu0 0.0
        %3760 = vmatpush1.msra.mxu0 0.0
        %3761 = vmatprep.subr.mxu0 0.0
        %3762 = vmatpush1.msra.mxu0 0.0
        %3763 = vmatprep.subr.mxu0 0.0
        %3764 = vmatpush1.msra.mxu0 0.0
        %3765 = vmatprep.subr.mxu0 0.0
        %3766 = vmatpush1.msra.mxu0 0.0
        %3767 = vmatprep.subr.mxu0 0.0
        %3768 = vmatpush1.msra.mxu0 0.0
        %3769 = vmatprep.subr.mxu0 0.0
        %3770 = vmatpush1.msra.mxu0 0.0
        %3771 = vmatprep.subr.mxu0 0.0
        %3772 = vmatpush1.msra.mxu0 0.0
        %3773 = vmatprep.subr.mxu0 0.0
        %3774 = vmatpush1.msra.mxu0 0.0
        %3775 = vmatprep.subr.mxu0 0.0
        %3776 = vmatpush1.msra.mxu0 0.0
        %3777 = vmatprep.subr.mxu0 0.0
        %3778 = vmatpush1.msra.mxu0 0.0
        %3779 = vmatprep.mubr.f32.mxu0 0.0
        %3780 = vmatmul.mubr.f32.gmra.mrb[0].mxu0 %v3618
        %v3781 = vpop.f32.mrb[0].mxu0
        %v3782 = vadd.f32 0.0, %v3781
        %v3783 = vpop.f32.mrb[0].mxu0
        %v3784 = vadd.f32 0.0, %v3783
        %3785 = vdwg.mxu0
        %3786 = vmatprep.subr.mxu0 %v3597
        %3787 = vmatpush1.msra.mxu0 %v3596
        %3788 = vmatprep.subr.mxu0 %v3605
        %3789 = vmatpush1.msra.mxu0 %v3604
        %3790 = vmatprep.subr.mxu0 %v3636
        %3791 = vmatpush1.msra.mxu0 %v3633
        %3792 = vmatprep.subr.mxu0 0.0
        %3793 = vmatpush1.msra.mxu0 0.0
        %3794 = vmatprep.subr.mxu0 0.0
        %3795 = vmatpush1.msra.mxu0 0.0
        %3796 = vmatprep.subr.mxu0 0.0
        %3797 = vmatpush1.msra.mxu0 0.0
        %3798 = vmatprep.subr.mxu0 0.0
        %3799 = vmatpush1.msra.mxu0 0.0
        %3800 = vmatprep.subr.mxu0 0.0
        %3801 = vmatpush1.msra.mxu0 0.0
        %3802 = vmatprep.subr.mxu0 0.0
        %3803 = vmatpush1.msra.mxu0 0.0
        %3804 = vmatprep.subr.mxu0 0.0
        %3805 = vmatpush1.msra.mxu0 0.0
        %3806 = vmatprep.subr.mxu0 0.0
        %3807 = vmatpush1.msra.mxu0 0.0
        %3808 = vmatprep.subr.mxu0 0.0
        %3809 = vmatpush1.msra.mxu0 0.0
        %3810 = vmatprep.subr.mxu0 0.0
        %3811 = vmatpush1.msra.mxu0 0.0
        %3812 = vmatprep.subr.mxu0 0.0
        %3813 = vmatpush1.msra.mxu0 0.0
        %3814 = vmatprep.subr.mxu0 0.0
        %3815 = vmatpush1.msra.mxu0 0.0
        %3816 = vmatprep.subr.mxu0 0.0
        %3817 = vmatpush1.msra.mxu0 0.0
        %3818 = vmatprep.subr.mxu0 0.0
        %3819 = vmatpush1.msra.mxu0 0.0
        %3820 = vmatprep.subr.mxu0 0.0
        %3821 = vmatpush1.msra.mxu0 0.0
        %3822 = vmatprep.subr.mxu0 0.0
        %3823 = vmatpush1.msra.mxu0 0.0
        %3824 = vmatprep.subr.mxu0 0.0
        %3825 = vmatpush1.msra.mxu0 0.0
        %3826 = vmatprep.subr.mxu0 0.0
        %3827 = vmatpush1.msra.mxu0 0.0
        %3828 = vmatprep.subr.mxu0 0.0
        %3829 = vmatpush1.msra.mxu0 0.0
        %3830 = vmatprep.subr.mxu0 0.0
        %3831 = vmatpush1.msra.mxu0 0.0
        %3832 = vmatprep.subr.mxu0 0.0
        %3833 = vmatpush1.msra.mxu0 0.0
        %3834 = vmatprep.subr.mxu0 0.0
        %3835 = vmatpush1.msra.mxu0 0.0
        %3836 = vmatprep.subr.mxu0 0.0
        %3837 = vmatpush1.msra.mxu0 0.0
        %3838 = vmatprep.subr.mxu0 0.0
        %3839 = vmatpush1.msra.mxu0 0.0
        %3840 = vmatprep.subr.mxu0 0.0
        %3841 = vmatpush1.msra.mxu0 0.0
        %3842 = vmatprep.subr.mxu0 0.0
        %3843 = vmatpush1.msra.mxu0 0.0
        %3844 = vmatprep.subr.mxu0 0.0
        %3845 = vmatpush1.msra.mxu0 0.0
        %3846 = vmatprep.subr.mxu0 0.0
        %3847 = vmatpush1.msra.mxu0 0.0
        %3848 = vmatprep.subr.mxu0 0.0
        %3849 = vmatpush1.msra.mxu0 0.0
        %3850 = vmatprep.mubr.f32.mxu0 0.0
        %3851 = vmatmul.mubr.f32.gmra.mrb[0].mxu0 %v3618
        %v3852 = vpop.f32.mrb[0].mxu0
        %v3853 = vadd.f32 0.0, %v3852
        %v3854 = vpop.f32.mrb[0].mxu0
        %v3855 = vadd.f32 0.0, %v3854
        %3856 = vdwg.mxu0
        %3857 = vmatprep.subr.mxu0 %v3599
        %3858 = vmatpush1.msra.mxu0 %v3598
        %3859 = vmatprep.subr.mxu0 %v3607
        %3860 = vmatpush1.msra.mxu0 %v3606
        %3861 = vmatprep.subr.mxu0 %v3642
        %3862 = vmatpush1.msra.mxu0 %v3639
        %3863 = vmatprep.subr.mxu0 0.0
        %3864 = vmatpush1.msra.mxu0 0.0
        %3865 = vmatprep.subr.mxu0 0.0
        %3866 = vmatpush1.msra.mxu0 0.0
        %3867 = vmatprep.subr.mxu0 0.0
        %3868 = vmatpush1.msra.mxu0 0.0
        %3869 = vmatprep.subr.mxu0 0.0
        %3870 = vmatpush1.msra.mxu0 0.0
        %3871 = vmatprep.subr.mxu0 0.0
        %3872 = vmatpush1.msra.mxu0 0.0
        %3873 = vmatprep.subr.mxu0 0.0
        %3874 = vmatpush1.msra.mxu0 0.0
        %3875 = vmatprep.subr.mxu0 0.0
        %3876 = vmatpush1.msra.mxu0 0.0
        %3877 = vmatprep.subr.mxu0 0.0
        %3878 = vmatpush1.msra.mxu0 0.0
        %3879 = vmatprep.subr.mxu0 0.0
        %3880 = vmatpush1.msra.mxu0 0.0
        %3881 = vmatprep.subr.mxu0 0.0
        %3882 = vmatpush1.msra.mxu0 0.0
        %3883 = vmatprep.subr.mxu0 0.0
        %3884 = vmatpush1.msra.mxu0 0.0
        %3885 = vmatprep.subr.mxu0 0.0
        %3886 = vmatpush1.msra.mxu0 0.0
        %3887 = vmatprep.subr.mxu0 0.0
        %3888 = vmatpush1.msra.mxu0 0.0
        %3889 = vmatprep.subr.mxu0 0.0
        %3890 = vmatpush1.msra.mxu0 0.0
        %3891 = vmatprep.subr.mxu0 0.0
        %3892 = vmatpush1.msra.mxu0 0.0
        %3893 = vmatprep.subr.mxu0 0.0
        %3894 = vmatpush1.msra.mxu0 0.0
        %3895 = vmatprep.subr.mxu0 0.0
        %3896 = vmatpush1.msra.mxu0 0.0
        %3897 = vmatprep.subr.mxu0 0.0
        %3898 = vmatpush1.msra.mxu0 0.0
        %3899 = vmatprep.subr.mxu0 0.0
        %3900 = vmatpush1.msra.mxu0 0.0
        %3901 = vmatprep.subr.mxu0 0.0
        %3902 = vmatpush1.msra.mxu0 0.0
        %3903 = vmatprep.subr.mxu0 0.0
        %3904 = vmatpush1.msra.mxu0 0.0
        %3905 = vmatprep.subr.mxu0 0.0
        %3906 = vmatpush1.msra.mxu0 0.0
        %3907 = vmatprep.subr.mxu0 0.0
        %3908 = vmatpush1.msra.mxu0 0.0
        %3909 = vmatprep.subr.mxu0 0.0
        %3910 = vmatpush1.msra.mxu0 0.0
        %3911 = vmatprep.subr.mxu0 0.0
        %3912 = vmatpush1.msra.mxu0 0.0
        %3913 = vmatprep.subr.mxu0 0.0
        %3914 = vmatpush1.msra.mxu0 0.0
        %3915 = vmatprep.subr.mxu0 0.0
        %3916 = vmatpush1.msra.mxu0 0.0
        %3917 = vmatprep.subr.mxu0 0.0
        %3918 = vmatpush1.msra.mxu0 0.0
        %3919 = vmatprep.subr.mxu0 0.0
        %3920 = vmatpush1.msra.mxu0 0.0
        %3921 = vmatprep.mubr.f32.mxu0 0.0
        %3922 = vmatmul.mubr.f32.gmra.mrb[0].mxu0 %v3618
        %v3923 = vpop.f32.mrb[0].mxu0
        %v3924 = vadd.f32 0.0, %v3923
        %v3925 = vpop.f32.mrb[0].mxu0
        %v3926 = vadd.f32 0.0, %v3925
        %3927 = vdwg.mxu0
        %v3928 = vadd.f32 %v3711, %v3713
        %v3929 = vadd.f32 %v3928, %v3782
        %v3930 = vadd.f32 %v3929, %v3784
        %v3931 = vadd.f32 %v3930, %v3853
        %v3932 = vadd.f32 %v3931, %v3855
        %v3933 = vadd.f32 %v3932, %v3924
        %v3934 = vadd.f32 %v3933, %v3926
        %3935 = vadd.xlane.f32.xlu0 %v3934
        %v3936 = vpop.xlane.xlu0 %3935
        %v3937 = vmul.f32 %v3936, %v2216
        %v3938 = vsub.f32 %v3711, %v3937
        %v3939 = vsub.f32 %v3713, %v3937
        %v3940 = vsub.f32 %v3782, %v3937
        %v3941 = vsub.f32 %v3784, %v3937
        %v3942 = vsub.f32 %v3853, %v3937
        %v3943 = vsub.f32 %v3855, %v3937
        %v3944 = vsub.f32 %v3924, %v3937
        %v3945 = vsub.f32 %v3926, %v3937
        %v3946 = vmul.f32 %v3938, %v3938
        %v3947 = vmul.f32 %v3939, %v3939
        %v3948 = vmul.f32 %v3940, %v3940
        %v3949 = vmul.f32 %v3941, %v3941
        %v3950 = vmul.f32 %v3942, %v3942
        %v3951 = vmul.f32 %v3943, %v3943
        %v3952 = vmul.f32 %v3944, %v3944
        %v3953 = vmul.f32 %v3945, %v3945
        %v3954 = vadd.f32 %v3946, %v3947
        %v3955 = vadd.f32 %v3954, %v3948
        %v3956 = vadd.f32 %v3955, %v3949
        %v3957 = vadd.f32 %v3956, %v3950
        %v3958 = vadd.f32 %v3957, %v3951
        %v3959 = vadd.f32 %v3958, %v3952
        %v3960 = vadd.f32 %v3959, %v3953
        %3961 = vadd.xlane.f32.xlu0 %v3960
        %v3962 = vpop.xlane.xlu0 %3961
        %v3963 = vmul.f32 %v3962, %v2216
        %v3964 = vadd.f32 %v3963, 1e-05
        %v3965 = vrsqrt.pop %v3964
        %v3966 = vmul.f32 %v3938, %v3965
        %v3967 = vmul.f32 %v3939, %v3965
        %v3968 = vmul.f32 %v3940, %v3965
        %v3969 = vmul.f32 %v3941, %v3965
        %v3970 = vmul.f32 %v3942, %v3965
        %v3971 = vmul.f32 %v3943, %v3965
        %v3972 = vmul.f32 %v3944, %v3965
        %v3973 = vmul.f32 %v3945, %v3965
        %v3974 = vmax.f32 %v3966, 0.0
        %v3975 = vmax.f32 %v3967, 0.0
        %v3976 = vmax.f32 %v3968, 0.0
        %v3977 = vmax.f32 %v3969, 0.0
        %v3978 = vmax.f32 %v3970, 0.0
        %v3979 = vmax.f32 %v3971, 0.0
        %v3980 = vmax.f32 %v3972, 0.0
        %v3981 = vmax.f32 %v3973, 0.0
        %3982 = vst [vmem:[%s252] sm:$0xff] %v3974
        %3983 = vst [vmem:[%s252 + $0x8] sm:$0xff] %v3975
        %3984 = vst [vmem:[%s252 + $0x10] sm:$0xff] %v3976
        %3985 = vst [vmem:[%s252 + $0x18] sm:$0xff] %v3977
        %3986 = vst [vmem:[%s252 + $0x20] sm:$0xff] %v3978
        %3987 = vst [vmem:[%s252 + $0x28] sm:$0xff] %v3979
        %3988 = vst [vmem:[%s252 + $0x30] sm:$0xff] %v3980
        %3989 = vst [vmem:[%s252 + $0x38] sm:$0xff] %v3981
        %p3990 = scmp.lt.s32.totalorder %s18, 1
        %s3991 = scalar_select %p3990, %s18, 1
        %s3992 = smul.addr %s3991, 8
        %s3993 = smul.addr %s3992, 8
        %s3994 = scalar_lea.vmem %s5, %s3993
        // Predicated region
        $region49: #{up_noskip_forward.1} parent=39 // pred_check
          %p3995 = pneg %p146
        $region50: #{up_noskip_forward.1} parent=39 // pred_check_branch
          %3997 = sbr.rel (%p3995) target = $region52
        $region51: #{up_noskip_forward.1} parent=39 // pred_region
          _
        $region52: #{up_noskip_forward.1} parent=39 // pred_fallthru
          _
      $region40: #{up_noskip_forward.1} parent=5 // pred_fallthru
        _
      %p3998 = scmp.le.s32.totalorder 2, %s13
      // Predicated region
      $region53: #{up_noskip_forward.1} parent=5 // pred_check
        %p3999 = pneg %p3998
      $region54: #{up_noskip_forward.1} parent=5 // pred_check_branch
        %4001 = sbr.rel (%p3999) target = $region56
      $region55: #{up_noskip_forward.1} parent=5 // pred_region
        %s4002 = ssub.s32 %s13, 2
        // Predicated region
        $region57: #{up_noskip_forward.1} parent=55 // pred_check
          %p4003 = pneg %p152
        $region58: #{up_noskip_forward.1} parent=55 // pred_check_branch
          %4005 = sbr.rel (%p4003) target = $region60
        $region59: #{up_noskip_forward.1} parent=55 // pred_region
          %p4006 = scmp.lt.s32.totalorder %s19, 1
          %s4007 = scalar_select %p4006, %s19, 1
          %s4008 = smul.addr %s4007, 8
          %s4009 = smul.addr %s4008, 8
          %s4010 = scalar_lea.vmem %s5, %s4009
        $region60: #{up_noskip_forward.1} parent=55 // pred_fallthru
          _
      $region56: #{up_noskip_forward.1} parent=5 // pred_fallthru
        _
    $region6: #{up_noskip_forward.1} parent=1 // loop_footer
      %s17 = sadd.s32 1, %s13
    $region7: #{up_noskip_forward.1} parent=1 // loop_footer_branch
      %12 = sbr.rel target = $region3
    $region8: #{up_noskip_forward.1} parent=1 // loop_exit
      _
    %4011 = vsyncpa [#allocation7], 1
    %s4012 = scalar_lea.sflag [#allocation7], 1
    %4013 = vsyncpa %s4012, 1
    %4014 = vsyncpa [#allocation9], 1

</llo_original>
